<compile_context>
chip_gen: v5e
topology: v5e:2x2
jax: 0.10.0
libtpu: 0.0.40
codegen_flags: <defaults>
</compile_context>

<pallas_src>
import jax
import jax.numpy as jnp
from jax.experimental import pallas as pl
from jax.experimental.pallas import tpu as pltpu

V = 778                       # MANO vertex count
VP = ((V + 127) // 128) * 128             # 896, lane-padded vertex count
VP3 = 3 * VP                               # 2688, coords-major flat width
NJ = 16                       # MANO kinematic joints
NBETA = 10
NPOSE = 135                   # 15 joints * 9 rotation-matrix entries
HID = 512
HID2 = 2 * HID
THETA_DIM = 48
HEAD_OUT = 128                # padded (beta || theta || de-interleaved theta) head lanes
NR = 9 * NJ                   # 144, rotation entries in entry-major [e, j] layout
JOUT = 128                    # lane-padded joint-output width
TX0, TY0, TZ0 = 64, 80, 96    # de-interleaved theta (x / y / z) columns in the head output

MANO_PARENTS = [-1, 0, 1, 2, 0, 4, 5, 0, 7, 8, 0, 10, 11, 0, 13, 14]
CHAIN_ROOTS = [1, 4, 7, 10, 13]           # children of the root; chains have depth 3
TIP_VERT_IDS = [745, 317, 444, 556, 673]
JOINT_REORDER = [0, 13, 14, 15, 16, 1, 2, 3, 17, 4, 5, 6, 18, 10, 11, 12, 19, 7, 8, 9, 20]
CENTER_IDX = 9


# ----------------------------- Pallas kernels -----------------------------

def _fused_kernel(z_ref, w1_ref, b1_ref, w2_ref, b2_ref,
                  sdpd_ref, vt_ref, sdjr_ref, vtjr_ref,
                  head_ref, r_ref, vp_ref, jr_ref):
    # --- fused beta+theta MLP heads: Linear -> ReLU -> Linear (bf16 weights, f32 acc) ---
    h = jnp.dot(z_ref[...].astype(jnp.bfloat16), w1_ref[...],
                preferred_element_type=jnp.float32) + b1_ref[...]
    h = jnp.maximum(h, 0.0)
    head = jnp.dot(h.astype(jnp.bfloat16), w2_ref[...],
                   preferred_element_type=jnp.float32) + b2_ref[...]
    head_ref[...] = head                                                   # (B, 128)
    beta = head[:, :NBETA]                                                 # (B, 10)

    # --- Rodrigues on the de-interleaved theta columns (elementwise, EUP/VPU) ---
    tx = head[:, TX0:TX0 + NJ]
    ty = head[:, TY0:TY0 + NJ]
    tz = head[:, TZ0:TZ0 + NJ]
    angle = jnp.sqrt(tx * tx + ty * ty + tz * tz + 1e-8)
    inv = 1.0 / angle
    x = tx * inv
    y = ty * inv
    z = tz * inv
    c = jnp.cos(angle)
    s = jnp.sin(angle)
    C = 1.0 - c
    # entry-major layout: r_cat[:, e*16 + j] = R[b, j] entry e (row-major 3x3)
    r_cat = jnp.concatenate(
        [c + x * x * C, x * y * C - z * s, x * z * C + y * s,
         y * x * C + z * s, c + y * y * C, y * z * C - x * s,
         z * x * C - y * s, z * y * C + x * s, c + z * z * C], axis=1)     # (B, 144)
    r_ref[...] = r_cat

    # --- merged shape+pose blend (single K=154 matmul, "-I" folded into the template) ---
    bp = jnp.concatenate([beta, r_cat], axis=1)                            # (B, 154)
    vp_ref[...] = jnp.dot(bp, sdpd_ref[...],
                          preferred_element_type=jnp.float32) + vt_ref[...]
    # --- rest-joint regression folded through the shape basis: tiny (B,10)@(10,128) ---
    jr_ref[...] = jnp.dot(beta, sdjr_ref[...],
                          preferred_element_type=jnp.float32) + vtjr_ref[...]


def fused_heads_blend(z, w1c, b1c, w2c, b2c, sdpd, vt_adj, sd_jreg, vt_jreg):
    B = z.shape[0]
    return pl.pallas_call(
        _fused_kernel,
        out_shape=(jax.ShapeDtypeStruct((B, HEAD_OUT), jnp.float32),
                   jax.ShapeDtypeStruct((B, NR), jnp.float32),
                   jax.ShapeDtypeStruct((B, VP3), jnp.float32),
                   jax.ShapeDtypeStruct((B, JOUT), jnp.float32)),
    )(z, w1c, b1c, w2c, b2c, sdpd, vt_adj, sd_jreg, vt_jreg)


def _blend_kernel(bp_ref, sdpd_ref, vt_ref, sdjr_ref, vtjr_ref, vp_ref, jr_ref):
    # Direct beta/theta path (Rodrigues done in plain JAX outside).
    bp = bp_ref[...]
    vp_ref[...] = jnp.dot(bp, sdpd_ref[...],
                          preferred_element_type=jnp.float32) + vt_ref[...]
    jr_ref[...] = jnp.dot(bp[:, :NBETA], sdjr_ref[...],
                          preferred_element_type=jnp.float32) + vtjr_ref[...]


def blend_only(bp, sdpd, vt_adj, sd_jreg, vt_jreg):
    B = bp.shape[0]
    return pl.pallas_call(
        _blend_kernel,
        out_shape=(jax.ShapeDtypeStruct((B, VP3), jnp.float32),
                   jax.ShapeDtypeStruct((B, JOUT), jnp.float32)),
    )(bp, sdpd, vt_adj, sd_jreg, vt_jreg)


def _lbs_kernel(a_ref, vp_ref, wt_ref, jregT_ref, out_ref, j_ref):
    # a_ref  : (B*16, 16)  rows = b*16 + e (e = flattened 4x4 entry), cols = joint
    #          (the joint-9 centering is already folded into the translation column)
    # vp_ref : (B*3, VP)   rows = b*3 + coord, coords-major, lane-dense padded vertices
    # One batched matmul for the blended per-vertex transforms (MXU), then 9 full-lane FMAs.
    Tt = jnp.dot(a_ref[...], wt_ref[...], preferred_element_type=jnp.float32)  # (B*16, VP)
    B = a_ref.shape[0] // NJ
    rows = []
    for b in range(B):                                   # small-B unroll; re-grid for large B
        vx = vp_ref[3 * b + 0:3 * b + 1, :]
        vy = vp_ref[3 * b + 1:3 * b + 2, :]
        vz = vp_ref[3 * b + 2:3 * b + 3, :]
        for k in range(3):
            e = NJ * b + 4 * k
            rows.append(Tt[e + 0:e + 1, :] * vx + Tt[e + 1:e + 2, :] * vy
                        + Tt[e + 2:e + 3, :] * vz + Tt[e + 3:e + 4, :])
    skinned = jnp.concatenate(rows, axis=0)              # (B*3, VP), already centered
    out_ref[...] = skinned                               # single contiguous lane-dense store
    # final 16-joint regression from the centered skinned mesh, 128-lane-padded output
    j_ref[...] = jnp.dot(skinned, jregT_ref[...],
                         preferred_element_type=jnp.float32)                 # (B*3, 128)


def lbs_and_final_joints(a2, vp_rows, wt, jregT_pad):
    B3 = vp_rows.shape[0]
    return pl.pallas_call(
        _lbs_kernel,
        out_shape=(jax.ShapeDtypeStruct((B3, VP), jnp.float32),
                   jax.ShapeDtypeStruct((B3, JOUT), jnp.float32)),
    )(a2, vp_rows, wt, jregT_pad)


# ----------------------------- plain-JAX glue -----------------------------

def batch_rodrigues(axisang):
    # (N, 3) axis-angle -> (N, 3, 3) rotation matrices
    eps = 1e-8
    angle = jnp.sqrt(jnp.sum(axisang * axisang, axis=1) + eps)
    axis = axisang / angle[:, None]
    x, y, z = axis[:, 0], axis[:, 1], axis[:, 2]
    c = jnp.cos(angle)
    s = jnp.sin(angle)
    C = 1.0 - c
    R = jnp.stack([
        c + x * x * C,     x * y * C - z * s, x * z * C + y * s,
        y * x * C + z * s, c + y * y * C,     y * z * C - x * s,
        z * x * C - y * s, z * y * C + x * s, c + z * z * C], axis=1)
    return R.reshape(-1, 3, 3)


def rigid_transform(R, J):
    # R: (B, 16, 3, 3), J: (B, 16, 3) rest joints.
    # Depth-vectorized kinematic chain: MANO = 5 independent chains of depth 3.
    # Returns posed joints (B, 16, 3) and rest-relative transforms A (B, 16, 4, 4).
    B = R.shape[0]
    parents = jnp.array(MANO_PARENTS[1:])
    J_rel = jnp.concatenate([J[:, :1], J[:, 1:] - J[:, parents]], axis=1)     # (B, 16, 3)
    T_local = jnp.concatenate([R, J_rel[..., None]], axis=-1)                 # (B, 16, 3, 4)
    bottom = jnp.broadcast_to(jnp.array([0., 0., 0., 1.], jnp.float32), (B, NJ, 1, 4))
    T_local = jnp.concatenate([T_local, bottom], axis=-2)                     # (B, 16, 4, 4)

    l1 = jnp.array(CHAIN_ROOTS)
    l2 = l1 + 1
    l3 = l1 + 2
    G0 = T_local[:, 0]                                                        # (B, 4, 4)
    G1 = jnp.matmul(G0[:, None], T_local[:, l1])                              # (B, 5, 4, 4)
    G2 = jnp.matmul(G1, T_local[:, l2])
    G3 = jnp.matmul(G2, T_local[:, l3])
    stacked = jnp.concatenate([G0[:, None], G1, G2, G3], axis=1)              # (B, 16, 4, 4)

    order = [0] + CHAIN_ROOTS + [i + 1 for i in CHAIN_ROOTS] + [i + 2 for i in CHAIN_ROOTS]
    inv = [0] * NJ
    for pos, j in enumerate(order):
        inv[j] = pos
    results = stacked[:, jnp.array(inv)]                                      # MANO joint order

    posed_joints = results[:, :, :3, 3]
    Jh = jnp.concatenate([J, jnp.zeros((B, NJ, 1), jnp.float32)], axis=-1)
    corr = jnp.einsum('bjkl,bjl->bjk', results, Jh)
    A = results - jnp.concatenate(
        [jnp.zeros((B, NJ, 4, 3), jnp.float32), corr[..., None]], axis=-1)
    return posed_joints, A


class ManoLayerPallas:
    """JAX/Pallas port of the PyTorch ManoLayer forward pass (skeidx='FreiHand')."""

    def __init__(self, key, n_latent=32):
        ks = jax.random.split(key, 12)
        # ---- synthetic MANO model parameters (shapes match the real model) ----
        self.v_template = jax.random.uniform(ks[0], (V, 3), jnp.float32, -0.1, 0.1)
        self.shapedirs = jax.random.normal(ks[1], (V, 3, NBETA), jnp.float32) * 0.01
        self.posedirs = jax.random.normal(ks[2], (V, 3, NPOSE), jnp.float32) * 0.001
        jr = jax.random.uniform(ks[3], (NJ, V), jnp.float32)
        self.j_regressor = jr / jnp.sum(jr, axis=1, keepdims=True)
        w = jax.random.uniform(ks[4], (V, NJ), jnp.float32)
        self.lbs_weights = w / jnp.sum(w, axis=1, keepdims=True)

        # ---- beta / theta MLP heads (Linear(n_latent,512) -> ReLU -> Linear) ----
        s1, s2 = 1.0 / jnp.sqrt(n_latent), 1.0 / jnp.sqrt(HID)
        self.beta_w1 = jax.random.uniform(ks[5], (n_latent, HID), jnp.float32, -s1, s1)
        self.beta_b1 = jax.random.uniform(ks[6], (HID,), jnp.float32, -s1, s1)
        self.beta_w2 = jax.random.uniform(ks[7], (HID, NBETA), jnp.float32, -s2, s2)
        self.beta_b2 = jnp.zeros((NBETA,), jnp.float32)
        self.theta_w1 = jax.random.uniform(ks[8], (n_latent, HID), jnp.float32, -s1, s1)
        self.theta_b1 = jax.random.uniform(ks[9], (HID,), jnp.float32, -s1, s1)
        self.theta_w2 = jax.random.uniform(ks[10], (HID, THETA_DIM), jnp.float32, -s2, s2) * 0.1
        self.theta_b2 = jnp.zeros((THETA_DIM,), jnp.float32)

        # ---- fused head weights (bf16): beta cols [0:10], theta cols [10:58], plus
        #      de-interleaved theta x/y/z copies at [64:80]/[80:96]/[96:112] so the
        #      in-kernel Rodrigues never has to lane-shuffle an interleaved layout ----
        w1c = jnp.zeros((n_latent, HID2), jnp.float32)
        w1c = w1c.at[:, :HID].set(self.beta_w1).at[:, HID:].set(self.theta_w1)
        b1c = jnp.zeros((1, HID2), jnp.float32)
        b1c = b1c.at[0, :HID].set(self.beta_b1).at[0, HID:].set(self.theta_b1)
        w2c = jnp.zeros((HID2, HEAD_OUT), jnp.float32)
        w2c = w2c.at[:HID, :NBETA].set(self.beta_w2)
        w2c = w2c.at[HID:, NBETA:NBETA + THETA_DIM].set(self.theta_w2)
        w2c = w2c.at[HID:, TX0:TX0 + NJ].set(self.theta_w2[:, 0::3])
        w2c = w2c.at[HID:, TY0:TY0 + NJ].set(self.theta_w2[:, 1::3])
        w2c = w2c.at[HID:, TZ0:TZ0 + NJ].set(self.theta_w2[:, 2::3])
        b2c = jnp.zeros((1, HEAD_OUT), jnp.float32)
        b2c = b2c.at[0, :NBETA].set(self.beta_b2)
        b2c = b2c.at[0, NBETA:NBETA + THETA_DIM].set(self.theta_b2)
        b2c = b2c.at[0, TX0:TX0 + NJ].set(self.theta_b2[0::3])
        b2c = b2c.at[0, TY0:TY0 + NJ].set(self.theta_b2[1::3])
        b2c = b2c.at[0, TZ0:TZ0 + NJ].set(self.theta_b2[2::3])
        self.w1cat = w1c.astype(jnp.bfloat16)
        self.b1cat = b1c
        self.w2cat = w2c.astype(jnp.bfloat16)
        self.b2cat = b2c

        # ---- coords-major, lane-dense, zero-padded kernel operands (all f32) ----
        # flat column index = c * VP + v  (c = xyz coordinate, v = vertex)
        def cm_flat(x_r3v):                       # (rows, 3, V) -> (rows, 3*VP), zero padded
            rows = x_r3v.shape[0]
            out = jnp.zeros((rows, VP3), jnp.float32)
            for c in range(3):
                out = out.at[:, c * VP: c * VP + V].set(x_r3v[:, c, :])
            return out

        sd_cm = cm_flat(jnp.transpose(self.shapedirs, (2, 1, 0)))   # (10,  2688)
        pd_cm = cm_flat(jnp.transpose(self.posedirs, (2, 1, 0)))    # (135, 2688)
        vt_cm = cm_flat(self.v_template.T[None])                    # (1,   2688)

        # pose blend basis reordered to entry-major [e*16 + j] (zero row for joint 0)
        pd_ej = jnp.transpose(pd_cm.reshape(15, 9, VP3), (1, 0, 2))            # [e, j-1, :]
        pd144 = jnp.concatenate([jnp.zeros((9, 1, VP3), jnp.float32), pd_ej],
                                axis=1).reshape(NR, VP3)                        # (144, 2688)
        # fold the "- I" of the pose map into the template
        ident = pd144.reshape(9, NJ, VP3)[jnp.array([0, 4, 8])].sum(axis=(0, 1))
        self.vt_adj = vt_cm - ident[None, :]                                    # (1, 2688)
        self.sdpd = jnp.concatenate([sd_cm, pd144], axis=0)                     # (154, 2688)

        # rest-joint regression folded through the shape basis (f32, 128-lane padded)
        sd_jr = jnp.einsum('jv,vcb->bjc', self.j_regressor,
                           self.shapedirs).reshape(NBETA, NJ * 3)
        vt_jr = jnp.einsum('jv,vc->jc', self.j_regressor,
                           self.v_template).reshape(1, NJ * 3)
        self.sd_jreg = jnp.zeros((NBETA, JOUT), jnp.float32).at[:, :NJ * 3].set(sd_jr)
        self.vt_jreg = jnp.zeros((1, JOUT), jnp.float32).at[:, :NJ * 3].set(vt_jr)

        # final 16-joint regressor (rows padded to VP, cols padded to 128) & skin weights
        self.jregT_pad = jnp.zeros((VP, JOUT), jnp.float32).at[:V, :NJ].set(
            self.j_regressor.T)                                                  # (896, 128)
        self.wt = jnp.zeros((NJ, VP), jnp.float32).at[:, :V].set(
            self.lbs_weights.T)                                                  # (16, 896)

    # ---------------------------------------------------------------------

    def __call__(self, z=None, beta=None, theta=None):
        if beta is None or theta is None:
            # fused heads + Rodrigues + blend shapes + rest-joint regression (one kernel)
            head_out, r_cat, vp_flat, jr = fused_heads_blend(
                z, self.w1cat, self.b1cat, self.w2cat, self.b2cat,
                self.sdpd, self.vt_adj, self.sd_jreg, self.vt_jreg)
            beta_h = head_out[:, :NBETA]
            theta_h = head_out[:, NBETA:NBETA + THETA_DIM]
            if beta is None and theta is None:
                B = beta_h.shape[0]
                R_all = jnp.transpose(r_cat.reshape(B, 9, NJ),
                                      (0, 2, 1)).reshape(B, NJ, 3, 3)
                J_rest = jr[:, :NJ * 3].reshape(B, NJ, 3)
                return self._finish(beta_h, theta_h, R_all, vp_flat, J_rest)
            beta = beta_h if beta is None else beta
            theta = theta_h if theta is None else theta

        # direct / mixed path: Rodrigues in plain JAX + blend-only kernel
        beta = beta.reshape(-1, NBETA)
        theta = theta.reshape(-1, THETA_DIM)
        B = beta.shape[0]
        # flat_hand_mean=True, use_pca=False -> full pose == theta (global rot + 45 dof)
        R_all = batch_rodrigues(theta.reshape(-1, 3)).reshape(B, NJ, 3, 3)
        r_cat = jnp.transpose(R_all.reshape(B, NJ, 9), (0, 2, 1)).reshape(B, NR)
        bp = jnp.concatenate([beta, r_cat], axis=1)                              # (B, 154)
        vp_flat, jr = blend_only(bp, self.sdpd, self.vt_adj, self.sd_jreg, self.vt_jreg)
        J_rest = jr[:, :NJ * 3].reshape(B, NJ, 3)
        return self._finish(beta, theta, R_all, vp_flat, J_rest)

    def _finish(self, beta, theta, R_all, vp_flat, J_rest):
        B = beta.shape[0]
        # kinematic chain (tiny 4x4 math, depth-vectorized, plain JAX)
        posed_joints, A = rigid_transform(R_all, J_rest)
        center = posed_joints[:, JOINT_REORDER[CENTER_IDX], :]                   # (B, 3)

        # fold the centering into the per-joint transforms (skin weights sum to 1),
        # so the LBS kernel needs no center input and padded vertices stay exactly 0
        A_c = A.at[:, :, :3, 3].add(-center[:, None, :])
        a2 = jnp.transpose(A_c.reshape(B, NJ, 16), (0, 2, 1)).reshape(B * NJ, NJ)
        vp_rows = vp_flat.reshape(B * 3, VP)          # coords-major flat -> (B*3, VP), free

        # batch-folded LBS + final 16-joint regression (one Pallas kernel, no grid)
        out3, j_out = lbs_and_final_joints(a2, vp_rows, self.wt, self.jregT_pad)
        mano_verts = jnp.transpose(out3.reshape(B, 3, VP)[:, :, :V], (0, 2, 1))   # (B, V, 3)
        joints16 = jnp.transpose(j_out.reshape(B, 3, JOUT)[:, :, :NJ], (0, 2, 1))  # (B, 16, 3)

        # MANO joints: 16 posed joints + 5 fingertip vertices, reordered, centered at idx 9
        tips = mano_verts[:, jnp.array(TIP_VERT_IDS), :]                          # centered
        mano_joints = jnp.concatenate(
            [posed_joints - center[:, None, :], tips], axis=1)[:, jnp.array(JOINT_REORDER), :]

        # xyz_from_vertice: 16 joints regressed from final mesh + 21-keypoint FreiHand set
        joints = self._keypoints_from_mesh(mano_verts, joints16)

        # skeidx == 'FreiHand' -> no re-indexing
        return {'beta': beta, 'theta': theta, 'mesh': mano_verts,
                'joints': joints, 'mano_joints': mano_joints}

    @staticmethod
    def _keypoints_from_mesh(mesh_vertices, keypoints_regressed):
        mapping = {0: 0, 1: 5, 2: 6, 3: 7, 4: 9, 5: 10, 6: 11, 7: 17, 8: 18,
                   9: 19, 10: 13, 11: 14, 12: 15, 13: 1, 14: 2, 15: 3}
        tip_map = {4: 744, 8: 320, 12: 443, 16: 555, 20: 672}
        keypoints = [None] * 21
        for mano_id, my_id in mapping.items():
            keypoints[my_id] = keypoints_regressed[:, mano_id, :]
        for my_id, vid in tip_map.items():
            # torch.mean over a single-vertex index list == that vertex
            keypoints[my_id] = mesh_vertices[:, vid, :]
        return jnp.stack(keypoints, axis=1)   # == torch.stack(dim=0).permute(1,0,2)

    # TODO(synk): render() uses neural_renderer silhouette/depth rasterization -- no Pallas equivalent.


if __name__ == "__main__":
    key = jax.random.PRNGKey(0)
    pkey, zkey = jax.random.split(key)
    n_latent, B = 32, 2
    layer = ManoLayerPallas(pkey, n_latent=n_latent)
    z = jax.random.normal(zkey, (B, n_latent), dtype=jnp.float32)

    fwd = jax.jit(lambda zz: layer(z=zz))
    out = fwd(z)
    out = jax.block_until_ready(out)

    assert out['beta'].shape == (B, NBETA)
    assert out['theta'].shape == (B, THETA_DIM)
    assert out['mesh'].shape == (B, V, 3)
    assert out['joints'].shape == (B, 21, 3)
    assert out['mano_joints'].shape == (B, 21, 3)
    assert all(bool(jnp.all(jnp.isfinite(v))) for v in out.values())
    print("KERNEL_OK")
</pallas_src>

<mosaic_0001>
module attributes {stable_mosaic.version = 11 : i64} {
  func.func @_fused_kernel(%arg0: memref<2x32xf32, #tpu.memory_space<vmem>>, %arg1: memref<32x1024xbf16, #tpu.memory_space<vmem>>, %arg2: memref<1x1024xf32, #tpu.memory_space<vmem>>, %arg3: memref<1024x128xbf16, #tpu.memory_space<vmem>>, %arg4: memref<1x128xf32, #tpu.memory_space<vmem>>, %arg5: memref<154x2688xf32, #tpu.memory_space<vmem>>, %arg6: memref<1x2688xf32, #tpu.memory_space<vmem>>, %arg7: memref<10x128xf32, #tpu.memory_space<vmem>>, %arg8: memref<1x128xf32, #tpu.memory_space<vmem>>, %arg9: memref<2x128xf32, #tpu.memory_space<vmem>>, %arg10: memref<2x144xf32, #tpu.memory_space<vmem>>, %arg11: memref<2x2688xf32, #tpu.memory_space<vmem>>, %arg12: memref<2x128xf32, #tpu.memory_space<vmem>>) attributes {dimension_semantics = [], scalar_prefetch = 0 : i64, scratch_operands = 0 : i64, tpu.core_type = #tpu.core_type<tc>} {
    %c0 = arith.constant 0 : index
    %c0_0 = arith.constant 0 : index
    %0 = vector.load %arg0[%c0, %c0_0] : memref<2x32xf32, #tpu.memory_space<vmem>>, vector<2x32xf32>
    %1 = arith.truncf %0 : vector<2x32xf32> to vector<2x32xbf16>
    %c0_1 = arith.constant 0 : index
    %c0_2 = arith.constant 0 : index
    %2 = vector.load %arg1[%c0_1, %c0_2] : memref<32x1024xbf16, #tpu.memory_space<vmem>>, vector<32x1024xbf16>
    %cst = arith.constant dense<0.000000e+00> : vector<2x1024xf32>
    %3 = tpu.matmul %1, %2, %cst {dimension_numbers = #tpu.dot_dimension_numbers<[1], [0], [0], [1], [0, 0, 1, 1], [], []>} : vector<2x32xbf16>, vector<32x1024xbf16>, vector<2x1024xf32> -> vector<2x1024xf32>
    %c0_3 = arith.constant 0 : index
    %c0_4 = arith.constant 0 : index
    %4 = vector.load %arg2[%c0_3, %c0_4] : memref<1x1024xf32, #tpu.memory_space<vmem>>, vector<1x1024xf32>
    %5 = vector.broadcast %4 : vector<1x1024xf32> to vector<2x1024xf32>
    %6 = arith.addf %3, %5 : vector<2x1024xf32>
    %cst_5 = arith.constant 0.000000e+00 : f32
    %7 = vector.broadcast %cst_5 : f32 to vector<2x1024xf32>
    %8 = arith.maximumf %6, %7 : vector<2x1024xf32>
    %9 = arith.truncf %8 : vector<2x1024xf32> to vector<2x1024xbf16>
    %c0_6 = arith.constant 0 : index
    %c0_7 = arith.constant 0 : index
    %10 = vector.load %arg3[%c0_6, %c0_7] : memref<1024x128xbf16, #tpu.memory_space<vmem>>, vector<1024x128xbf16>
    %cst_8 = arith.constant dense<0.000000e+00> : vector<2x128xf32>
    %11 = tpu.matmul %9, %10, %cst_8 {dimension_numbers = #tpu.dot_dimension_numbers<[1], [0], [0], [1], [0, 0, 1, 1], [], []>} : vector<2x1024xbf16>, vector<1024x128xbf16>, vector<2x128xf32> -> vector<2x128xf32>
    %c0_9 = arith.constant 0 : index
    %c0_10 = arith.constant 0 : index
    %12 = vector.load %arg4[%c0_9, %c0_10] : memref<1x128xf32, #tpu.memory_space<vmem>>, vector<1x128xf32>
    %13 = vector.broadcast %12 : vector<1x128xf32> to vector<2x128xf32>
    %14 = arith.addf %11, %13 : vector<2x128xf32>
    %c0_11 = arith.constant 0 : index
    %c0_12 = arith.constant 0 : index
    %15 = vector.load %arg9[%c0_11, %c0_12] : memref<2x128xf32, #tpu.memory_space<vmem>>, vector<2x128xf32>
    tpu.vector_store %arg9[%c0_11, %c0_12], %14 {strides = array<i32>} : memref<2x128xf32, #tpu.memory_space<vmem>>, vector<2x128xf32>,
    %16 = vector.extract_strided_slice %14 {offsets = [0, 0], sizes = [2, 10], strides = [1, 1]} : vector<2x128xf32> to vector<2x10xf32>
    %17 = vector.extract_strided_slice %14 {offsets = [0, 64], sizes = [2, 16], strides = [1, 1]} : vector<2x128xf32> to vector<2x16xf32>
    %18 = vector.extract_strided_slice %14 {offsets = [0, 80], sizes = [2, 16], strides = [1, 1]} : vector<2x128xf32> to vector<2x16xf32>
    %19 = vector.extract_strided_slice %14 {offsets = [0, 96], sizes = [2, 16], strides = [1, 1]} : vector<2x128xf32> to vector<2x16xf32>
    %20 = arith.mulf %17, %17 : vector<2x16xf32>
    %21 = arith.mulf %18, %18 : vector<2x16xf32>
    %22 = arith.addf %20, %21 : vector<2x16xf32>
    %23 = arith.mulf %19, %19 : vector<2x16xf32>
    %24 = arith.addf %22, %23 : vector<2x16xf32>
    %cst_13 = arith.constant 9.99999993E-9 : f32
    %25 = vector.broadcast %cst_13 : f32 to vector<2x16xf32>
    %26 = arith.addf %24, %25 : vector<2x16xf32>
    %27 = math.sqrt %26 : vector<2x16xf32>
    %cst_14 = arith.constant 1.000000e+00 : f32
    %28 = vector.broadcast %cst_14 : f32 to vector<2x16xf32>
    %29 = arith.divf %28, %27 : vector<2x16xf32>
    %30 = arith.mulf %17, %29 : vector<2x16xf32>
    %31 = arith.mulf %18, %29 : vector<2x16xf32>
    %32 = arith.mulf %19, %29 : vector<2x16xf32>
    %33 = math.cos %27 : vector<2x16xf32>
    %34 = math.sin %27 : vector<2x16xf32>
    %cst_15 = arith.constant 1.000000e+00 : f32
    %35 = vector.broadcast %cst_15 : f32 to vector<2x16xf32>
    %36 = arith.subf %35, %33 : vector<2x16xf32>
    %37 = arith.mulf %30, %30 : vector<2x16xf32>
    %38 = arith.mulf %37, %36 : vector<2x16xf32>
    %39 = arith.addf %33, %38 : vector<2x16xf32>
    %40 = arith.mulf %30, %31 : vector<2x16xf32>
    %41 = arith.mulf %40, %36 : vector<2x16xf32>
    %42 = arith.mulf %32, %34 : vector<2x16xf32>
    %43 = arith.subf %41, %42 : vector<2x16xf32>
    %44 = arith.mulf %30, %32 : vector<2x16xf32>
    %45 = arith.mulf %44, %36 : vector<2x16xf32>
    %46 = arith.mulf %31, %34 : vector<2x16xf32>
    %47 = arith.addf %45, %46 : vector<2x16xf32>
    %48 = arith.mulf %31, %30 : vector<2x16xf32>
    %49 = arith.mulf %48, %36 : vector<2x16xf32>
    %50 = arith.mulf %32, %34 : vector<2x16xf32>
    %51 = arith.addf %49, %50 : vector<2x16xf32>
    %52 = arith.mulf %31, %31 : vector<2x16xf32>
    %53 = arith.mulf %52, %36 : vector<2x16xf32>
    %54 = arith.addf %33, %53 : vector<2x16xf32>
    %55 = arith.mulf %31, %32 : vector<2x16xf32>
    %56 = arith.mulf %55, %36 : vector<2x16xf32>
    %57 = arith.mulf %30, %34 : vector<2x16xf32>
    %58 = arith.subf %56, %57 : vector<2x16xf32>
    %59 = arith.mulf %32, %30 : vector<2x16xf32>
    %60 = arith.mulf %59, %36 : vector<2x16xf32>
    %61 = arith.mulf %31, %34 : vector<2x16xf32>
    %62 = arith.subf %60, %61 : vector<2x16xf32>
    %63 = arith.mulf %32, %31 : vector<2x16xf32>
    %64 = arith.mulf %63, %36 : vector<2x16xf32>
    %65 = arith.mulf %30, %34 : vector<2x16xf32>
    %66 = arith.addf %64, %65 : vector<2x16xf32>
    %67 = arith.mulf %32, %32 : vector<2x16xf32>
    %68 = arith.mulf %67, %36 : vector<2x16xf32>
    %69 = arith.addf %33, %68 : vector<2x16xf32>
    %70 = tpu.concatenate %39, %43, %47, %51, %54, %58, %62, %66, %69 in 1 : vector<2x16xf32>, vector<2x16xf32>, vector<2x16xf32>, vector<2x16xf32>, vector<2x16xf32>, vector<2x16xf32>, vector<2x16xf32>, vector<2x16xf32>, vector<2x16xf32> -> vector<2x144xf32>
    %c0_16 = arith.constant 0 : index
    %c0_17 = arith.constant 0 : index
    %71 = vector.load %arg10[%c0_16, %c0_17] : memref<2x144xf32, #tpu.memory_space<vmem>>, vector<2x144xf32>
    tpu.vector_store %arg10[%c0_16, %c0_17], %70 {strides = array<i32>} : memref<2x144xf32, #tpu.memory_space<vmem>>, vector<2x144xf32>,
    %72 = tpu.concatenate %16, %70 in 1 : vector<2x10xf32>, vector<2x144xf32> -> vector<2x154xf32>
    %c0_18 = arith.constant 0 : index
    %c0_19 = arith.constant 0 : index
    %73 = vector.load %arg5[%c0_18, %c0_19] : memref<154x2688xf32, #tpu.memory_space<vmem>>, vector<154x2688xf32>
    %cst_20 = arith.constant dense<0.000000e+00> : vector<2x2688xf32>
    %74 = tpu.matmul %72, %73, %cst_20 {dimension_numbers = #tpu.dot_dimension_numbers<[1], [0], [0], [1], [0, 0, 1, 1], [], []>} : vector<2x154xf32>, vector<154x2688xf32>, vector<2x2688xf32> -> vector<2x2688xf32>
    %c0_21 = arith.constant 0 : index
    %c0_22 = arith.constant 0 : index
    %75 = vector.load %arg6[%c0_21, %c0_22] : memref<1x2688xf32, #tpu.memory_space<vmem>>, vector<1x2688xf32>
    %76 = vector.broadcast %75 : vector<1x2688xf32> to vector<2x2688xf32>
    %77 = arith.addf %74, %76 : vector<2x2688xf32>
    %c0_23 = arith.constant 0 : index
    %c0_24 = arith.constant 0 : index
    %78 = vector.load %arg11[%c0_23, %c0_24] : memref<2x2688xf32, #tpu.memory_space<vmem>>, vector<2x2688xf32>
    tpu.vector_store %arg11[%c0_23, %c0_24], %77 {strides = array<i32>} : memref<2x2688xf32, #tpu.memory_space<vmem>>, vector<2x2688xf32>,
    %c0_25 = arith.constant 0 : index
    %c0_26 = arith.constant 0 : index
    %79 = vector.load %arg7[%c0_25, %c0_26] : memref<10x128xf32, #tpu.memory_space<vmem>>, vector<10x128xf32>
    %cst_27 = arith.constant dense<0.000000e+00> : vector<2x128xf32>
    %80 = tpu.matmul %16, %79, %cst_27 {dimension_numbers = #tpu.dot_dimension_numbers<[1], [0], [0], [1], [0, 0, 1, 1], [], []>} : vector<2x10xf32>, vector<10x128xf32>, vector<2x128xf32> -> vector<2x128xf32>
    %c0_28 = arith.constant 0 : index
    %c0_29 = arith.constant 0 : index
    %81 = vector.load %arg8[%c0_28, %c0_29] : memref<1x128xf32, #tpu.memory_space<vmem>>, vector<1x128xf32>
    %82 = vector.broadcast %81 : vector<1x128xf32> to vector<2x128xf32>
    %83 = arith.addf %80, %82 : vector<2x128xf32>
    %c0_30 = arith.constant 0 : index
    %c0_31 = arith.constant 0 : index
    %84 = vector.load %arg12[%c0_30, %c0_31] : memref<2x128xf32, #tpu.memory_space<vmem>>, vector<2x128xf32>
    tpu.vector_store %arg12[%c0_30, %c0_31], %83 {strides = array<i32>} : memref<2x128xf32, #tpu.memory_space<vmem>>, vector<2x128xf32>,
    return
  }
}

module attributes {stable_mosaic.version = 11 : i64} {
  func.func @_lbs_kernel(%arg0: memref<32x16xf32, #tpu.memory_space<vmem>>, %arg1: memref<6x896xf32, #tpu.memory_space<vmem>>, %arg2: memref<16x896xf32, #tpu.memory_space<vmem>>, %arg3: memref<896x128xf32, #tpu.memory_space<vmem>>, %arg4: memref<6x896xf32, #tpu.memory_space<vmem>>, %arg5: memref<6x128xf32, #tpu.memory_space<vmem>>) attributes {dimension_semantics = [], scalar_prefetch = 0 : i64, scratch_operands = 0 : i64, tpu.core_type = #tpu.core_type<tc>} {
    %c0 = arith.constant 0 : index
    %c0_0 = arith.constant 0 : index
    %0 = vector.load %arg0[%c0, %c0_0] : memref<32x16xf32, #tpu.memory_space<vmem>>, vector<32x16xf32>
    %c0_1 = arith.constant 0 : index
    %c0_2 = arith.constant 0 : index
    %1 = vector.load %arg2[%c0_1, %c0_2] : memref<16x896xf32, #tpu.memory_space<vmem>>, vector<16x896xf32>
    %cst = arith.constant dense<0.000000e+00> : vector<32x896xf32>
    %2 = tpu.matmul %0, %1, %cst {dimension_numbers = #tpu.dot_dimension_numbers<[1], [0], [0], [1], [0, 0, 1, 1], [], []>} : vector<32x16xf32>, vector<16x896xf32>, vector<32x896xf32> -> vector<32x896xf32>
    %c0_3 = arith.constant 0 : index
    %c0_4 = arith.constant 0 : index
    %3 = vector.load %arg1[%c0_3, %c0_4] : memref<6x896xf32, #tpu.memory_space<vmem>>, vector<1x896xf32>
    %c1 = arith.constant 1 : index
    %c0_5 = arith.constant 0 : index
    %4 = vector.load %arg1[%c1, %c0_5] : memref<6x896xf32, #tpu.memory_space<vmem>>, vector<1x896xf32>
    %c2 = arith.constant 2 : index
    %c0_6 = arith.constant 0 : index
    %5 = vector.load %arg1[%c2, %c0_6] : memref<6x896xf32, #tpu.memory_space<vmem>>, vector<1x896xf32>
    %6 = vector.extract_strided_slice %2 {offsets = [0, 0], sizes = [1, 896], strides = [1, 1]} : vector<32x896xf32> to vector<1x896xf32>
    %7 = arith.mulf %6, %3 : vector<1x896xf32>
    %8 = vector.extract_strided_slice %2 {offsets = [1, 0], sizes = [1, 896], strides = [1, 1]} : vector<32x896xf32> to vector<1x896xf32>
    %9 = arith.mulf %8, %4 : vector<1x896xf32>
    %10 = arith.addf %7, %9 : vector<1x896xf32>
    %11 = vector.extract_strided_slice %2 {offsets = [2, 0], sizes = [1, 896], strides = [1, 1]} : vector<32x896xf32> to vector<1x896xf32>
    %12 = arith.mulf %11, %5 : vector<1x896xf32>
    %13 = arith.addf %10, %12 : vector<1x896xf32>
    %14 = vector.extract_strided_slice %2 {offsets = [3, 0], sizes = [1, 896], strides = [1, 1]} : vector<32x896xf32> to vector<1x896xf32>
    %15 = arith.addf %13, %14 : vector<1x896xf32>
    %16 = vector.extract_strided_slice %2 {offsets = [4, 0], sizes = [1, 896], strides = [1, 1]} : vector<32x896xf32> to vector<1x896xf32>
    %17 = arith.mulf %16, %3 : vector<1x896xf32>
    %18 = vector.extract_strided_slice %2 {offsets = [5, 0], sizes = [1, 896], strides = [1, 1]} : vector<32x896xf32> to vector<1x896xf32>
    %19 = arith.mulf %18, %4 : vector<1x896xf32>
    %20 = arith.addf %17, %19 : vector<1x896xf32>
    %21 = vector.extract_strided_slice %2 {offsets = [6, 0], sizes = [1, 896], strides = [1, 1]} : vector<32x896xf32> to vector<1x896xf32>
    %22 = arith.mulf %21, %5 : vector<1x896xf32>
    %23 = arith.addf %20, %22 : vector<1x896xf32>
    %24 = vector.extract_strided_slice %2 {offsets = [7, 0], sizes = [1, 896], strides = [1, 1]} : vector<32x896xf32> to vector<1x896xf32>
    %25 = arith.addf %23, %24 : vector<1x896xf32>
    %26 = vector.extract_strided_slice %2 {offsets = [8, 0], sizes = [1, 896], strides = [1, 1]} : vector<32x896xf32> to vector<1x896xf32>
    %27 = arith.mulf %26, %3 : vector<1x896xf32>
    %28 = vector.extract_strided_slice %2 {offsets = [9, 0], sizes = [1, 896], strides = [1, 1]} : vector<32x896xf32> to vector<1x896xf32>
    %29 = arith.mulf %28, %4 : vector<1x896xf32>
    %30 = arith.addf %27, %29 : vector<1x896xf32>
    %31 = vector.extract_strided_slice %2 {offsets = [10, 0], sizes = [1, 896], strides = [1, 1]} : vector<32x896xf32> to vector<1x896xf32>
    %32 = arith.mulf %31, %5 : vector<1x896xf32>
    %33 = arith.addf %30, %32 : vector<1x896xf32>
    %34 = vector.extract_strided_slice %2 {offsets = [11, 0], sizes = [1, 896], strides = [1, 1]} : vector<32x896xf32> to vector<1x896xf32>
    %35 = arith.addf %33, %34 : vector<1x896xf32>
    %c3 = arith.constant 3 : index
    %c0_7 = arith.constant 0 : index
    %36 = vector.load %arg1[%c3, %c0_7] : memref<6x896xf32, #tpu.memory_space<vmem>>, vector<1x896xf32>
    %c4 = arith.constant 4 : index
    %c0_8 = arith.constant 0 : index
    %37 = vector.load %arg1[%c4, %c0_8] : memref<6x896xf32, #tpu.memory_space<vmem>>, vector<1x896xf32>
    %c5 = arith.constant 5 : index
    %c0_9 = arith.constant 0 : index
    %38 = vector.load %arg1[%c5, %c0_9] : memref<6x896xf32, #tpu.memory_space<vmem>>, vector<1x896xf32>
    %39 = vector.extract_strided_slice %2 {offsets = [16, 0], sizes = [1, 896], strides = [1, 1]} : vector<32x896xf32> to vector<1x896xf32>
    %40 = arith.mulf %39, %36 : vector<1x896xf32>
    %41 = vector.extract_strided_slice %2 {offsets = [17, 0], sizes = [1, 896], strides = [1, 1]} : vector<32x896xf32> to vector<1x896xf32>
    %42 = arith.mulf %41, %37 : vector<1x896xf32>
    %43 = arith.addf %40, %42 : vector<1x896xf32>
    %44 = vector.extract_strided_slice %2 {offsets = [18, 0], sizes = [1, 896], strides = [1, 1]} : vector<32x896xf32> to vector<1x896xf32>
    %45 = arith.mulf %44, %38 : vector<1x896xf32>
    %46 = arith.addf %43, %45 : vector<1x896xf32>
    %47 = vector.extract_strided_slice %2 {offsets = [19, 0], sizes = [1, 896], strides = [1, 1]} : vector<32x896xf32> to vector<1x896xf32>
    %48 = arith.addf %46, %47 : vector<1x896xf32>
    %49 = vector.extract_strided_slice %2 {offsets = [20, 0], sizes = [1, 896], strides = [1, 1]} : vector<32x896xf32> to vector<1x896xf32>
    %50 = arith.mulf %49, %36 : vector<1x896xf32>
    %51 = vector.extract_strided_slice %2 {offsets = [21, 0], sizes = [1, 896], strides = [1, 1]} : vector<32x896xf32> to vector<1x896xf32>
    %52 = arith.mulf %51, %37 : vector<1x896xf32>
    %53 = arith.addf %50, %52 : vector<1x896xf32>
    %54 = vector.extract_strided_slice %2 {offsets = [22, 0], sizes = [1, 896], strides = [1, 1]} : vector<32x896xf32> to vector<1x896xf32>
    %55 = arith.mulf %54, %38 : vector<1x896xf32>
    %56 = arith.addf %53, %55 : vector<1x896xf32>
    %57 = vector.extract_strided_slice %2 {offsets = [23, 0], sizes = [1, 896], strides = [1, 1]} : vector<32x896xf32> to vector<1x896xf32>
    %58 = arith.addf %56, %57 : vector<1x896xf32>
    %59 = vector.extract_strided_slice %2 {offsets = [24, 0], sizes = [1, 896], strides = [1, 1]} : vector<32x896xf32> to vector<1x896xf32>
    %60 = arith.mulf %59, %36 : vector<1x896xf32>
    %61 = vector.extract_strided_slice %2 {offsets = [25, 0], sizes = [1, 896], strides = [1, 1]} : vector<32x896xf32> to vector<1x896xf32>
    %62 = arith.mulf %61, %37 : vector<1x896xf32>
    %63 = arith.addf %60, %62 : vector<1x896xf32>
    %64 = vector.extract_strided_slice %2 {offsets = [26, 0], sizes = [1, 896], strides = [1, 1]} : vector<32x896xf32> to vector<1x896xf32>
    %65 = arith.mulf %64, %38 : vector<1x896xf32>
    %66 = arith.addf %63, %65 : vector<1x896xf32>
    %67 = vector.extract_strided_slice %2 {offsets = [27, 0], sizes = [1, 896], strides = [1, 1]} : vector<32x896xf32> to vector<1x896xf32>
    %68 = arith.addf %66, %67 : vector<1x896xf32>
    %69 = tpu.concatenate %15, %25, %35, %48, %58, %68 in 0 : vector<1x896xf32>, vector<1x896xf32>, vector<1x896xf32>, vector<1x896xf32>, vector<1x896xf32>, vector<1x896xf32> -> vector<6x896xf32>
    %c0_10 = arith.constant 0 : index
    %c0_11 = arith.constant 0 : index
    %70 = vector.load %arg4[%c0_10, %c0_11] : memref<6x896xf32, #tpu.memory_space<vmem>>, vector<6x896xf32>
    tpu.vector_store %arg4[%c0_10, %c0_11], %69 {strides = array<i32>} : memref<6x896xf32, #tpu.memory_space<vmem>>, vector<6x896xf32>,
    %c0_12 = arith.constant 0 : index
    %c0_13 = arith.constant 0 : index
    %71 = vector.load %arg3[%c0_12, %c0_13] : memref<896x128xf32, #tpu.memory_space<vmem>>, vector<896x128xf32>
    %cst_14 = arith.constant dense<0.000000e+00> : vector<6x128xf32>
    %72 = tpu.matmul %69, %71, %cst_14 {dimension_numbers = #tpu.dot_dimension_numbers<[1], [0], [0], [1], [0, 0, 1, 1], [], []>} : vector<6x896xf32>, vector<896x128xf32>, vector<6x128xf32> -> vector<6x128xf32>
    %c0_15 = arith.constant 0 : index
    %c0_16 = arith.constant 0 : index
    %73 = vector.load %arg5[%c0_15, %c0_16] : memref<6x128xf32, #tpu.memory_space<vmem>>, vector<6x128xf32>
    tpu.vector_store %arg5[%c0_15, %c0_16], %72 {strides = array<i32>} : memref<6x128xf32, #tpu.memory_space<vmem>>, vector<6x128xf32>,
    return
  }
}

</mosaic_0001>

<llo_original>
// kernel: _lambda_.2
$region0: #{_lambda_.2}
  #allocation0 [shape = 'u32[]', space=smem, size = 0x4, offset = 0x4, fixed_abs, tag = 'smem constant byte address 0x4 - core index']
  #allocation1 [shape = 'u32[72,128]{1,0:T(1,128)}', space=vmem, size = 0x9000, scoped, tag = 'internal scratch']
  %s0 = inlined_call_operand.hbm [shape: f32[2,32], index: 0, kind: input, shape index: {}]
  %s1 = inlined_call_operand.hbm [shape: bf16[32,1024], index: 1, kind: input, shape index: {}]
  %s2 = inlined_call_operand.hbm [shape: f32[1,1024], index: 2, kind: input, shape index: {}]
  %s3 = inlined_call_operand.hbm [shape: bf16[1024,128], index: 3, kind: input, shape index: {}]
  %s4 = inlined_call_operand.vmem [shape: f32[1,128], index: 4, kind: input, shape index: {}]
  %s5 = inlined_call_operand.hbm [shape: f32[154,2688], index: 5, kind: input, shape index: {}]
  %s6 = inlined_call_operand.hbm [shape: f32[1,2688], index: 6, kind: input, shape index: {}]
  %s7 = inlined_call_operand.hbm [shape: f32[10,128], index: 7, kind: input, shape index: {}]
  %s8 = inlined_call_operand.hbm [shape: f32[1,128], index: 8, kind: input, shape index: {}]
  %s9 = inlined_call_operand.vmem [shape: f32[2,128], index: 9, kind: output, shape index: {0}]
  %s10 = inlined_call_operand.vmem [shape: f32[2,144], index: 10, kind: output, shape index: {1}]
  %s11 = inlined_call_operand.vmem [shape: f32[2,2688], index: 11, kind: output, shape index: {2}]
  %s12 = inlined_call_operand.vmem [shape: f32[2,128], index: 12, kind: output, shape index: {3}]
  %13 = xla_tuple %s9, %s10, %s11, %s12
  %s14 = sld [smem:[#allocation0]]
  $region102: #{_lambda_.2} parent=0
    _
  %s16 = ssub.s32 1, %s14
  %s17 = scalar_select 0, %s16, %s14
  $region1: #{_lambda_.2} parent=0
    #allocation2 [shape = 'u8[1024]{0}', space=vmem, size = 0x400, scoped, tag = 'input window, operand 0, single buffered']
    #allocation3 [shape = 's32[1]{0}', space=sflag, size = 0x4, scoped, tag = 'scoped memory for _lambda_.2']
    #allocation4 [shape = 'u8[65536]{0}', space=vmem, size = 0x10000, scoped, tag = 'input window, operand 1, single buffered']
    #allocation5 [shape = 's32[1]{0}', space=sflag, size = 0x4, scoped, tag = 'scoped memory for _lambda_.2']
    #allocation6 [shape = 'u8[4096]{0}', space=vmem, size = 0x1000, scoped, tag = 'input window, operand 2, single buffered']
    #allocation7 [shape = 'u8[262144]{0}', space=vmem, size = 0x40000, scoped, tag = 'input window, operand 3, single buffered']
    #allocation8 [shape = 's32[1]{0}', space=sflag, size = 0x4, scoped, tag = 'scoped memory for _lambda_.2']
    #allocation9 [shape = 'u8[1720320]{0}', space=vmem, size = 0x1a4000, scoped, tag = 'input window, operand 5, single buffered']
    #allocation10 [shape = 'u8[10752]{0}', space=vmem, size = 0x2c00, scoped, tag = 'input window, operand 6, single buffered']
    #allocation11 [shape = 's32[1]{0}', space=sflag, size = 0x4, scoped, tag = 'scoped memory for _lambda_.2']
    #allocation12 [shape = 'u8[8192]{0}', space=vmem, size = 0x2000, scoped, tag = 'input window, operand 7, single buffered']
    #allocation13 [shape = 'u8[512]{0}', space=vmem, size = 0x400, scoped, tag = 'input window, operand 8, single buffered']
    #allocation14 [shape = 's32[1]{0}', space=sflag, size = 0x4, scoped, tag = 'scoped memory for _lambda_.2']
    %18 = vsyncpa [#allocation3], 0
    %19 = vsyncpa [#allocation5], 0
    %20 = vsyncpa [#allocation8], 0
    %21 = vsyncpa [#allocation11], 0
    %22 = vsyncpa [#allocation14], 0
    // Predicated region
    $region2: #{_lambda_.2} parent=1 // pred_check
      _
    $region3: #{_lambda_.2} parent=1 // pred_check_branch
      %24 = sbr.rel (0) target = $region5
    $region4: #{_lambda_.2} parent=1 // pred_region
      %26 = vsyncadd [#allocation3], 0
      %s28 = sshll.u32 %s0, 4
      %s29 = int_to_ptr.hbm [resolvable:$true] %s28
      %s30 = sshll.u32 [#allocation2], 4
      %s31 = int_to_ptr.vmem [resolvable:$true] %s30
      %33 = dma.hbm_to_vmem [thread:$0]  %s29, 32, %s31, [#allocation3]
    $region5: #{_lambda_.2} parent=1 // pred_fallthru
      _
    // Predicated region
    $region6: #{_lambda_.2} parent=1 // pred_check
      _
    $region7: #{_lambda_.2} parent=1 // pred_check_branch
      %35 = sbr.rel (0) target = $region9
    $region8: #{_lambda_.2} parent=1 // pred_region
      %37 = vsyncadd [#allocation5], 0
      %s38 = sshll.u32 %s1, 4
      %s39 = int_to_ptr.hbm [resolvable:$true] %s38
      %s40 = sshll.u32 [#allocation4], 4
      %s41 = int_to_ptr.vmem [resolvable:$true] %s40
      %46 = dma.hbm_to_vmem [thread:$0]  %s39, 2048, %s41, [#allocation5], 512, 512, 32
    $region9: #{_lambda_.2} parent=1 // pred_fallthru
      _
    // Predicated region
    $region10: #{_lambda_.2} parent=1 // pred_check
      _
    $region11: #{_lambda_.2} parent=1 // pred_check_branch
      %48 = sbr.rel (0) target = $region13
    $region12: #{_lambda_.2} parent=1 // pred_region
      %50 = vsyncadd [#allocation5], 0
      %s52 = sshll.u32 %s2, 4
      %s53 = int_to_ptr.hbm [resolvable:$true] %s52
      %s54 = sshll.u32 [#allocation6], 4
      %s55 = int_to_ptr.vmem [resolvable:$true] %s54
      %57 = dma.hbm_to_vmem [thread:$0]  %s53, 128, %s55, [#allocation5]
    $region13: #{_lambda_.2} parent=1 // pred_fallthru
      _
    // Predicated region
    $region14: #{_lambda_.2} parent=1 // pred_check
      _
    $region15: #{_lambda_.2} parent=1 // pred_check_branch
      %59 = sbr.rel (0) target = $region17
    $region16: #{_lambda_.2} parent=1 // pred_region
      %61 = vsyncadd [#allocation8], 0
      %s62 = sshll.u32 %s3, 4
      %s63 = int_to_ptr.hbm [resolvable:$true] %s62
      %s64 = sshll.u32 [#allocation7], 4
      %s65 = int_to_ptr.vmem [resolvable:$true] %s64
      %70 = dma.hbm_to_vmem [thread:$0]  %s63, 8192, %s65, [#allocation8], 64, 64, 4
    $region17: #{_lambda_.2} parent=1 // pred_fallthru
      _
    // Predicated region
    $region18: #{_lambda_.2} parent=1 // pred_check
      _
    $region19: #{_lambda_.2} parent=1 // pred_check_branch
      %72 = sbr.rel (0) target = $region21
    $region20: #{_lambda_.2} parent=1 // pred_region
      _
    $region21: #{_lambda_.2} parent=1 // pred_fallthru
      _
    // Predicated region
    $region22: #{_lambda_.2} parent=1 // pred_check
      _
    $region23: #{_lambda_.2} parent=1 // pred_check_branch
      %74 = sbr.rel (0) target = $region25
    $region24: #{_lambda_.2} parent=1 // pred_region
      %76 = vsyncadd [#allocation8], 0
      %s77 = sshll.u32 %s5, 4
      %s78 = int_to_ptr.hbm [resolvable:$true] %s77
      %s79 = sshll.u32 [#allocation9], 4
      %s80 = int_to_ptr.vmem [resolvable:$true] %s79
      %85 = dma.hbm_to_vmem [thread:$0]  %s78, 53760, %s80, [#allocation8], 2688, 2688, 168
    $region25: #{_lambda_.2} parent=1 // pred_fallthru
      _
    // Predicated region
    $region26: #{_lambda_.2} parent=1 // pred_check
      _
    $region27: #{_lambda_.2} parent=1 // pred_check_branch
      %87 = sbr.rel (0) target = $region29
    $region28: #{_lambda_.2} parent=1 // pred_region
      %89 = vsyncadd [#allocation11], 0
      %s91 = sshll.u32 %s6, 4
      %s92 = int_to_ptr.hbm [resolvable:$true] %s91
      %s93 = sshll.u32 [#allocation10], 4
      %s94 = int_to_ptr.vmem [resolvable:$true] %s93
      %96 = dma.hbm_to_vmem [thread:$0]  %s92, 336, %s94, [#allocation11]
    $region29: #{_lambda_.2} parent=1 // pred_fallthru
      _
    // Predicated region
    $region30: #{_lambda_.2} parent=1 // pred_check
      _
    $region31: #{_lambda_.2} parent=1 // pred_check_branch
      %98 = sbr.rel (0) target = $region33
    $region32: #{_lambda_.2} parent=1 // pred_region
      %100 = vsyncadd [#allocation11], 0
      %s101 = sshll.u32 %s7, 4
      %s102 = int_to_ptr.hbm [resolvable:$true] %s101
      %s103 = sshll.u32 [#allocation12], 4
      %s104 = int_to_ptr.vmem [resolvable:$true] %s103
      %109 = dma.hbm_to_vmem [thread:$0]  %s102, 256, %s104, [#allocation11], 128, 128, 8
    $region33: #{_lambda_.2} parent=1 // pred_fallthru
      _
    // Predicated region
    $region34: #{_lambda_.2} parent=1 // pred_check
      _
    $region35: #{_lambda_.2} parent=1 // pred_check_branch
      %111 = sbr.rel (0) target = $region37
    $region36: #{_lambda_.2} parent=1 // pred_region
      %113 = vsyncadd [#allocation14], 0
      %s115 = sshll.u32 %s8, 4
      %s116 = int_to_ptr.hbm [resolvable:$true] %s115
      %s117 = sshll.u32 [#allocation13], 4
      %s118 = int_to_ptr.vmem [resolvable:$true] %s117
      %120 = dma.hbm_to_vmem [thread:$0]  %s116, 16, %s118, [#allocation14]
    $region37: #{_lambda_.2} parent=1 // pred_fallthru
      _
    // Predicated region
    $region38: #{_lambda_.2} parent=1 // pred_check
      _
    $region39: #{_lambda_.2} parent=1 // pred_check_branch
      %122 = sbr.rel (0) target = $region41
    $region40: #{_lambda_.2} parent=1 // pred_region
      %124 = dma.done [#allocation3], 32
    $region41: #{_lambda_.2} parent=1 // pred_fallthru
      _
    // Predicated region
    $region42: #{_lambda_.2} parent=1 // pred_check
      _
    $region43: #{_lambda_.2} parent=1 // pred_check_branch
      %126 = sbr.rel (0) target = $region45
    $region44: #{_lambda_.2} parent=1 // pred_region
      %128 = dma.done [#allocation5], 2048
    $region45: #{_lambda_.2} parent=1 // pred_fallthru
      _
    // Predicated region
    $region46: #{_lambda_.2} parent=1 // pred_check
      _
    $region47: #{_lambda_.2} parent=1 // pred_check_branch
      %130 = sbr.rel (0) target = $region49
    $region48: #{_lambda_.2} parent=1 // pred_region
      %132 = dma.done [#allocation5], 128
    $region49: #{_lambda_.2} parent=1 // pred_fallthru
      _
    // Predicated region
    $region50: #{_lambda_.2} parent=1 // pred_check
      _
    $region51: #{_lambda_.2} parent=1 // pred_check_branch
      %134 = sbr.rel (0) target = $region53
    $region52: #{_lambda_.2} parent=1 // pred_region
      %136 = dma.done [#allocation8], 8192
    $region53: #{_lambda_.2} parent=1 // pred_fallthru
      _
    // Predicated region
    $region54: #{_lambda_.2} parent=1 // pred_check
      _
    $region55: #{_lambda_.2} parent=1 // pred_check_branch
      %138 = sbr.rel (0) target = $region57
    $region56: #{_lambda_.2} parent=1 // pred_region
      %140 = dma.done [#allocation8], 53760
    $region57: #{_lambda_.2} parent=1 // pred_fallthru
      _
    // Predicated region
    $region58: #{_lambda_.2} parent=1 // pred_check
      _
    $region59: #{_lambda_.2} parent=1 // pred_check_branch
      %142 = sbr.rel (0) target = $region61
    $region60: #{_lambda_.2} parent=1 // pred_region
      %144 = dma.done [#allocation11], 336
    $region61: #{_lambda_.2} parent=1 // pred_fallthru
      _
    // Predicated region
    $region62: #{_lambda_.2} parent=1 // pred_check
      _
    $region63: #{_lambda_.2} parent=1 // pred_check_branch
      %146 = sbr.rel (0) target = $region65
    $region64: #{_lambda_.2} parent=1 // pred_region
      %148 = dma.done [#allocation11], 256
    $region65: #{_lambda_.2} parent=1 // pred_fallthru
      _
    // Predicated region
    $region66: #{_lambda_.2} parent=1 // pred_check
      _
    $region67: #{_lambda_.2} parent=1 // pred_check_branch
      %150 = sbr.rel (0) target = $region69
    $region68: #{_lambda_.2} parent=1 // pred_region
      %152 = dma.done [#allocation14], 16
    $region69: #{_lambda_.2} parent=1 // pred_fallthru
      _
    %v154 = vld [vmem:[#allocation2] sm:$0x3]
    %v155 = vpack.c.bf16 %v154, %v154
    %v156 = vld [vmem:[#allocation4] sm:$0xff]
    %v157 = vld [vmem:[#allocation4 + $0x8] sm:$0xff]
    %v158 = vld [vmem:[#allocation4 + $0x10] sm:$0xff]
    %v159 = vld [vmem:[#allocation4 + $0x18] sm:$0xff]
    %v160 = vld [vmem:[#allocation4 + $0x20] sm:$0xff]
    %v161 = vld [vmem:[#allocation4 + $0x28] sm:$0xff]
    %v162 = vld [vmem:[#allocation4 + $0x30] sm:$0xff]
    %v163 = vld [vmem:[#allocation4 + $0x38] sm:$0xff]
    %v164 = vld [vmem:[#allocation4 + $0x40] sm:$0xff]
    %v165 = vld [vmem:[#allocation4 + $0x48] sm:$0xff]
    %v166 = vld [vmem:[#allocation4 + $0x50] sm:$0xff]
    %v167 = vld [vmem:[#allocation4 + $0x58] sm:$0xff]
    %v168 = vld [vmem:[#allocation4 + $0x60] sm:$0xff]
    %v169 = vld [vmem:[#allocation4 + $0x68] sm:$0xff]
    %v170 = vld [vmem:[#allocation4 + $0x70] sm:$0xff]
    %v171 = vld [vmem:[#allocation4 + $0x78] sm:$0xff]
    %v172 = vld [vmem:[#allocation6] sm:$0xff]
    %v174 = vperm.slane %v172, 0
    %v175 = vperm.slane %v172, 1
    %v176 = vperm.slane %v172, 2
    %v177 = vperm.slane %v172, 3
    %v178 = vperm.slane %v172, 4
    %v179 = vperm.slane %v172, 5
    %v180 = vperm.slane %v172, 6
    %v181 = vperm.slane %v172, 7
    %v206 = vunpack.c.l.b16 %v156
    %v207 = vunpack.c.h.b16 %v156
    %v208 = vunpack.c.l.b16 %v157
    %v209 = vunpack.c.h.b16 %v157
    %v210 = vunpack.c.l.b16 %v158
    %v211 = vunpack.c.h.b16 %v158
    %v212 = vunpack.c.l.b16 %v159
    %v213 = vunpack.c.h.b16 %v159
    %v214 = vunpack.c.l.b16 %v160
    %v215 = vunpack.c.h.b16 %v160
    %v216 = vunpack.c.l.b16 %v161
    %v217 = vunpack.c.h.b16 %v161
    %v218 = vunpack.c.l.b16 %v162
    %v219 = vunpack.c.h.b16 %v162
    %v220 = vunpack.c.l.b16 %v163
    %v221 = vunpack.c.h.b16 %v163
    %v222 = vunpack.c.l.b16 %v164
    %v223 = vunpack.c.h.b16 %v164
    %v224 = vunpack.c.l.b16 %v165
    %v225 = vunpack.c.h.b16 %v165
    %v226 = vunpack.c.l.b16 %v166
    %v227 = vunpack.c.h.b16 %v166
    %v228 = vunpack.c.l.b16 %v167
    %v229 = vunpack.c.h.b16 %v167
    %v230 = vunpack.c.l.b16 %v168
    %v231 = vunpack.c.h.b16 %v168
    %v232 = vunpack.c.l.b16 %v169
    %v233 = vunpack.c.h.b16 %v169
    %v234 = vunpack.c.l.b16 %v170
    %v235 = vunpack.c.h.b16 %v170
    %v236 = vunpack.c.l.b16 %v171
    %v237 = vunpack.c.h.b16 %v171
    %v238 = vpack.c.b16 %v214, %v206
    %v239 = vpack.c.b16 %v215, %v207
    %v240 = vpack.c.b16 %v216, %v208
    %v241 = vpack.c.b16 %v217, %v209
    %v242 = vpack.c.b16 %v218, %v210
    %v243 = vpack.c.b16 %v219, %v211
    %v244 = vpack.c.b16 %v220, %v212
    %v245 = vpack.c.b16 %v221, %v213
    %v246 = vpack.c.b16 %v230, %v222
    %v247 = vpack.c.b16 %v231, %v223
    %v248 = vpack.c.b16 %v232, %v224
    %v249 = vpack.c.b16 %v233, %v225
    %v250 = vpack.c.b16 %v234, %v226
    %v251 = vpack.c.b16 %v235, %v227
    %v252 = vpack.c.b16 %v236, %v228
    %v253 = vpack.c.b16 %v237, %v229
    %vm270 = vcmask 261120
    %v272 = vsel %vm270, %v155, 0
    %274 = vmatpush.bf16.msra.mxu0 0
    %275 = vmatpush.bf16.msra.mxu0 0
    %276 = vmatpush.bf16.msra.mxu0 0
    %277 = vmatpush.bf16.msra.mxu0 0
    %278 = vmatpush.bf16.msra.mxu0 0
    %279 = vmatpush.bf16.msra.mxu0 0
    %280 = vmatpush.bf16.msra.mxu0 %v246
    %281 = vmatpush.bf16.msra.mxu0 %v238
    %282 = vmatmul.bf16.gmra.mxu0 %v272
    %v283 = vpop.f32.mrf.mxu0
    %v284 = vadd.f32 %v174, %v283
    %v285 = vpop.f32.mrf.mxu0
    %286 = vdwg.mxu0
    %287 = vmatpush.bf16.msra.mxu0 0
    %288 = vmatpush.bf16.msra.mxu0 0
    %289 = vmatpush.bf16.msra.mxu0 0
    %290 = vmatpush.bf16.msra.mxu0 0
    %291 = vmatpush.bf16.msra.mxu0 0
    %292 = vmatpush.bf16.msra.mxu0 0
    %293 = vmatpush.bf16.msra.mxu0 %v247
    %294 = vmatpush.bf16.msra.mxu0 %v239
    %295 = vmatmul.bf16.gmra.mxu0 %v272
    %v296 = vpop.f32.mrf.mxu0
    %v297 = vadd.f32 %v175, %v296
    %v298 = vpop.f32.mrf.mxu0
    %299 = vdwg.mxu0
    %300 = vmatpush.bf16.msra.mxu0 0
    %301 = vmatpush.bf16.msra.mxu0 0
    %302 = vmatpush.bf16.msra.mxu0 0
    %303 = vmatpush.bf16.msra.mxu0 0
    %304 = vmatpush.bf16.msra.mxu0 0
    %305 = vmatpush.bf16.msra.mxu0 0
    %306 = vmatpush.bf16.msra.mxu0 %v248
    %307 = vmatpush.bf16.msra.mxu0 %v240
    %308 = vmatmul.bf16.gmra.mxu0 %v272
    %v309 = vpop.f32.mrf.mxu0
    %v310 = vadd.f32 %v176, %v309
    %v311 = vpop.f32.mrf.mxu0
    %312 = vdwg.mxu0
    %313 = vmatpush.bf16.msra.mxu0 0
    %314 = vmatpush.bf16.msra.mxu0 0
    %315 = vmatpush.bf16.msra.mxu0 0
    %316 = vmatpush.bf16.msra.mxu0 0
    %317 = vmatpush.bf16.msra.mxu0 0
    %318 = vmatpush.bf16.msra.mxu0 0
    %319 = vmatpush.bf16.msra.mxu0 %v249
    %320 = vmatpush.bf16.msra.mxu0 %v241
    %321 = vmatmul.bf16.gmra.mxu0 %v272
    %v322 = vpop.f32.mrf.mxu0
    %v323 = vadd.f32 %v177, %v322
    %v324 = vpop.f32.mrf.mxu0
    %325 = vdwg.mxu0
    %326 = vmatpush.bf16.msra.mxu0 0
    %327 = vmatpush.bf16.msra.mxu0 0
    %328 = vmatpush.bf16.msra.mxu0 0
    %329 = vmatpush.bf16.msra.mxu0 0
    %330 = vmatpush.bf16.msra.mxu0 0
    %331 = vmatpush.bf16.msra.mxu0 0
    %332 = vmatpush.bf16.msra.mxu0 %v250
    %333 = vmatpush.bf16.msra.mxu0 %v242
    %334 = vmatmul.bf16.gmra.mxu0 %v272
    %v335 = vpop.f32.mrf.mxu0
    %v336 = vadd.f32 %v178, %v335
    %v337 = vpop.f32.mrf.mxu0
    %338 = vdwg.mxu0
    %339 = vmatpush.bf16.msra.mxu0 0
    %340 = vmatpush.bf16.msra.mxu0 0
    %341 = vmatpush.bf16.msra.mxu0 0
    %342 = vmatpush.bf16.msra.mxu0 0
    %343 = vmatpush.bf16.msra.mxu0 0
    %344 = vmatpush.bf16.msra.mxu0 0
    %345 = vmatpush.bf16.msra.mxu0 %v251
    %346 = vmatpush.bf16.msra.mxu0 %v243
    %347 = vmatmul.bf16.gmra.mxu0 %v272
    %v348 = vpop.f32.mrf.mxu0
    %v349 = vadd.f32 %v179, %v348
    %v350 = vpop.f32.mrf.mxu0
    %351 = vdwg.mxu0
    %352 = vmatpush.bf16.msra.mxu0 0
    %353 = vmatpush.bf16.msra.mxu0 0
    %354 = vmatpush.bf16.msra.mxu0 0
    %355 = vmatpush.bf16.msra.mxu0 0
    %356 = vmatpush.bf16.msra.mxu0 0
    %357 = vmatpush.bf16.msra.mxu0 0
    %358 = vmatpush.bf16.msra.mxu0 %v252
    %359 = vmatpush.bf16.msra.mxu0 %v244
    %360 = vmatmul.bf16.gmra.mxu0 %v272
    %v361 = vpop.f32.mrf.mxu0
    %v362 = vadd.f32 %v180, %v361
    %v363 = vpop.f32.mrf.mxu0
    %364 = vdwg.mxu0
    %365 = vmatpush.bf16.msra.mxu0 0
    %366 = vmatpush.bf16.msra.mxu0 0
    %367 = vmatpush.bf16.msra.mxu0 0
    %368 = vmatpush.bf16.msra.mxu0 0
    %369 = vmatpush.bf16.msra.mxu0 0
    %370 = vmatpush.bf16.msra.mxu0 0
    %371 = vmatpush.bf16.msra.mxu0 %v253
    %372 = vmatpush.bf16.msra.mxu0 %v245
    %373 = vmatmul.bf16.gmra.mxu0 %v272
    %v374 = vpop.f32.mrf.mxu0
    %v375 = vadd.f32 %v181, %v374
    %v376 = vpop.f32.mrf.mxu0
    %377 = vdwg.mxu0
    %v378 = vmax.f32 %v284, 0.0
    %v379 = vmax.f32 %v297, 0.0
    %v380 = vmax.f32 %v310, 0.0
    %v381 = vmax.f32 %v323, 0.0
    %v382 = vmax.f32 %v336, 0.0
    %v383 = vmax.f32 %v349, 0.0
    %v384 = vmax.f32 %v362, 0.0
    %v385 = vmax.f32 %v375, 0.0
    %v386 = vpack.c.bf16 %v378, %v378
    %v387 = vpack.c.bf16 %v379, %v379
    %v388 = vpack.c.bf16 %v380, %v380
    %v389 = vpack.c.bf16 %v381, %v381
    %v390 = vpack.c.bf16 %v382, %v382
    %v391 = vpack.c.bf16 %v383, %v383
    %v392 = vpack.c.bf16 %v384, %v384
    %v393 = vpack.c.bf16 %v385, %v385
    %v394 = vld [vmem:[#allocation7] sm:$0xf]
    %v395 = vld [vmem:[#allocation7 + $0x4] sm:$0xf]
    %v396 = vld [vmem:[#allocation7 + $0x8] sm:$0xf]
    %v397 = vld [vmem:[#allocation7 + $0xc] sm:$0xf]
    %v398 = vld [vmem:[#allocation7 + $0x10] sm:$0xf]
    %v399 = vld [vmem:[#allocation7 + $0x14] sm:$0xf]
    %v400 = vld [vmem:[#allocation7 + $0x18] sm:$0xf]
    %v401 = vld [vmem:[#allocation7 + $0x1c] sm:$0xf]
    %v402 = vld [vmem:[#allocation7 + $0x20] sm:$0xf]
    %v403 = vld [vmem:[#allocation7 + $0x24] sm:$0xf]
    %v404 = vld [vmem:[#allocation7 + $0x28] sm:$0xf]
    %v405 = vld [vmem:[#allocation7 + $0x2c] sm:$0xf]
    %v406 = vld [vmem:[#allocation7 + $0x30] sm:$0xf]
    %v407 = vld [vmem:[#allocation7 + $0x34] sm:$0xf]
    %v408 = vld [vmem:[#allocation7 + $0x38] sm:$0xf]
    %v409 = vld [vmem:[#allocation7 + $0x3c] sm:$0xf]
    %v410 = vld [vmem:[#allocation7 + $0x40] sm:$0xf]
    %v411 = vld [vmem:[#allocation7 + $0x44] sm:$0xf]
    %v412 = vld [vmem:[#allocation7 + $0x48] sm:$0xf]
    %v413 = vld [vmem:[#allocation7 + $0x4c] sm:$0xf]
    %v414 = vld [vmem:[#allocation7 + $0x50] sm:$0xf]
    %v415 = vld [vmem:[#allocation7 + $0x54] sm:$0xf]
    %v416 = vld [vmem:[#allocation7 + $0x58] sm:$0xf]
    %v417 = vld [vmem:[#allocation7 + $0x5c] sm:$0xf]
    %v418 = vld [vmem:[#allocation7 + $0x60] sm:$0xf]
    %v419 = vld [vmem:[#allocation7 + $0x64] sm:$0xf]
    %v420 = vld [vmem:[#allocation7 + $0x68] sm:$0xf]
    %v421 = vld [vmem:[#allocation7 + $0x6c] sm:$0xf]
    %v422 = vld [vmem:[#allocation7 + $0x70] sm:$0xf]
    %v423 = vld [vmem:[#allocation7 + $0x74] sm:$0xf]
    %v424 = vld [vmem:[#allocation7 + $0x78] sm:$0xf]
    %v425 = vld [vmem:[#allocation7 + $0x7c] sm:$0xf]
    %v426 = vld [vmem:[#allocation7 + $0x80] sm:$0xf]
    %v427 = vld [vmem:[#allocation7 + $0x84] sm:$0xf]
    %v428 = vld [vmem:[#allocation7 + $0x88] sm:$0xf]
    %v429 = vld [vmem:[#allocation7 + $0x8c] sm:$0xf]
    %v430 = vld [vmem:[#allocation7 + $0x90] sm:$0xf]
    %v431 = vld [vmem:[#allocation7 + $0x94] sm:$0xf]
    %v432 = vld [vmem:[#allocation7 + $0x98] sm:$0xf]
    %v433 = vld [vmem:[#allocation7 + $0x9c] sm:$0xf]
    %v434 = vld [vmem:[#allocation7 + $0xa0] sm:$0xf]
    %v435 = vld [vmem:[#allocation7 + $0xa4] sm:$0xf]
    %v436 = vld [vmem:[#allocation7 + $0xa8] sm:$0xf]
    %v437 = vld [vmem:[#allocation7 + $0xac] sm:$0xf]
    %v438 = vld [vmem:[#allocation7 + $0xb0] sm:$0xf]
    %v439 = vld [vmem:[#allocation7 + $0xb4] sm:$0xf]
    %v440 = vld [vmem:[#allocation7 + $0xb8] sm:$0xf]
    %v441 = vld [vmem:[#allocation7 + $0xbc] sm:$0xf]
    %v442 = vld [vmem:[#allocation7 + $0xc0] sm:$0xf]
    %v443 = vld [vmem:[#allocation7 + $0xc4] sm:$0xf]
    %v444 = vld [vmem:[#allocation7 + $0xc8] sm:$0xf]
    %v445 = vld [vmem:[#allocation7 + $0xcc] sm:$0xf]
    %v446 = vld [vmem:[#allocation7 + $0xd0] sm:$0xf]
    %v447 = vld [vmem:[#allocation7 + $0xd4] sm:$0xf]
    %v448 = vld [vmem:[#allocation7 + $0xd8] sm:$0xf]
    %v449 = vld [vmem:[#allocation7 + $0xdc] sm:$0xf]
    %v450 = vld [vmem:[#allocation7 + $0xe0] sm:$0xf]
    %v451 = vld [vmem:[#allocation7 + $0xe4] sm:$0xf]
    %v452 = vld [vmem:[#allocation7 + $0xe8] sm:$0xf]
    %v453 = vld [vmem:[#allocation7 + $0xec] sm:$0xf]
    %v454 = vld [vmem:[#allocation7 + $0xf0] sm:$0xf]
    %v455 = vld [vmem:[#allocation7 + $0xf4] sm:$0xf]
    %v456 = vld [vmem:[#allocation7 + $0xf8] sm:$0xf]
    %v457 = vld [vmem:[#allocation7 + $0xfc] sm:$0xf]
    %v458 = vld [vmem:[#allocation7 + $0x100] sm:$0xf]
    %v459 = vld [vmem:[#allocation7 + $0x104] sm:$0xf]
    %v460 = vld [vmem:[#allocation7 + $0x108] sm:$0xf]
    %v461 = vld [vmem:[#allocation7 + $0x10c] sm:$0xf]
    %v462 = vld [vmem:[#allocation7 + $0x110] sm:$0xf]
    %v463 = vld [vmem:[#allocation7 + $0x114] sm:$0xf]
    %v464 = vld [vmem:[#allocation7 + $0x118] sm:$0xf]
    %v465 = vld [vmem:[#allocation7 + $0x11c] sm:$0xf]
    %v466 = vld [vmem:[#allocation7 + $0x120] sm:$0xf]
    %v467 = vld [vmem:[#allocation7 + $0x124] sm:$0xf]
    %v468 = vld [vmem:[#allocation7 + $0x128] sm:$0xf]
    %v469 = vld [vmem:[#allocation7 + $0x12c] sm:$0xf]
    %v470 = vld [vmem:[#allocation7 + $0x130] sm:$0xf]
    %v471 = vld [vmem:[#allocation7 + $0x134] sm:$0xf]
    %v472 = vld [vmem:[#allocation7 + $0x138] sm:$0xf]
    %v473 = vld [vmem:[#allocation7 + $0x13c] sm:$0xf]
    %v474 = vld [vmem:[#allocation7 + $0x140] sm:$0xf]
    %v475 = vld [vmem:[#allocation7 + $0x144] sm:$0xf]
    %v476 = vld [vmem:[#allocation7 + $0x148] sm:$0xf]
    %v477 = vld [vmem:[#allocation7 + $0x14c] sm:$0xf]
    %v478 = vld [vmem:[#allocation7 + $0x150] sm:$0xf]
    %v479 = vld [vmem:[#allocation7 + $0x154] sm:$0xf]
    %v480 = vld [vmem:[#allocation7 + $0x158] sm:$0xf]
    %v481 = vld [vmem:[#allocation7 + $0x15c] sm:$0xf]
    %v482 = vld [vmem:[#allocation7 + $0x160] sm:$0xf]
    %v483 = vld [vmem:[#allocation7 + $0x164] sm:$0xf]
    %v484 = vld [vmem:[#allocation7 + $0x168] sm:$0xf]
    %v485 = vld [vmem:[#allocation7 + $0x16c] sm:$0xf]
    %v486 = vld [vmem:[#allocation7 + $0x170] sm:$0xf]
    %v487 = vld [vmem:[#allocation7 + $0x174] sm:$0xf]
    %v488 = vld [vmem:[#allocation7 + $0x178] sm:$0xf]
    %v489 = vld [vmem:[#allocation7 + $0x17c] sm:$0xf]
    %v490 = vld [vmem:[#allocation7 + $0x180] sm:$0xf]
    %v491 = vld [vmem:[#allocation7 + $0x184] sm:$0xf]
    %v492 = vld [vmem:[#allocation7 + $0x188] sm:$0xf]
    %v493 = vld [vmem:[#allocation7 + $0x18c] sm:$0xf]
    %v494 = vld [vmem:[#allocation7 + $0x190] sm:$0xf]
    %v495 = vld [vmem:[#allocation7 + $0x194] sm:$0xf]
    %v496 = vld [vmem:[#allocation7 + $0x198] sm:$0xf]
    %v497 = vld [vmem:[#allocation7 + $0x19c] sm:$0xf]
    %v498 = vld [vmem:[#allocation7 + $0x1a0] sm:$0xf]
    %v499 = vld [vmem:[#allocation7 + $0x1a4] sm:$0xf]
    %v500 = vld [vmem:[#allocation7 + $0x1a8] sm:$0xf]
    %v501 = vld [vmem:[#allocation7 + $0x1ac] sm:$0xf]
    %v502 = vld [vmem:[#allocation7 + $0x1b0] sm:$0xf]
    %v503 = vld [vmem:[#allocation7 + $0x1b4] sm:$0xf]
    %v504 = vld [vmem:[#allocation7 + $0x1b8] sm:$0xf]
    %v505 = vld [vmem:[#allocation7 + $0x1bc] sm:$0xf]
    %v506 = vld [vmem:[#allocation7 + $0x1c0] sm:$0xf]
    %v507 = vld [vmem:[#allocation7 + $0x1c4] sm:$0xf]
    %v508 = vld [vmem:[#allocation7 + $0x1c8] sm:$0xf]
    %v509 = vld [vmem:[#allocation7 + $0x1cc] sm:$0xf]
    %v510 = vld [vmem:[#allocation7 + $0x1d0] sm:$0xf]
    %v511 = vld [vmem:[#allocation7 + $0x1d4] sm:$0xf]
    %v512 = vld [vmem:[#allocation7 + $0x1d8] sm:$0xf]
    %v513 = vld [vmem:[#allocation7 + $0x1dc] sm:$0xf]
    %v514 = vld [vmem:[#allocation7 + $0x1e0] sm:$0xf]
    %v515 = vld [vmem:[#allocation7 + $0x1e4] sm:$0xf]
    %v516 = vld [vmem:[#allocation7 + $0x1e8] sm:$0xf]
    %v517 = vld [vmem:[#allocation7 + $0x1ec] sm:$0xf]
    %v518 = vld [vmem:[#allocation7 + $0x1f0] sm:$0xf]
    %v519 = vld [vmem:[#allocation7 + $0x1f4] sm:$0xf]
    %v520 = vld [vmem:[#allocation7 + $0x1f8] sm:$0xf]
    %v521 = vld [vmem:[#allocation7 + $0x1fc] sm:$0xf]
    %v522 = vld [vmem:[%s4] sm:$0x1]
    %v524 = vperm.slane %v522, 0
    %v654 = vunpack.c.l.b16 %v394
    %v655 = vunpack.c.l.b16 %v395
    %v656 = vunpack.c.l.b16 %v396
    %v657 = vunpack.c.l.b16 %v397
    %v658 = vunpack.c.l.b16 %v398
    %v659 = vunpack.c.l.b16 %v399
    %v660 = vunpack.c.l.b16 %v400
    %v661 = vunpack.c.l.b16 %v401
    %v662 = vunpack.c.l.b16 %v402
    %v663 = vunpack.c.l.b16 %v403
    %v664 = vunpack.c.l.b16 %v404
    %v665 = vunpack.c.l.b16 %v405
    %v666 = vunpack.c.l.b16 %v406
    %v667 = vunpack.c.l.b16 %v407
    %v668 = vunpack.c.l.b16 %v408
    %v669 = vunpack.c.l.b16 %v409
    %v670 = vunpack.c.l.b16 %v410
    %v671 = vunpack.c.l.b16 %v411
    %v672 = vunpack.c.l.b16 %v412
    %v673 = vunpack.c.l.b16 %v413
    %v674 = vunpack.c.l.b16 %v414
    %v675 = vunpack.c.l.b16 %v415
    %v676 = vunpack.c.l.b16 %v416
    %v677 = vunpack.c.l.b16 %v417
    %v678 = vunpack.c.l.b16 %v418
    %v679 = vunpack.c.l.b16 %v419
    %v680 = vunpack.c.l.b16 %v420
    %v681 = vunpack.c.l.b16 %v421
    %v682 = vunpack.c.l.b16 %v422
    %v683 = vunpack.c.l.b16 %v423
    %v684 = vunpack.c.l.b16 %v424
    %v685 = vunpack.c.l.b16 %v425
    %v686 = vunpack.c.l.b16 %v426
    %v687 = vunpack.c.l.b16 %v427
    %v688 = vunpack.c.l.b16 %v428
    %v689 = vunpack.c.l.b16 %v429
    %v690 = vunpack.c.l.b16 %v430
    %v691 = vunpack.c.l.b16 %v431
    %v692 = vunpack.c.l.b16 %v432
    %v693 = vunpack.c.l.b16 %v433
    %v694 = vunpack.c.l.b16 %v434
    %v695 = vunpack.c.l.b16 %v435
    %v696 = vunpack.c.l.b16 %v436
    %v697 = vunpack.c.l.b16 %v437
    %v698 = vunpack.c.l.b16 %v438
    %v699 = vunpack.c.l.b16 %v439
    %v700 = vunpack.c.l.b16 %v440
    %v701 = vunpack.c.l.b16 %v441
    %v702 = vunpack.c.l.b16 %v442
    %v703 = vunpack.c.l.b16 %v443
    %v704 = vunpack.c.l.b16 %v444
    %v705 = vunpack.c.l.b16 %v445
    %v706 = vunpack.c.l.b16 %v446
    %v707 = vunpack.c.l.b16 %v447
    %v708 = vunpack.c.l.b16 %v448
    %v709 = vunpack.c.l.b16 %v449
    %v710 = vunpack.c.l.b16 %v450
    %v711 = vunpack.c.l.b16 %v451
    %v712 = vunpack.c.l.b16 %v452
    %v713 = vunpack.c.l.b16 %v453
    %v714 = vunpack.c.l.b16 %v454
    %v715 = vunpack.c.l.b16 %v455
    %v716 = vunpack.c.l.b16 %v456
    %v717 = vunpack.c.l.b16 %v457
    %v718 = vunpack.c.l.b16 %v458
    %v719 = vunpack.c.l.b16 %v459
    %v720 = vunpack.c.l.b16 %v460
    %v721 = vunpack.c.l.b16 %v461
    %v722 = vunpack.c.l.b16 %v462
    %v723 = vunpack.c.l.b16 %v463
    %v724 = vunpack.c.l.b16 %v464
    %v725 = vunpack.c.l.b16 %v465
    %v726 = vunpack.c.l.b16 %v466
    %v727 = vunpack.c.l.b16 %v467
    %v728 = vunpack.c.l.b16 %v468
    %v729 = vunpack.c.l.b16 %v469
    %v730 = vunpack.c.l.b16 %v470
    %v731 = vunpack.c.l.b16 %v471
    %v732 = vunpack.c.l.b16 %v472
    %v733 = vunpack.c.l.b16 %v473
    %v734 = vunpack.c.l.b16 %v474
    %v735 = vunpack.c.l.b16 %v475
    %v736 = vunpack.c.l.b16 %v476
    %v737 = vunpack.c.l.b16 %v477
    %v738 = vunpack.c.l.b16 %v478
    %v739 = vunpack.c.l.b16 %v479
    %v740 = vunpack.c.l.b16 %v480
    %v741 = vunpack.c.l.b16 %v481
    %v742 = vunpack.c.l.b16 %v482
    %v743 = vunpack.c.l.b16 %v483
    %v744 = vunpack.c.l.b16 %v484
    %v745 = vunpack.c.l.b16 %v485
    %v746 = vunpack.c.l.b16 %v486
    %v747 = vunpack.c.l.b16 %v487
    %v748 = vunpack.c.l.b16 %v488
    %v749 = vunpack.c.l.b16 %v489
    %v750 = vunpack.c.l.b16 %v490
    %v751 = vunpack.c.l.b16 %v491
    %v752 = vunpack.c.l.b16 %v492
    %v753 = vunpack.c.l.b16 %v493
    %v754 = vunpack.c.l.b16 %v494
    %v755 = vunpack.c.l.b16 %v495
    %v756 = vunpack.c.l.b16 %v496
    %v757 = vunpack.c.l.b16 %v497
    %v758 = vunpack.c.l.b16 %v498
    %v759 = vunpack.c.l.b16 %v499
    %v760 = vunpack.c.l.b16 %v500
    %v761 = vunpack.c.l.b16 %v501
    %v762 = vunpack.c.l.b16 %v502
    %v763 = vunpack.c.l.b16 %v503
    %v764 = vunpack.c.l.b16 %v504
    %v765 = vunpack.c.l.b16 %v505
    %v766 = vunpack.c.l.b16 %v506
    %v767 = vunpack.c.l.b16 %v507
    %v768 = vunpack.c.l.b16 %v508
    %v769 = vunpack.c.l.b16 %v509
    %v770 = vunpack.c.l.b16 %v510
    %v771 = vunpack.c.l.b16 %v511
    %v772 = vunpack.c.l.b16 %v512
    %v773 = vunpack.c.l.b16 %v513
    %v774 = vunpack.c.l.b16 %v514
    %v775 = vunpack.c.l.b16 %v515
    %v776 = vunpack.c.l.b16 %v516
    %v777 = vunpack.c.l.b16 %v517
    %v778 = vunpack.c.l.b16 %v518
    %v779 = vunpack.c.l.b16 %v519
    %v780 = vunpack.c.l.b16 %v520
    %v781 = vunpack.c.l.b16 %v521
    %v782 = vpack.c.b16 %v655, %v654
    %v783 = vpack.c.b16 %v657, %v656
    %v784 = vpack.c.b16 %v659, %v658
    %v785 = vpack.c.b16 %v661, %v660
    %v786 = vpack.c.b16 %v663, %v662
    %v787 = vpack.c.b16 %v665, %v664
    %v788 = vpack.c.b16 %v667, %v666
    %v789 = vpack.c.b16 %v669, %v668
    %v790 = vpack.c.b16 %v671, %v670
    %v791 = vpack.c.b16 %v673, %v672
    %v792 = vpack.c.b16 %v675, %v674
    %v793 = vpack.c.b16 %v677, %v676
    %v794 = vpack.c.b16 %v679, %v678
    %v795 = vpack.c.b16 %v681, %v680
    %v796 = vpack.c.b16 %v683, %v682
    %v797 = vpack.c.b16 %v685, %v684
    %v798 = vpack.c.b16 %v687, %v686
    %v799 = vpack.c.b16 %v689, %v688
    %v800 = vpack.c.b16 %v691, %v690
    %v801 = vpack.c.b16 %v693, %v692
    %v802 = vpack.c.b16 %v695, %v694
    %v803 = vpack.c.b16 %v697, %v696
    %v804 = vpack.c.b16 %v699, %v698
    %v805 = vpack.c.b16 %v701, %v700
    %v806 = vpack.c.b16 %v703, %v702
    %v807 = vpack.c.b16 %v705, %v704
    %v808 = vpack.c.b16 %v707, %v706
    %v809 = vpack.c.b16 %v709, %v708
    %v810 = vpack.c.b16 %v711, %v710
    %v811 = vpack.c.b16 %v713, %v712
    %v812 = vpack.c.b16 %v715, %v714
    %v813 = vpack.c.b16 %v717, %v716
    %v814 = vpack.c.b16 %v719, %v718
    %v815 = vpack.c.b16 %v721, %v720
    %v816 = vpack.c.b16 %v723, %v722
    %v817 = vpack.c.b16 %v725, %v724
    %v818 = vpack.c.b16 %v727, %v726
    %v819 = vpack.c.b16 %v729, %v728
    %v820 = vpack.c.b16 %v731, %v730
    %v821 = vpack.c.b16 %v733, %v732
    %v822 = vpack.c.b16 %v735, %v734
    %v823 = vpack.c.b16 %v737, %v736
    %v824 = vpack.c.b16 %v739, %v738
    %v825 = vpack.c.b16 %v741, %v740
    %v826 = vpack.c.b16 %v743, %v742
    %v827 = vpack.c.b16 %v745, %v744
    %v828 = vpack.c.b16 %v747, %v746
    %v829 = vpack.c.b16 %v749, %v748
    %v830 = vpack.c.b16 %v751, %v750
    %v831 = vpack.c.b16 %v753, %v752
    %v832 = vpack.c.b16 %v755, %v754
    %v833 = vpack.c.b16 %v757, %v756
    %v834 = vpack.c.b16 %v759, %v758
    %v835 = vpack.c.b16 %v761, %v760
    %v836 = vpack.c.b16 %v763, %v762
    %v837 = vpack.c.b16 %v765, %v764
    %v838 = vpack.c.b16 %v767, %v766
    %v839 = vpack.c.b16 %v769, %v768
    %v840 = vpack.c.b16 %v771, %v770
    %v841 = vpack.c.b16 %v773, %v772
    %v842 = vpack.c.b16 %v775, %v774
    %v843 = vpack.c.b16 %v777, %v776
    %v844 = vpack.c.b16 %v779, %v778
    %v845 = vpack.c.b16 %v781, %v780
    %910 = vmatpush.bf16.msra.mxu0 %v789
    %911 = vmatpush.bf16.msra.mxu0 %v788
    %912 = vmatpush.bf16.msra.mxu0 %v787
    %913 = vmatpush.bf16.msra.mxu0 %v786
    %914 = vmatpush.bf16.msra.mxu0 %v785
    %915 = vmatpush.bf16.msra.mxu0 %v784
    %916 = vmatpush.bf16.msra.mxu0 %v783
    %917 = vmatpush.bf16.msra.mxu0 %v782
    %918 = vmatmul.bf16.gmra.mxu0 %v386
    %v919 = vpop.f32.mrf.mxu0
    %v920 = vadd.f32 %v524, %v919
    %v921 = vpop.f32.mrf.mxu0
    %922 = vdwg.mxu0
    %923 = vmatpush.bf16.msra.mxu0 %v797
    %924 = vmatpush.bf16.msra.mxu0 %v796
    %925 = vmatpush.bf16.msra.mxu0 %v795
    %926 = vmatpush.bf16.msra.mxu0 %v794
    %927 = vmatpush.bf16.msra.mxu0 %v793
    %928 = vmatpush.bf16.msra.mxu0 %v792
    %929 = vmatpush.bf16.msra.mxu0 %v791
    %930 = vmatpush.bf16.msra.mxu0 %v790
    %931 = vmatmul.bf16.gmra.mxu0 %v387
    %v932 = vpop.f32.mrf.mxu0
    %v933 = vadd.f32 %v920, %v932
    %v934 = vpop.f32.mrf.mxu0
    %935 = vdwg.mxu0
    %936 = vmatpush.bf16.msra.mxu0 %v805
    %937 = vmatpush.bf16.msra.mxu0 %v804
    %938 = vmatpush.bf16.msra.mxu0 %v803
    %939 = vmatpush.bf16.msra.mxu0 %v802
    %940 = vmatpush.bf16.msra.mxu0 %v801
    %941 = vmatpush.bf16.msra.mxu0 %v800
    %942 = vmatpush.bf16.msra.mxu0 %v799
    %943 = vmatpush.bf16.msra.mxu0 %v798
    %944 = vmatmul.bf16.gmra.mxu0 %v388
    %v945 = vpop.f32.mrf.mxu0
    %v946 = vadd.f32 %v933, %v945
    %v947 = vpop.f32.mrf.mxu0
    %948 = vdwg.mxu0
    %949 = vmatpush.bf16.msra.mxu0 %v813
    %950 = vmatpush.bf16.msra.mxu0 %v812
    %951 = vmatpush.bf16.msra.mxu0 %v811
    %952 = vmatpush.bf16.msra.mxu0 %v810
    %953 = vmatpush.bf16.msra.mxu0 %v809
    %954 = vmatpush.bf16.msra.mxu0 %v808
    %955 = vmatpush.bf16.msra.mxu0 %v807
    %956 = vmatpush.bf16.msra.mxu0 %v806
    %957 = vmatmul.bf16.gmra.mxu0 %v389
    %v958 = vpop.f32.mrf.mxu0
    %v959 = vadd.f32 %v946, %v958
    %v960 = vpop.f32.mrf.mxu0
    %961 = vdwg.mxu0
    %962 = vmatpush.bf16.msra.mxu0 %v821
    %963 = vmatpush.bf16.msra.mxu0 %v820
    %964 = vmatpush.bf16.msra.mxu0 %v819
    %965 = vmatpush.bf16.msra.mxu0 %v818
    %966 = vmatpush.bf16.msra.mxu0 %v817
    %967 = vmatpush.bf16.msra.mxu0 %v816
    %968 = vmatpush.bf16.msra.mxu0 %v815
    %969 = vmatpush.bf16.msra.mxu0 %v814
    %970 = vmatmul.bf16.gmra.mxu0 %v390
    %v971 = vpop.f32.mrf.mxu0
    %v972 = vadd.f32 %v959, %v971
    %v973 = vpop.f32.mrf.mxu0
    %974 = vdwg.mxu0
    %975 = vmatpush.bf16.msra.mxu0 %v829
    %976 = vmatpush.bf16.msra.mxu0 %v828
    %977 = vmatpush.bf16.msra.mxu0 %v827
    %978 = vmatpush.bf16.msra.mxu0 %v826
    %979 = vmatpush.bf16.msra.mxu0 %v825
    %980 = vmatpush.bf16.msra.mxu0 %v824
    %981 = vmatpush.bf16.msra.mxu0 %v823
    %982 = vmatpush.bf16.msra.mxu0 %v822
    %983 = vmatmul.bf16.gmra.mxu0 %v391
    %v984 = vpop.f32.mrf.mxu0
    %v985 = vadd.f32 %v972, %v984
    %v986 = vpop.f32.mrf.mxu0
    %987 = vdwg.mxu0
    %988 = vmatpush.bf16.msra.mxu0 %v837
    %989 = vmatpush.bf16.msra.mxu0 %v836
    %990 = vmatpush.bf16.msra.mxu0 %v835
    %991 = vmatpush.bf16.msra.mxu0 %v834
    %992 = vmatpush.bf16.msra.mxu0 %v833
    %993 = vmatpush.bf16.msra.mxu0 %v832
    %994 = vmatpush.bf16.msra.mxu0 %v831
    %995 = vmatpush.bf16.msra.mxu0 %v830
    %996 = vmatmul.bf16.gmra.mxu0 %v392
    %v997 = vpop.f32.mrf.mxu0
    %v998 = vadd.f32 %v985, %v997
    %v999 = vpop.f32.mrf.mxu0
    %1000 = vdwg.mxu0
    %1001 = vmatpush.bf16.msra.mxu0 %v845
    %1002 = vmatpush.bf16.msra.mxu0 %v844
    %1003 = vmatpush.bf16.msra.mxu0 %v843
    %1004 = vmatpush.bf16.msra.mxu0 %v842
    %1005 = vmatpush.bf16.msra.mxu0 %v841
    %1006 = vmatpush.bf16.msra.mxu0 %v840
    %1007 = vmatpush.bf16.msra.mxu0 %v839
    %1008 = vmatpush.bf16.msra.mxu0 %v838
    %1009 = vmatmul.bf16.gmra.mxu0 %v393
    %v1010 = vpop.f32.mrf.mxu0
    %v1011 = vadd.f32 %v998, %v1010
    %v1012 = vpop.f32.mrf.mxu0
    %1013 = vdwg.mxu0
    %1014 = vst [vmem:[%s9] sm:$0x3] %v1011
    %v1015 = vmul.f32 %v1011, %v1011
    %1017 = vrot.lane.b32.xlu0 %v1015, 112
    %v1018 = vpop.permute.xlu0 %1017
    %v1020 = vadd.f32 %v1015, %v1018
    %1021 = vrot.lane.b32.xlu0 %v1015, 96
    %v1022 = vpop.permute.xlu0 %1021
    %v1024 = vadd.f32 %v1020, %v1022
    %v1025 = vadd.f32 %v1024, 1e-08
    %v1026 = vrsqrt.pop %v1025
    %v1027 = vmul.f32 %v1026, %v1025
    %v1028 = vmul.f32 %v1027, %v1026
    %v1029 = vmul.f32 0.5, %v1028
    %v1030 = vsub.f32 1.5, %v1029
    %v1031 = vmul.f32 %v1026, %v1030
    %v1032 = vmul.f32 %v1025, %v1031
    %vm1033 = vcmp.eq.f32.partialorder %v1025, inf
    %v1034 = vsel %vm1033, %v1025, %v1032
    %vm1035 = vcmp.eq.f32.partialorder %v1025, 0.0
    %v1036 = vand.u32 %v1025, 2147483648
    %v1037 = vsel %vm1035, %v1036, %v1034
    %v1038 = vrcp.pop %v1037
    %v1039 = vmul.f32 %v1037, %v1038
    %v1040 = vsub.f32 1.0, %v1039
    %v1041 = vmul.f32 %v1038, %v1040
    %v1042 = vadd.f32 %v1038, %v1041
    %vm1043 = vweird.f32 %v1037
    %vm1044 = vweird.f32 %v1038
    %vm1045 = vmor %vm1043, %vm1044
    %v1046 = vsel %vm1045, %v1038, %v1042
    %v1047 = vand.u32 2147483647, %v1037
    %vm1048 = vcmp.eq.f32.partialorder %v1047, 8.507059e+37
    %v1049 = vand.u32 %v1037, 2147483648
    %v1050 = vor.u32 1.1754944e-38, %v1049
    %v1051 = vsel %vm1048, %v1050, %v1046
    %v1052 = vmul.f32 1.0, %v1051
    %v1053 = vmul.f32 %v1011, %v1052
    %1055 = vrot.lane.b32.xlu0 %v1052, 16
    %v1056 = vpop.permute.xlu0 %1055
    %v1058 = vmul.f32 %v1011, %v1056
    %1059 = vrot.lane.b32.xlu0 %v1052, 32
    %v1060 = vpop.permute.xlu0 %1059
    %v1062 = vmul.f32 %v1011, %v1060
    %v1063 = vand.u32 2147483647, %v1037
    %vm1064 = vcmp.le.f32.partialorder %v1063, 0.7853982
    %vm1065 = vcmp.lt.s32.totalorder %v1037, 0
    %v1066 = vand.u32 %v1037, 2139095040
    %v1067 = vshrl.u32 %v1066, 23
    %v1068 = vsub.s32 %v1067, 127
    %v1069 = vand.u32 2147483647, %v1037
    %v1070 = vand.u32 %v1069, 8388607
    %v1071 = vor.u32 %v1070, 8388608
    %v1072 = vsub.s32 0, %v1071
    %v1073 = vadd.s32 %v1068, 1
    %vm1074 = vcmp.gt.s32.totalorder %v1073, 0
    %v1075 = vsel %vm1074, %v1073, 0
    %v1076 = vshrl.u32 %v1075, 5
    %v1077 = vand.u32 %v1075, 31
    %v1078 = vsub.s32 32, %v1077
    %v1079 = vshrl.u32 683565275, %v1078
    %v1080 = vshll.u32 683565275, %v1077
    %v1081 = vshrl.u32 2475754826, %v1078
    %v1082 = vor.u32 %v1080, %v1081
    %v1083 = vshll.u32 2475754826, %v1077
    %v1084 = vshrl.u32 2131351028, %v1078
    %v1085 = vor.u32 %v1083, %v1084
    %v1086 = vshll.u32 2131351028, %v1077
    %v1087 = vshrl.u32 2102212464, %v1078
    %v1088 = vor.u32 %v1086, %v1087
    %v1089 = vshll.u32 2102212464, %v1077
    %v1090 = vshrl.u32 920167782, %v1078
    %v1091 = vor.u32 %v1089, %v1090
    %v1092 = vshll.u32 920167782, %v1077
    %v1093 = vshrl.u32 1326507024, %v1078
    %v1094 = vor.u32 %v1092, %v1093
    %vm1095 = vcmp.lt.s32.totalorder %v1076, 1
    %vm1096 = vcmp.lt.s32.totalorder %v1076, 2
    %vm1097 = vcmp.lt.s32.totalorder %v1076, 3
    %vm1098 = vcmp.lt.s32.totalorder %v1076, 4
    %v1099 = vsel %vm1095, %v1079, %v1082
    %v1100 = vsel %vm1098, %v1088, 2102212464
    %v1101 = vsel %vm1097, %v1085, %v1100
    %v1102 = vsel %vm1096, %v1099, %v1101
    %v1103 = vsel %vm1095, %v1082, %v1085
    %v1104 = vsel %vm1098, %v1091, 920167782
    %v1105 = vsel %vm1097, %v1088, %v1104
    %v1106 = vsel %vm1096, %v1103, %v1105
    %v1107 = vsel %vm1095, %v1085, %v1088
    %v1108 = vsel %vm1098, %v1094, 1326507024
    %v1109 = vsel %vm1097, %v1091, %v1108
    %v1110 = vsel %vm1096, %v1107, %v1109
    %v1111 = vshll.u32 %v1071, 8
    %v1112 = vand.u32 %v1111, 65535
    %v1113 = vshrl.u32 %v1111, 16
    %v1114 = vand.u32 %v1110, 65535
    %v1115 = vshrl.u32 %v1110, 16
    %v1116 = vmul.u32 %v1112, %v1114
    %v1117 = vmul.u32 %v1112, %v1115
    %v1118 = vmul.u32 %v1113, %v1114
    %v1119 = vmul.u32 %v1113, %v1115
    %v1120 = vshll.u32 %v1117, 16
    %v1121 = vshrl.u32 %v1117, 16
    %v1122 = vshll.u32 %v1118, 16
    %v1123 = vshrl.u32 %v1118, 16
    %vm1124 = vc.u32 %v1116, %v1120
    %v1125 = vsel %vm1124, 1, 0
    %v1126 = vadd.s32 %v1116, %v1120
    %v1127 = vadd.s32 %v1119, %v1125
    %vm1128 = vc.u32 %v1126, %v1122
    %v1129 = vsel %vm1128, 1, 0
    %v1130 = vadd.s32 %v1126, %v1122
    %v1131 = vadd.s32 %v1127, %v1129
    %v1132 = vadd.s32 %v1131, %v1121
    %v1133 = vadd.s32 %v1132, %v1123
    %v1134 = vand.u32 %v1111, 65535
    %v1135 = vshrl.u32 %v1111, 16
    %v1136 = vand.u32 %v1106, 65535
    %v1137 = vshrl.u32 %v1106, 16
    %v1138 = vmul.u32 %v1134, %v1136
    %v1139 = vmul.u32 %v1134, %v1137
    %v1140 = vmul.u32 %v1135, %v1136
    %v1141 = vmul.u32 %v1135, %v1137
    %v1142 = vshll.u32 %v1139, 16
    %v1143 = vshrl.u32 %v1139, 16
    %v1144 = vshll.u32 %v1140, 16
    %v1145 = vshrl.u32 %v1140, 16
    %vm1146 = vc.u32 %v1138, %v1142
    %v1147 = vsel %vm1146, 1, 0
    %v1148 = vadd.s32 %v1138, %v1142
    %v1149 = vadd.s32 %v1141, %v1147
    %vm1150 = vc.u32 %v1148, %v1144
    %v1151 = vsel %vm1150, 1, 0
    %v1152 = vadd.s32 %v1148, %v1144
    %v1153 = vadd.s32 %v1149, %v1151
    %v1154 = vadd.s32 %v1153, %v1143
    %v1155 = vadd.s32 %v1154, %v1145
    %v1156 = vmul.u32 %v1111, %v1102
    %v1157 = vadd.s32 %v1133, %v1152
    %vm1158 = vc.u32 %v1133, %v1152
    %v1159 = vadd.s32 %v1155, 1
    %v1160 = vsel %vm1158, %v1159, %v1155
    %v1161 = vadd.s32 %v1156, %v1160
    %v1162 = vadd.s32 %v1161, 536870912
    %v1163 = vshrl.u32 %v1162, 30
    %v1164 = vshll.u32 %v1163, 30
    %v1165 = vsub.s32 %v1161, %v1164
    %vm1166 = vcmp.lt.s32.totalorder %v1165, 0
    %v1167 = vsub.s32 0, %v1165
    %v1168 = vsel %vm1166, %v1167, %v1165
    %v1169 = vclz %v1168
    %v1170 = vsub.s32 %v1169, 2
    %vm1171 = vcmp.gt.s32.totalorder 0, %v1170
    %v1172 = vsel %vm1171, 0, %v1170
    %v1173 = vsub.s32 32, %v1172
    %v1174 = vshll.u32 %v1165, %v1172
    %v1175 = vshrl.u32 %v1157, %v1173
    %v1176 = vor.u32 %v1174, %v1175
    %v1177 = vsub.s32 4294967266, %v1172
    %v1178 = vadd.s32 %v1177, 127
    %v1179 = vshll.u32 %v1178, 23
    %v1180 = vor.u32 4788187, %v1179
    %v1181 = vand.u32 2147483647, %v1180
    %v1183 = vcvt.s32.f32 %v1176
    %v1184 = vmul.f32 %v1183, %v1181
    %v1185 = vxor.u32 %v1184, 2147483648
    %v1186 = vsel %vm1065, %v1185, %v1184
    %v1187 = vsub.s32 4, %v1163
    %v1188 = vsel %vm1065, %v1187, %v1163
    %v1189 = vsel %vm1064, %v1037, %v1186
    %v1190 = vsel %vm1064, 0, %v1188
    %v1191 = vmul.f32 %v1189, %v1189
    %v1192 = vmul.f32 %v1191, -0.001358992
    %v1193 = vadd.f32 %v1192, 0.041655596
    %v1194 = vmul.f32 %v1191, %v1193
    %v1195 = vadd.f32 %v1194, -0.4999988
    %v1196 = vmul.f32 %v1191, %v1195
    %v1197 = vadd.f32 1.0, %v1196
    %v1198 = vmul.f32 %v1189, %v1189
    %v1199 = vmul.f32 %v1198, -0.00019511016
    %v1200 = vadd.f32 %v1199, 0.008332121
    %v1201 = vmul.f32 %v1198, %v1200
    %v1202 = vadd.f32 %v1201, -0.16666654
    %v1203 = vmul.f32 %v1198, %v1202
    %v1204 = vadd.f32 %v1203, 1.0
    %v1205 = vmul.f32 %v1204, %v1189
    %vm1206 = vweird.f32 %v1037
    %v1207 = vand.u32 %v1190, 3
    %vm1208 = vcmp.lt.s32.totalorder %v1207, 2
    %vm1209 = vcmp.eq.s32.totalorder %v1207, 0
    %v1210 = vxor.u32 %v1205, 2147483648
    %v1211 = vsel %vm1209, %v1197, %v1210
    %vm1212 = vcmp.eq.s32.totalorder %v1207, 2
    %v1213 = vxor.u32 %v1197, 2147483648
    %v1214 = vsel %vm1212, %v1213, %v1205
    %v1215 = vsel %vm1208, %v1211, %v1214
    %v1216 = vsel %vm1206, nan, %v1215
    %v1217 = vand.u32 2147483647, %v1037
    %vm1218 = vcmp.le.f32.partialorder %v1217, 0.7853982
    %vm1219 = vcmp.lt.s32.totalorder %v1037, 0
    %v1220 = vand.u32 %v1037, 2139095040
    %v1221 = vshrl.u32 %v1220, 23
    %v1222 = vsub.s32 %v1221, 127
    %v1223 = vand.u32 2147483647, %v1037
    %v1224 = vand.u32 %v1223, 8388607
    %v1225 = vor.u32 %v1224, 8388608
    %v1226 = vsub.s32 0, %v1225
    %v1227 = vadd.s32 %v1222, 1
    %vm1228 = vcmp.gt.s32.totalorder %v1227, 0
    %v1229 = vsel %vm1228, %v1227, 0
    %v1230 = vshrl.u32 %v1229, 5
    %v1231 = vand.u32 %v1229, 31
    %v1232 = vsub.s32 32, %v1231
    %v1233 = vshrl.u32 683565275, %v1232
    %v1234 = vshll.u32 683565275, %v1231
    %v1235 = vshrl.u32 2475754826, %v1232
    %v1236 = vor.u32 %v1234, %v1235
    %v1237 = vshll.u32 2475754826, %v1231
    %v1238 = vshrl.u32 2131351028, %v1232
    %v1239 = vor.u32 %v1237, %v1238
    %v1240 = vshll.u32 2131351028, %v1231
    %v1241 = vshrl.u32 2102212464, %v1232
    %v1242 = vor.u32 %v1240, %v1241
    %v1243 = vshll.u32 2102212464, %v1231
    %v1244 = vshrl.u32 920167782, %v1232
    %v1245 = vor.u32 %v1243, %v1244
    %v1246 = vshll.u32 920167782, %v1231
    %v1247 = vshrl.u32 1326507024, %v1232
    %v1248 = vor.u32 %v1246, %v1247
    %vm1249 = vcmp.lt.s32.totalorder %v1230, 1
    %vm1250 = vcmp.lt.s32.totalorder %v1230, 2
    %vm1251 = vcmp.lt.s32.totalorder %v1230, 3
    %vm1252 = vcmp.lt.s32.totalorder %v1230, 4
    %v1253 = vsel %vm1249, %v1233, %v1236
    %v1254 = vsel %vm1252, %v1242, 2102212464
    %v1255 = vsel %vm1251, %v1239, %v1254
    %v1256 = vsel %vm1250, %v1253, %v1255
    %v1257 = vsel %vm1249, %v1236, %v1239
    %v1258 = vsel %vm1252, %v1245, 920167782
    %v1259 = vsel %vm1251, %v1242, %v1258
    %v1260 = vsel %vm1250, %v1257, %v1259
    %v1261 = vsel %vm1249, %v1239, %v1242
    %v1262 = vsel %vm1252, %v1248, 1326507024
    %v1263 = vsel %vm1251, %v1245, %v1262
    %v1264 = vsel %vm1250, %v1261, %v1263
    %v1265 = vshll.u32 %v1225, 8
    %v1266 = vand.u32 %v1265, 65535
    %v1267 = vshrl.u32 %v1265, 16
    %v1268 = vand.u32 %v1264, 65535
    %v1269 = vshrl.u32 %v1264, 16
    %v1270 = vmul.u32 %v1266, %v1268
    %v1271 = vmul.u32 %v1266, %v1269
    %v1272 = vmul.u32 %v1267, %v1268
    %v1273 = vmul.u32 %v1267, %v1269
    %v1274 = vshll.u32 %v1271, 16
    %v1275 = vshrl.u32 %v1271, 16
    %v1276 = vshll.u32 %v1272, 16
    %v1277 = vshrl.u32 %v1272, 16
    %vm1278 = vc.u32 %v1270, %v1274
    %v1279 = vsel %vm1278, 1, 0
    %v1280 = vadd.s32 %v1270, %v1274
    %v1281 = vadd.s32 %v1273, %v1279
    %vm1282 = vc.u32 %v1280, %v1276
    %v1283 = vsel %vm1282, 1, 0
    %v1284 = vadd.s32 %v1280, %v1276
    %v1285 = vadd.s32 %v1281, %v1283
    %v1286 = vadd.s32 %v1285, %v1275
    %v1287 = vadd.s32 %v1286, %v1277
    %v1288 = vand.u32 %v1265, 65535
    %v1289 = vshrl.u32 %v1265, 16
    %v1290 = vand.u32 %v1260, 65535
    %v1291 = vshrl.u32 %v1260, 16
    %v1292 = vmul.u32 %v1288, %v1290
    %v1293 = vmul.u32 %v1288, %v1291
    %v1294 = vmul.u32 %v1289, %v1290
    %v1295 = vmul.u32 %v1289, %v1291
    %v1296 = vshll.u32 %v1293, 16
    %v1297 = vshrl.u32 %v1293, 16
    %v1298 = vshll.u32 %v1294, 16
    %v1299 = vshrl.u32 %v1294, 16
    %vm1300 = vc.u32 %v1292, %v1296
    %v1301 = vsel %vm1300, 1, 0
    %v1302 = vadd.s32 %v1292, %v1296
    %v1303 = vadd.s32 %v1295, %v1301
    %vm1304 = vc.u32 %v1302, %v1298
    %v1305 = vsel %vm1304, 1, 0
    %v1306 = vadd.s32 %v1302, %v1298
    %v1307 = vadd.s32 %v1303, %v1305
    %v1308 = vadd.s32 %v1307, %v1297
    %v1309 = vadd.s32 %v1308, %v1299
    %v1310 = vmul.u32 %v1265, %v1256
    %v1311 = vadd.s32 %v1287, %v1306
    %vm1312 = vc.u32 %v1287, %v1306
    %v1313 = vadd.s32 %v1309, 1
    %v1314 = vsel %vm1312, %v1313, %v1309
    %v1315 = vadd.s32 %v1310, %v1314
    %v1316 = vadd.s32 %v1315, 536870912
    %v1317 = vshrl.u32 %v1316, 30
    %v1318 = vshll.u32 %v1317, 30
    %v1319 = vsub.s32 %v1315, %v1318
    %vm1320 = vcmp.lt.s32.totalorder %v1319, 0
    %v1321 = vsub.s32 0, %v1319
    %v1322 = vsel %vm1320, %v1321, %v1319
    %v1323 = vclz %v1322
    %v1324 = vsub.s32 %v1323, 2
    %vm1325 = vcmp.gt.s32.totalorder 0, %v1324
    %v1326 = vsel %vm1325, 0, %v1324
    %v1327 = vsub.s32 32, %v1326
    %v1328 = vshll.u32 %v1319, %v1326
    %v1329 = vshrl.u32 %v1311, %v1327
    %v1330 = vor.u32 %v1328, %v1329
    %v1331 = vsub.s32 4294967266, %v1326
    %v1332 = vadd.s32 %v1331, 127
    %v1333 = vshll.u32 %v1332, 23
    %v1334 = vor.u32 4788187, %v1333
    %v1335 = vand.u32 2147483647, %v1334
    %v1337 = vcvt.s32.f32 %v1330
    %v1338 = vmul.f32 %v1337, %v1335
    %v1339 = vxor.u32 %v1338, 2147483648
    %v1340 = vsel %vm1219, %v1339, %v1338
    %v1341 = vsub.s32 4, %v1317
    %v1342 = vsel %vm1219, %v1341, %v1317
    %v1343 = vsel %vm1218, %v1037, %v1340
    %v1344 = vsel %vm1218, 0, %v1342
    %v1345 = vmul.f32 %v1343, %v1343
    %v1346 = vmul.f32 %v1345, -0.001358992
    %v1347 = vadd.f32 %v1346, 0.041655596
    %v1348 = vmul.f32 %v1345, %v1347
    %v1349 = vadd.f32 %v1348, -0.4999988
    %v1350 = vmul.f32 %v1345, %v1349
    %v1351 = vadd.f32 1.0, %v1350
    %v1352 = vmul.f32 %v1343, %v1343
    %v1353 = vmul.f32 %v1352, -0.00019511016
    %v1354 = vadd.f32 %v1353, 0.008332121
    %v1355 = vmul.f32 %v1352, %v1354
    %v1356 = vadd.f32 %v1355, -0.16666654
    %v1357 = vmul.f32 %v1352, %v1356
    %v1358 = vadd.f32 %v1357, 1.0
    %v1359 = vmul.f32 %v1358, %v1343
    %vm1360 = vweird.f32 %v1037
    %v1361 = vadd.s32 %v1344, 3
    %v1362 = vand.u32 %v1361, 3
    %vm1363 = vcmp.lt.s32.totalorder %v1362, 2
    %vm1364 = vcmp.eq.s32.totalorder %v1362, 0
    %v1365 = vxor.u32 %v1359, 2147483648
    %v1366 = vsel %vm1364, %v1351, %v1365
    %vm1367 = vcmp.eq.s32.totalorder %v1362, 2
    %v1368 = vxor.u32 %v1351, 2147483648
    %v1369 = vsel %vm1367, %v1368, %v1359
    %v1370 = vsel %vm1363, %v1366, %v1369
    %v1371 = vsel %vm1360, nan, %v1370
    %v1372 = vsub.f32 1.0, %v1216
    %v1373 = vmul.f32 %v1053, %v1053
    %v1374 = vmul.f32 %v1373, %v1372
    %v1375 = vadd.f32 %v1216, %v1374
    %1377 = vrot.lane.b32.xlu0 %v1058, 112
    %v1378 = vpop.permute.xlu0 %1377
    %v1380 = vmul.f32 %v1053, %v1378
    %v1381 = vmul.f32 %v1380, %v1372
    %1383 = vrot.lane.b32.xlu0 %v1371, 32
    %v1384 = vpop.permute.xlu0 %1383
    %v1386 = vmul.f32 %v1062, %v1384
    %1388 = vrot.lane.b32.xlu0 %v1386, 96
    %v1389 = vpop.permute.xlu0 %1388
    %v1391 = vsub.f32 %v1381, %v1389
    %1393 = vrot.lane.b32.xlu0 %v1062, 96
    %v1394 = vpop.permute.xlu0 %1393
    %v1396 = vmul.f32 %v1053, %v1394
    %v1397 = vmul.f32 %v1396, %v1372
    %1398 = vrot.lane.b32.xlu0 %v1371, 16
    %v1399 = vpop.permute.xlu0 %1398
    %v1401 = vmul.f32 %v1058, %v1399
    %1403 = vrot.lane.b32.xlu0 %v1401, 112
    %v1404 = vpop.permute.xlu0 %1403
    %v1406 = vadd.f32 %v1397, %v1404
    %v1407 = vadd.f32 %v1381, %v1389
    %v1408 = vmul.f32 %v1058, %v1058
    %1410 = vrot.lane.b32.xlu0 %v1372, 16
    %v1411 = vpop.permute.xlu0 %1410
    %v1413 = vmul.f32 %v1408, %v1411
    %1415 = vrot.lane.b32.xlu0 %v1413, 112
    %v1416 = vpop.permute.xlu0 %1415
    %v1418 = vadd.f32 %v1216, %v1416
    %1419 = vrot.lane.b32.xlu0 %v1062, 112
    %v1420 = vpop.permute.xlu0 %1419
    %v1422 = vmul.f32 %v1058, %v1420
    %v1423 = vmul.f32 %v1422, %v1411
    %v1424 = vmul.f32 %v1053, %v1371
    %1426 = vrot.lane.b32.xlu0 %v1424, 16
    %v1427 = vpop.permute.xlu0 %1426
    %v1429 = vsub.f32 %v1423, %v1427
    %v1430 = vsub.f32 %v1397, %v1404
    %v1431 = vadd.f32 %v1423, %v1427
    %v1432 = vmul.f32 %v1062, %v1062
    %1433 = vrot.lane.b32.xlu0 %v1372, 32
    %v1434 = vpop.permute.xlu0 %1433
    %v1436 = vmul.f32 %v1432, %v1434
    %1438 = vrot.lane.b32.xlu0 %v1436, 96
    %v1439 = vpop.permute.xlu0 %1438
    %v1441 = vadd.f32 %v1216, %v1439
    %1443 = vrot.lane.b32.xlu0 %v1375, 64
    %v1444 = vpop.permute.xlu0 %1443
    %1447 = vrot.lane.b32.xlu0 %v1391, 80
    %v1448 = vpop.permute.xlu0 %1447
    %1451 = vrot.lane.b32.xlu0 %v1406, 96
    %v1452 = vpop.permute.xlu0 %1451
    %1455 = vrot.lane.b32.xlu0 %v1407, 112
    %v1456 = vpop.permute.xlu0 %1455
    %1459 = vrot.lane.b32.xlu0 %v1430, 32
    %v1460 = vpop.permute.xlu0 %1459
    %1463 = vrot.lane.b32.xlu0 %v1431, 32
    %v1464 = vpop.permute.xlu0 %1463
    %1467 = vrot.lane.b32.xlu0 %v1441, 64
    %v1468 = vpop.permute.xlu0 %1467
    %vm1469 = vcmask 130048
    %v1470 = vsel %vm1469, %v1444, %v1448
    %v1471 = vsel %vm270, %v1470, %v1452
    %vm1472 = vcmask 392192
    %v1473 = vsel %vm1472, %v1471, %v1456
    %vm1474 = vcmask 523264
    %v1475 = vsel %vm1474, %v1473, %v1418
    %vm1476 = vcmask 654336
    %v1477 = vsel %vm1476, %v1475, %v1429
    %vm1478 = vcmask 785408
    %v1479 = vsel %vm1478, %v1477, %v1460
    %vm1480 = vcmask 916480
    %v1481 = vsel %vm1480, %v1479, %v1464
    %v1483 = vrot.slane %v1468, 6
    %vm1484 = vcmask 1041408
    %v1485 = vsel %vm1484, %v1481, %v1483
    %vm1487 = vcmask 125954
    %vm1488 = vmor %vm1487, %vm1484
    %1489 = vst.msk [vmem:[%s10] sm:$0xf] %vm1488, %v1485
    %1490 = vrot.lane.b32.xlu0 %v1481, 10
    %v1491 = vpop.permute.xlu0 %1490
    %1492 = vrot.lane.b32.xlu0 %v1468, 10
    %v1493 = vpop.permute.xlu0 %1492
    %vm1494 = vcmask 80896
    %v1495 = vsel %vm1494, %v1491, %v1493
    %v1497 = vsel %vm1494, %v1011, %v1491
    %v1498 = vld [vmem:[#allocation9] sm:$0xff]
    %v1499 = vld [vmem:[#allocation9 + $0x8] sm:$0xff]
    %v1500 = vld [vmem:[#allocation9 + $0x10] sm:$0xff]
    %v1501 = vld [vmem:[#allocation9 + $0x18] sm:$0xff]
    %v1502 = vld [vmem:[#allocation9 + $0x20] sm:$0xff]
    %v1503 = vld [vmem:[#allocation9 + $0x28] sm:$0xff]
    %v1504 = vld [vmem:[#allocation9 + $0x30] sm:$0xff]
    %v1505 = vld [vmem:[#allocation9 + $0x38] sm:$0xff]
    %v1506 = vld [vmem:[#allocation9 + $0x40] sm:$0xff]
    %v1507 = vld [vmem:[#allocation9 + $0x48] sm:$0xff]
    %v1508 = vld [vmem:[#allocation9 + $0x50] sm:$0xff]
    %v1509 = vld [vmem:[#allocation9 + $0x58] sm:$0xff]
    %v1510 = vld [vmem:[#allocation9 + $0x60] sm:$0xff]
    %v1511 = vld [vmem:[#allocation9 + $0x68] sm:$0xff]
    %v1512 = vld [vmem:[#allocation9 + $0x70] sm:$0xff]
    %v1513 = vld [vmem:[#allocation9 + $0x78] sm:$0xff]
    %v1514 = vld [vmem:[#allocation9 + $0x80] sm:$0xff]
    %v1515 = vld [vmem:[#allocation9 + $0x88] sm:$0xff]
    %v1516 = vld [vmem:[#allocation9 + $0x90] sm:$0xff]
    %v1517 = vld [vmem:[#allocation9 + $0x98] sm:$0xff]
    %v1518 = vld [vmem:[#allocation9 + $0xa0] sm:$0xff]
    %v1519 = vld [vmem:[#allocation9 + $0xa8] sm:$0xff]
    %v1520 = vld [vmem:[#allocation9 + $0xb0] sm:$0xff]
    %v1521 = vld [vmem:[#allocation9 + $0xb8] sm:$0xff]
    %v1522 = vld [vmem:[#allocation9 + $0xc0] sm:$0xff]
    %v1523 = vld [vmem:[#allocation9 + $0xc8] sm:$0xff]
    %v1524 = vld [vmem:[#allocation9 + $0xd0] sm:$0xff]
    %v1525 = vld [vmem:[#allocation9 + $0xd8] sm:$0xff]
    %v1526 = vld [vmem:[#allocation9 + $0xe0] sm:$0xff]
    %v1527 = vld [vmem:[#allocation9 + $0xe8] sm:$0xff]
    %v1528 = vld [vmem:[#allocation9 + $0xf0] sm:$0xff]
    %v1529 = vld [vmem:[#allocation9 + $0xf8] sm:$0xff]
    %v1530 = vld [vmem:[#allocation9 + $0x100] sm:$0xff]
    %v1531 = vld [vmem:[#allocation9 + $0x108] sm:$0xff]
    %v1532 = vld [vmem:[#allocation9 + $0x110] sm:$0xff]
    %v1533 = vld [vmem:[#allocation9 + $0x118] sm:$0xff]
    %v1534 = vld [vmem:[#allocation9 + $0x120] sm:$0xff]
    %v1535 = vld [vmem:[#allocation9 + $0x128] sm:$0xff]
    %v1536 = vld [vmem:[#allocation9 + $0x130] sm:$0xff]
    %v1537 = vld [vmem:[#allocation9 + $0x138] sm:$0xff]
    %v1538 = vld [vmem:[#allocation9 + $0x140] sm:$0xff]
    %v1539 = vld [vmem:[#allocation9 + $0x148] sm:$0xff]
    %v1540 = vld [vmem:[#allocation9 + $0x150] sm:$0xff]
    %v1541 = vld [vmem:[#allocation9 + $0x158] sm:$0xff]
    %v1542 = vld [vmem:[#allocation9 + $0x160] sm:$0xff]
    %v1543 = vld [vmem:[#allocation9 + $0x168] sm:$0xff]
    %v1544 = vld [vmem:[#allocation9 + $0x170] sm:$0xff]
    %v1545 = vld [vmem:[#allocation9 + $0x178] sm:$0xff]
    %v1546 = vld [vmem:[#allocation9 + $0x180] sm:$0xff]
    %v1547 = vld [vmem:[#allocation9 + $0x188] sm:$0xff]
    %v1548 = vld [vmem:[#allocation9 + $0x190] sm:$0xff]
    %v1549 = vld [vmem:[#allocation9 + $0x198] sm:$0xff]
    %v1550 = vld [vmem:[#allocation9 + $0x1a0] sm:$0xff]
    %v1551 = vld [vmem:[#allocation9 + $0x1a8] sm:$0xff]
    %v1552 = vld [vmem:[#allocation9 + $0x1b0] sm:$0xff]
    %v1553 = vld [vmem:[#allocation9 + $0x1b8] sm:$0xff]
    %v1554 = vld [vmem:[#allocation9 + $0x1c0] sm:$0xff]
    %v1555 = vld [vmem:[#allocation9 + $0x1c8] sm:$0xff]
    %v1556 = vld [vmem:[#allocation9 + $0x1d0] sm:$0xff]
    %v1557 = vld [vmem:[#allocation9 + $0x1d8] sm:$0xff]
    %v1558 = vld [vmem:[#allocation9 + $0x1e0] sm:$0xff]
    %v1559 = vld [vmem:[#allocation9 + $0x1e8] sm:$0xff]
    %v1560 = vld [vmem:[#allocation9 + $0x1f0] sm:$0xff]
    %v1561 = vld [vmem:[#allocation9 + $0x1f8] sm:$0xff]
    %v1562 = vld [vmem:[#allocation9 + $0x200] sm:$0xff]
    %v1563 = vld [vmem:[#allocation9 + $0x208] sm:$0xff]
    %v1564 = vld [vmem:[#allocation9 + $0x210] sm:$0xff]
    %v1565 = vld [vmem:[#allocation9 + $0x218] sm:$0xff]
    %v1566 = vld [vmem:[#allocation9 + $0x220] sm:$0xff]
    %v1567 = vld [vmem:[#allocation9 + $0x228] sm:$0xff]
    %v1568 = vld [vmem:[#allocation9 + $0x230] sm:$0xff]
    %v1569 = vld [vmem:[#allocation9 + $0x238] sm:$0xff]
    %v1570 = vld [vmem:[#allocation9 + $0x240] sm:$0xff]
    %v1571 = vld [vmem:[#allocation9 + $0x248] sm:$0xff]
    %v1572 = vld [vmem:[#allocation9 + $0x250] sm:$0xff]
    %v1573 = vld [vmem:[#allocation9 + $0x258] sm:$0xff]
    %v1574 = vld [vmem:[#allocation9 + $0x260] sm:$0xff]
    %v1575 = vld [vmem:[#allocation9 + $0x268] sm:$0xff]
    %v1576 = vld [vmem:[#allocation9 + $0x270] sm:$0xff]
    %v1577 = vld [vmem:[#allocation9 + $0x278] sm:$0xff]
    %v1578 = vld [vmem:[#allocation9 + $0x280] sm:$0xff]
    %v1579 = vld [vmem:[#allocation9 + $0x288] sm:$0xff]
    %v1580 = vld [vmem:[#allocation9 + $0x290] sm:$0xff]
    %v1581 = vld [vmem:[#allocation9 + $0x298] sm:$0xff]
    %v1582 = vld [vmem:[#allocation9 + $0x2a0] sm:$0xff]
    %v1583 = vld [vmem:[#allocation9 + $0x2a8] sm:$0xff]
    %v1584 = vld [vmem:[#allocation9 + $0x2b0] sm:$0xff]
    %v1585 = vld [vmem:[#allocation9 + $0x2b8] sm:$0xff]
    %v1586 = vld [vmem:[#allocation9 + $0x2c0] sm:$0xff]
    %v1587 = vld [vmem:[#allocation9 + $0x2c8] sm:$0xff]
    %v1588 = vld [vmem:[#allocation9 + $0x2d0] sm:$0xff]
    %v1589 = vld [vmem:[#allocation9 + $0x2d8] sm:$0xff]
    %v1590 = vld [vmem:[#allocation9 + $0x2e0] sm:$0xff]
    %v1591 = vld [vmem:[#allocation9 + $0x2e8] sm:$0xff]
    %v1592 = vld [vmem:[#allocation9 + $0x2f0] sm:$0xff]
    %v1593 = vld [vmem:[#allocation9 + $0x2f8] sm:$0xff]
    %v1594 = vld [vmem:[#allocation9 + $0x300] sm:$0xff]
    %v1595 = vld [vmem:[#allocation9 + $0x308] sm:$0xff]
    %v1596 = vld [vmem:[#allocation9 + $0x310] sm:$0xff]
    %v1597 = vld [vmem:[#allocation9 + $0x318] sm:$0xff]
    %v1598 = vld [vmem:[#allocation9 + $0x320] sm:$0xff]
    %v1599 = vld [vmem:[#allocation9 + $0x328] sm:$0xff]
    %v1600 = vld [vmem:[#allocation9 + $0x330] sm:$0xff]
    %v1601 = vld [vmem:[#allocation9 + $0x338] sm:$0xff]
    %v1602 = vld [vmem:[#allocation9 + $0x340] sm:$0xff]
    %v1603 = vld [vmem:[#allocation9 + $0x348] sm:$0xff]
    %v1604 = vld [vmem:[#allocation9 + $0x350] sm:$0xff]
    %v1605 = vld [vmem:[#allocation9 + $0x358] sm:$0xff]
    %v1606 = vld [vmem:[#allocation9 + $0x360] sm:$0xff]
    %v1607 = vld [vmem:[#allocation9 + $0x368] sm:$0xff]
    %v1608 = vld [vmem:[#allocation9 + $0x370] sm:$0xff]
    %v1609 = vld [vmem:[#allocation9 + $0x378] sm:$0xff]
    %v1610 = vld [vmem:[#allocation9 + $0x380] sm:$0xff]
    %v1611 = vld [vmem:[#allocation9 + $0x388] sm:$0xff]
    %v1612 = vld [vmem:[#allocation9 + $0x390] sm:$0xff]
    %v1613 = vld [vmem:[#allocation9 + $0x398] sm:$0xff]
    %v1614 = vld [vmem:[#allocation9 + $0x3a0] sm:$0xff]
    %v1615 = vld [vmem:[#allocation9 + $0x3a8] sm:$0xff]
    %v1616 = vld [vmem:[#allocation9 + $0x3b0] sm:$0xff]
    %v1617 = vld [vmem:[#allocation9 + $0x3b8] sm:$0xff]
    %v1618 = vld [vmem:[#allocation9 + $0x3c0] sm:$0xff]
    %v1619 = vld [vmem:[#allocation9 + $0x3c8] sm:$0xff]
    %v1620 = vld [vmem:[#allocation9 + $0x3d0] sm:$0xff]
    %v1621 = vld [vmem:[#allocation9 + $0x3d8] sm:$0xff]
    %v1622 = vld [vmem:[#allocation9 + $0x3e0] sm:$0xff]
    %v1623 = vld [vmem:[#allocation9 + $0x3e8] sm:$0xff]
    %v1624 = vld [vmem:[#allocation9 + $0x3f0] sm:$0xff]
    %v1625 = vld [vmem:[#allocation9 + $0x3f8] sm:$0xff]
    %v1626 = vld [vmem:[#allocation9 + $0x400] sm:$0xff]
    %v1627 = vld [vmem:[#allocation9 + $0x408] sm:$0xff]
    %v1628 = vld [vmem:[#allocation9 + $0x410] sm:$0xff]
    %v1629 = vld [vmem:[#allocation9 + $0x418] sm:$0xff]
    %v1630 = vld [vmem:[#allocation9 + $0x420] sm:$0xff]
    %v1631 = vld [vmem:[#allocation9 + $0x428] sm:$0xff]
    %v1632 = vld [vmem:[#allocation9 + $0x430] sm:$0xff]
    %v1633 = vld [vmem:[#allocation9 + $0x438] sm:$0xff]
    %v1634 = vld [vmem:[#allocation9 + $0x440] sm:$0xff]
    %v1635 = vld [vmem:[#allocation9 + $0x448] sm:$0xff]
    %v1636 = vld [vmem:[#allocation9 + $0x450] sm:$0xff]
    %v1637 = vld [vmem:[#allocation9 + $0x458] sm:$0xff]
    %v1638 = vld [vmem:[#allocation9 + $0x460] sm:$0xff]
    %v1639 = vld [vmem:[#allocation9 + $0x468] sm:$0xff]
    %v1640 = vld [vmem:[#allocation9 + $0x470] sm:$0xff]
    %v1641 = vld [vmem:[#allocation9 + $0x478] sm:$0xff]
    %v1642 = vld [vmem:[#allocation9 + $0x480] sm:$0xff]
    %v1643 = vld [vmem:[#allocation9 + $0x488] sm:$0xff]
    %v1644 = vld [vmem:[#allocation9 + $0x490] sm:$0xff]
    %v1645 = vld [vmem:[#allocation9 + $0x498] sm:$0xff]
    %v1646 = vld [vmem:[#allocation9 + $0x4a0] sm:$0xff]
    %v1647 = vld [vmem:[#allocation9 + $0x4a8] sm:$0xff]
    %v1648 = vld [vmem:[#allocation9 + $0x4b0] sm:$0xff]
    %v1649 = vld [vmem:[#allocation9 + $0x4b8] sm:$0xff]
    %v1650 = vld [vmem:[#allocation9 + $0x4c0] sm:$0xff]
    %v1651 = vld [vmem:[#allocation9 + $0x4c8] sm:$0xff]
    %v1652 = vld [vmem:[#allocation9 + $0x4d0] sm:$0xff]
    %v1653 = vld [vmem:[#allocation9 + $0x4d8] sm:$0xff]
    %v1654 = vld [vmem:[#allocation9 + $0x4e0] sm:$0xff]
    %v1655 = vld [vmem:[#allocation9 + $0x4e8] sm:$0xff]
    %v1656 = vld [vmem:[#allocation9 + $0x4f0] sm:$0xff]
    %v1657 = vld [vmem:[#allocation9 + $0x4f8] sm:$0xff]
    %v1658 = vld [vmem:[#allocation9 + $0x500] sm:$0xff]
    %v1659 = vld [vmem:[#allocation9 + $0x508] sm:$0xff]
    %v1660 = vld [vmem:[#allocation9 + $0x510] sm:$0xff]
    %v1661 = vld [vmem:[#allocation9 + $0x518] sm:$0xff]
    %v1662 = vld [vmem:[#allocation9 + $0x520] sm:$0xff]
    %v1663 = vld [vmem:[#allocation9 + $0x528] sm:$0xff]
    %v1664 = vld [vmem:[#allocation9 + $0x530] sm:$0xff]
    %v1665 = vld [vmem:[#allocation9 + $0x538] sm:$0xff]
    %v1666 = vld [vmem:[#allocation9 + $0x540] sm:$0xff]
    %v1667 = vld [vmem:[#allocation9 + $0x548] sm:$0xff]
    %v1668 = vld [vmem:[#allocation9 + $0x550] sm:$0xff]
    %v1669 = vld [vmem:[#allocation9 + $0x558] sm:$0xff]
    %v1670 = vld [vmem:[#allocation9 + $0x560] sm:$0xff]
    %v1671 = vld [vmem:[#allocation9 + $0x568] sm:$0xff]
    %v1672 = vld [vmem:[#allocation9 + $0x570] sm:$0xff]
    %v1673 = vld [vmem:[#allocation9 + $0x578] sm:$0xff]
    %v1674 = vld [vmem:[#allocation9 + $0x580] sm:$0xff]
    %v1675 = vld [vmem:[#allocation9 + $0x588] sm:$0xff]
    %v1676 = vld [vmem:[#allocation9 + $0x590] sm:$0xff]
    %v1677 = vld [vmem:[#allocation9 + $0x598] sm:$0xff]
    %v1678 = vld [vmem:[#allocation9 + $0x5a0] sm:$0xff]
    %v1679 = vld [vmem:[#allocation9 + $0x5a8] sm:$0xff]
    %v1680 = vld [vmem:[#allocation9 + $0x5b0] sm:$0xff]
    %v1681 = vld [vmem:[#allocation9 + $0x5b8] sm:$0xff]
    %v1682 = vld [vmem:[#allocation9 + $0x5c0] sm:$0xff]
    %v1683 = vld [vmem:[#allocation9 + $0x5c8] sm:$0xff]
    %v1684 = vld [vmem:[#allocation9 + $0x5d0] sm:$0xff]
    %v1685 = vld [vmem:[#allocation9 + $0x5d8] sm:$0xff]
    %v1686 = vld [vmem:[#allocation9 + $0x5e0] sm:$0xff]
    %v1687 = vld [vmem:[#allocation9 + $0x5e8] sm:$0xff]
    %v1688 = vld [vmem:[#allocation9 + $0x5f0] sm:$0xff]
    %v1689 = vld [vmem:[#allocation9 + $0x5f8] sm:$0xff]
    %v1690 = vld [vmem:[#allocation9 + $0x600] sm:$0xff]
    %v1691 = vld [vmem:[#allocation9 + $0x608] sm:$0xff]
    %v1692 = vld [vmem:[#allocation9 + $0x610] sm:$0xff]
    %v1693 = vld [vmem:[#allocation9 + $0x618] sm:$0xff]
    %v1694 = vld [vmem:[#allocation9 + $0x620] sm:$0xff]
    %v1695 = vld [vmem:[#allocation9 + $0x628] sm:$0xff]
    %v1696 = vld [vmem:[#allocation9 + $0x630] sm:$0xff]
    %v1697 = vld [vmem:[#allocation9 + $0x638] sm:$0xff]
    %v1698 = vld [vmem:[#allocation9 + $0x640] sm:$0xff]
    %v1699 = vld [vmem:[#allocation9 + $0x648] sm:$0xff]
    %v1700 = vld [vmem:[#allocation9 + $0x650] sm:$0xff]
    %v1701 = vld [vmem:[#allocation9 + $0x658] sm:$0xff]
    %v1702 = vld [vmem:[#allocation9 + $0x660] sm:$0xff]
    %v1703 = vld [vmem:[#allocation9 + $0x668] sm:$0xff]
    %v1704 = vld [vmem:[#allocation9 + $0x670] sm:$0xff]
    %v1705 = vld [vmem:[#allocation9 + $0x678] sm:$0xff]
    %v1706 = vld [vmem:[#allocation9 + $0x680] sm:$0xff]
    %v1707 = vld [vmem:[#allocation9 + $0x688] sm:$0xff]
    %v1708 = vld [vmem:[#allocation9 + $0x690] sm:$0xff]
    %v1709 = vld [vmem:[#allocation9 + $0x698] sm:$0xff]
    %v1710 = vld [vmem:[#allocation9 + $0x6a0] sm:$0xff]
    %v1711 = vld [vmem:[#allocation9 + $0x6a8] sm:$0xff]
    %v1712 = vld [vmem:[#allocation9 + $0x6b0] sm:$0xff]
    %v1713 = vld [vmem:[#allocation9 + $0x6b8] sm:$0xff]
    %v1714 = vld [vmem:[#allocation9 + $0x6c0] sm:$0xff]
    %v1715 = vld [vmem:[#allocation9 + $0x6c8] sm:$0xff]
    %v1716 = vld [vmem:[#allocation9 + $0x6d0] sm:$0xff]
    %v1717 = vld [vmem:[#allocation9 + $0x6d8] sm:$0xff]
    %v1718 = vld [vmem:[#allocation9 + $0x6e0] sm:$0xff]
    %v1719 = vld [vmem:[#allocation9 + $0x6e8] sm:$0xff]
    %v1720 = vld [vmem:[#allocation9 + $0x6f0] sm:$0xff]
    %v1721 = vld [vmem:[#allocation9 + $0x6f8] sm:$0xff]
    %v1722 = vld [vmem:[#allocation9 + $0x700] sm:$0xff]
    %v1723 = vld [vmem:[#allocation9 + $0x708] sm:$0xff]
    %v1724 = vld [vmem:[#allocation9 + $0x710] sm:$0xff]
    %v1725 = vld [vmem:[#allocation9 + $0x718] sm:$0xff]
    %v1726 = vld [vmem:[#allocation9 + $0x720] sm:$0xff]
    %v1727 = vld [vmem:[#allocation9 + $0x728] sm:$0xff]
    %v1728 = vld [vmem:[#allocation9 + $0x730] sm:$0xff]
    %v1729 = vld [vmem:[#allocation9 + $0x738] sm:$0xff]
    %v1730 = vld [vmem:[#allocation9 + $0x740] sm:$0xff]
    %v1731 = vld [vmem:[#allocation9 + $0x748] sm:$0xff]
    %v1732 = vld [vmem:[#allocation9 + $0x750] sm:$0xff]
    %v1733 = vld [vmem:[#allocation9 + $0x758] sm:$0xff]
    %v1734 = vld [vmem:[#allocation9 + $0x760] sm:$0xff]
    %v1735 = vld [vmem:[#allocation9 + $0x768] sm:$0xff]
    %v1736 = vld [vmem:[#allocation9 + $0x770] sm:$0xff]
    %v1737 = vld [vmem:[#allocation9 + $0x778] sm:$0xff]
    %v1738 = vld [vmem:[#allocation9 + $0x780] sm:$0xff]
    %v1739 = vld [vmem:[#allocation9 + $0x788] sm:$0xff]
    %v1740 = vld [vmem:[#allocation9 + $0x790] sm:$0xff]
    %v1741 = vld [vmem:[#allocation9 + $0x798] sm:$0xff]
    %v1742 = vld [vmem:[#allocation9 + $0x7a0] sm:$0xff]
    %v1743 = vld [vmem:[#allocation9 + $0x7a8] sm:$0xff]
    %v1744 = vld [vmem:[#allocation9 + $0x7b0] sm:$0xff]
    %v1745 = vld [vmem:[#allocation9 + $0x7b8] sm:$0xff]
    %v1746 = vld [vmem:[#allocation9 + $0x7c0] sm:$0xff]
    %v1747 = vld [vmem:[#allocation9 + $0x7c8] sm:$0xff]
    %v1748 = vld [vmem:[#allocation9 + $0x7d0] sm:$0xff]
    %v1749 = vld [vmem:[#allocation9 + $0x7d8] sm:$0xff]
    %v1750 = vld [vmem:[#allocation9 + $0x7e0] sm:$0xff]
    %v1751 = vld [vmem:[#allocation9 + $0x7e8] sm:$0xff]
    %v1752 = vld [vmem:[#allocation9 + $0x7f0] sm:$0xff]
    %v1753 = vld [vmem:[#allocation9 + $0x7f8] sm:$0xff]
    %v1754 = vld [vmem:[#allocation9 + $0x800] sm:$0xff]
    %v1755 = vld [vmem:[#allocation9 + $0x808] sm:$0xff]
    %v1756 = vld [vmem:[#allocation9 + $0x810] sm:$0xff]
    %v1757 = vld [vmem:[#allocation9 + $0x818] sm:$0xff]
    %v1758 = vld [vmem:[#allocation9 + $0x820] sm:$0xff]
    %v1759 = vld [vmem:[#allocation9 + $0x828] sm:$0xff]
    %v1760 = vld [vmem:[#allocation9 + $0x830] sm:$0xff]
    %v1761 = vld [vmem:[#allocation9 + $0x838] sm:$0xff]
    %v1762 = vld [vmem:[#allocation9 + $0x840] sm:$0xff]
    %v1763 = vld [vmem:[#allocation9 + $0x848] sm:$0xff]
    %v1764 = vld [vmem:[#allocation9 + $0x850] sm:$0xff]
    %v1765 = vld [vmem:[#allocation9 + $0x858] sm:$0xff]
    %v1766 = vld [vmem:[#allocation9 + $0x860] sm:$0xff]
    %v1767 = vld [vmem:[#allocation9 + $0x868] sm:$0xff]
    %v1768 = vld [vmem:[#allocation9 + $0x870] sm:$0xff]
    %v1769 = vld [vmem:[#allocation9 + $0x878] sm:$0xff]
    %v1770 = vld [vmem:[#allocation9 + $0x880] sm:$0xff]
    %v1771 = vld [vmem:[#allocation9 + $0x888] sm:$0xff]
    %v1772 = vld [vmem:[#allocation9 + $0x890] sm:$0xff]
    %v1773 = vld [vmem:[#allocation9 + $0x898] sm:$0xff]
    %v1774 = vld [vmem:[#allocation9 + $0x8a0] sm:$0xff]
    %v1775 = vld [vmem:[#allocation9 + $0x8a8] sm:$0xff]
    %v1776 = vld [vmem:[#allocation9 + $0x8b0] sm:$0xff]
    %v1777 = vld [vmem:[#allocation9 + $0x8b8] sm:$0xff]
    %v1778 = vld [vmem:[#allocation9 + $0x8c0] sm:$0xff]
    %v1779 = vld [vmem:[#allocation9 + $0x8c8] sm:$0xff]
    %v1780 = vld [vmem:[#allocation9 + $0x8d0] sm:$0xff]
    %v1781 = vld [vmem:[#allocation9 + $0x8d8] sm:$0xff]
    %v1782 = vld [vmem:[#allocation9 + $0x8e0] sm:$0xff]
    %v1783 = vld [vmem:[#allocation9 + $0x8e8] sm:$0xff]
    %v1784 = vld [vmem:[#allocation9 + $0x8f0] sm:$0xff]
    %v1785 = vld [vmem:[#allocation9 + $0x8f8] sm:$0xff]
    %v1786 = vld [vmem:[#allocation9 + $0x900] sm:$0xff]
    %v1787 = vld [vmem:[#allocation9 + $0x908] sm:$0xff]
    %v1788 = vld [vmem:[#allocation9 + $0x910] sm:$0xff]
    %v1789 = vld [vmem:[#allocation9 + $0x918] sm:$0xff]
    %v1790 = vld [vmem:[#allocation9 + $0x920] sm:$0xff]
    %v1791 = vld [vmem:[#allocation9 + $0x928] sm:$0xff]
    %v1792 = vld [vmem:[#allocation9 + $0x930] sm:$0xff]
    %v1793 = vld [vmem:[#allocation9 + $0x938] sm:$0xff]
    %v1794 = vld [vmem:[#allocation9 + $0x940] sm:$0xff]
    %v1795 = vld [vmem:[#allocation9 + $0x948] sm:$0xff]
    %v1796 = vld [vmem:[#allocation9 + $0x950] sm:$0xff]
    %v1797 = vld [vmem:[#allocation9 + $0x958] sm:$0xff]
    %v1798 = vld [vmem:[#allocation9 + $0x960] sm:$0xff]
    %v1799 = vld [vmem:[#allocation9 + $0x968] sm:$0xff]
    %v1800 = vld [vmem:[#allocation9 + $0x970] sm:$0xff]
    %v1801 = vld [vmem:[#allocation9 + $0x978] sm:$0xff]
    %v1802 = vld [vmem:[#allocation9 + $0x980] sm:$0xff]
    %v1803 = vld [vmem:[#allocation9 + $0x988] sm:$0xff]
    %v1804 = vld [vmem:[#allocation9 + $0x990] sm:$0xff]
    %v1805 = vld [vmem:[#allocation9 + $0x998] sm:$0xff]
    %v1806 = vld [vmem:[#allocation9 + $0x9a0] sm:$0xff]
    %v1807 = vld [vmem:[#allocation9 + $0x9a8] sm:$0xff]
    %v1808 = vld [vmem:[#allocation9 + $0x9b0] sm:$0xff]
    %v1809 = vld [vmem:[#allocation9 + $0x9b8] sm:$0xff]
    %v1810 = vld [vmem:[#allocation9 + $0x9c0] sm:$0xff]
    %v1811 = vld [vmem:[#allocation9 + $0x9c8] sm:$0xff]
    %v1812 = vld [vmem:[#allocation9 + $0x9d0] sm:$0xff]
    %v1813 = vld [vmem:[#allocation9 + $0x9d8] sm:$0xff]
    %v1814 = vld [vmem:[#allocation9 + $0x9e0] sm:$0xff]
    %v1815 = vld [vmem:[#allocation9 + $0x9e8] sm:$0xff]
    %v1816 = vld [vmem:[#allocation9 + $0x9f0] sm:$0xff]
    %v1817 = vld [vmem:[#allocation9 + $0x9f8] sm:$0xff]
    %v1818 = vld [vmem:[#allocation9 + $0xa00] sm:$0xff]
    %v1819 = vld [vmem:[#allocation9 + $0xa08] sm:$0xff]
    %v1820 = vld [vmem:[#allocation9 + $0xa10] sm:$0xff]
    %v1821 = vld [vmem:[#allocation9 + $0xa18] sm:$0xff]
    %v1822 = vld [vmem:[#allocation9 + $0xa20] sm:$0xff]
    %v1823 = vld [vmem:[#allocation9 + $0xa28] sm:$0xff]
    %v1824 = vld [vmem:[#allocation9 + $0xa30] sm:$0xff]
    %v1825 = vld [vmem:[#allocation9 + $0xa38] sm:$0xff]
    %v1826 = vld [vmem:[#allocation9 + $0xa40] sm:$0xff]
    %v1827 = vld [vmem:[#allocation9 + $0xa48] sm:$0xff]
    %v1828 = vld [vmem:[#allocation9 + $0xa50] sm:$0xff]
    %v1829 = vld [vmem:[#allocation9 + $0xa58] sm:$0xff]
    %v1830 = vld [vmem:[#allocation9 + $0xa60] sm:$0xff]
    %v1831 = vld [vmem:[#allocation9 + $0xa68] sm:$0xff]
    %v1832 = vld [vmem:[#allocation9 + $0xa70] sm:$0xff]
    %v1833 = vld [vmem:[#allocation9 + $0xa78] sm:$0xff]
    %v1834 = vld [vmem:[#allocation9 + $0xa80] sm:$0xff]
    %v1835 = vld [vmem:[#allocation9 + $0xa88] sm:$0xff]
    %v1836 = vld [vmem:[#allocation9 + $0xa90] sm:$0xff]
    %v1837 = vld [vmem:[#allocation9 + $0xa98] sm:$0xff]
    %v1838 = vld [vmem:[#allocation9 + $0xaa0] sm:$0xff]
    %v1839 = vld [vmem:[#allocation9 + $0xaa8] sm:$0xff]
    %v1840 = vld [vmem:[#allocation9 + $0xab0] sm:$0xff]
    %v1841 = vld [vmem:[#allocation9 + $0xab8] sm:$0xff]
    %v1842 = vld [vmem:[#allocation9 + $0xac0] sm:$0xff]
    %v1843 = vld [vmem:[#allocation9 + $0xac8] sm:$0xff]
    %v1844 = vld [vmem:[#allocation9 + $0xad0] sm:$0xff]
    %v1845 = vld [vmem:[#allocation9 + $0xad8] sm:$0xff]
    %v1846 = vld [vmem:[#allocation9 + $0xae0] sm:$0xff]
    %v1847 = vld [vmem:[#allocation9 + $0xae8] sm:$0xff]
    %v1848 = vld [vmem:[#allocation9 + $0xaf0] sm:$0xff]
    %v1849 = vld [vmem:[#allocation9 + $0xaf8] sm:$0xff]
    %v1850 = vld [vmem:[#allocation9 + $0xb00] sm:$0xff]
    %v1851 = vld [vmem:[#allocation9 + $0xb08] sm:$0xff]
    %v1852 = vld [vmem:[#allocation9 + $0xb10] sm:$0xff]
    %v1853 = vld [vmem:[#allocation9 + $0xb18] sm:$0xff]
    %v1854 = vld [vmem:[#allocation9 + $0xb20] sm:$0xff]
    %v1855 = vld [vmem:[#allocation9 + $0xb28] sm:$0xff]
    %v1856 = vld [vmem:[#allocation9 + $0xb30] sm:$0xff]
    %v1857 = vld [vmem:[#allocation9 + $0xb38] sm:$0xff]
    %v1858 = vld [vmem:[#allocation9 + $0xb40] sm:$0xff]
    %v1859 = vld [vmem:[#allocation9 + $0xb48] sm:$0xff]
    %v1860 = vld [vmem:[#allocation9 + $0xb50] sm:$0xff]
    %v1861 = vld [vmem:[#allocation9 + $0xb58] sm:$0xff]
    %v1862 = vld [vmem:[#allocation9 + $0xb60] sm:$0xff]
    %v1863 = vld [vmem:[#allocation9 + $0xb68] sm:$0xff]
    %v1864 = vld [vmem:[#allocation9 + $0xb70] sm:$0xff]
    %v1865 = vld [vmem:[#allocation9 + $0xb78] sm:$0xff]
    %v1866 = vld [vmem:[#allocation9 + $0xb80] sm:$0xff]
    %v1867 = vld [vmem:[#allocation9 + $0xb88] sm:$0xff]
    %v1868 = vld [vmem:[#allocation9 + $0xb90] sm:$0xff]
    %v1869 = vld [vmem:[#allocation9 + $0xb98] sm:$0xff]
    %v1870 = vld [vmem:[#allocation9 + $0xba0] sm:$0xff]
    %v1871 = vld [vmem:[#allocation9 + $0xba8] sm:$0xff]
    %v1872 = vld [vmem:[#allocation9 + $0xbb0] sm:$0xff]
    %v1873 = vld [vmem:[#allocation9 + $0xbb8] sm:$0xff]
    %v1874 = vld [vmem:[#allocation9 + $0xbc0] sm:$0xff]
    %v1875 = vld [vmem:[#allocation9 + $0xbc8] sm:$0xff]
    %v1876 = vld [vmem:[#allocation9 + $0xbd0] sm:$0xff]
    %v1877 = vld [vmem:[#allocation9 + $0xbd8] sm:$0xff]
    %v1878 = vld [vmem:[#allocation9 + $0xbe0] sm:$0xff]
    %v1879 = vld [vmem:[#allocation9 + $0xbe8] sm:$0xff]
    %v1880 = vld [vmem:[#allocation9 + $0xbf0] sm:$0xff]
    %v1881 = vld [vmem:[#allocation9 + $0xbf8] sm:$0xff]
    %v1882 = vld [vmem:[#allocation9 + $0xc00] sm:$0xff]
    %v1883 = vld [vmem:[#allocation9 + $0xc08] sm:$0xff]
    %v1884 = vld [vmem:[#allocation9 + $0xc10] sm:$0xff]
    %v1885 = vld [vmem:[#allocation9 + $0xc18] sm:$0xff]
    %v1886 = vld [vmem:[#allocation9 + $0xc20] sm:$0xff]
    %v1887 = vld [vmem:[#allocation9 + $0xc28] sm:$0xff]
    %v1888 = vld [vmem:[#allocation9 + $0xc30] sm:$0xff]
    %v1889 = vld [vmem:[#allocation9 + $0xc38] sm:$0xff]
    %v1890 = vld [vmem:[#allocation9 + $0xc40] sm:$0xff]
    %v1891 = vld [vmem:[#allocation9 + $0xc48] sm:$0xff]
    %v1892 = vld [vmem:[#allocation9 + $0xc50] sm:$0xff]
    %v1893 = vld [vmem:[#allocation9 + $0xc58] sm:$0xff]
    %v1894 = vld [vmem:[#allocation9 + $0xc60] sm:$0xff]
    %v1895 = vld [vmem:[#allocation9 + $0xc68] sm:$0xff]
    %v1896 = vld [vmem:[#allocation9 + $0xc70] sm:$0xff]
    %v1897 = vld [vmem:[#allocation9 + $0xc78] sm:$0x3]
    %v1898 = vld [vmem:[#allocation9 + $0xc80] sm:$0x3]
    %v1899 = vld [vmem:[#allocation9 + $0xc88] sm:$0x3]
    %v1900 = vld [vmem:[#allocation9 + $0xc90] sm:$0x3]
    %v1901 = vld [vmem:[#allocation9 + $0xc98] sm:$0x3]
    %v1902 = vld [vmem:[#allocation9 + $0xca0] sm:$0x3]
    %v1903 = vld [vmem:[#allocation9 + $0xca8] sm:$0x3]
    %v1904 = vld [vmem:[#allocation9 + $0xcb0] sm:$0x3]
    %v1905 = vld [vmem:[#allocation9 + $0xcb8] sm:$0x3]
    %v1906 = vld [vmem:[#allocation9 + $0xcc0] sm:$0x3]
    %v1907 = vld [vmem:[#allocation9 + $0xcc8] sm:$0x3]
    %v1908 = vld [vmem:[#allocation9 + $0xcd0] sm:$0x3]
    %v1909 = vld [vmem:[#allocation9 + $0xcd8] sm:$0x3]
    %v1910 = vld [vmem:[#allocation9 + $0xce0] sm:$0x3]
    %v1911 = vld [vmem:[#allocation9 + $0xce8] sm:$0x3]
    %v1912 = vld [vmem:[#allocation9 + $0xcf0] sm:$0x3]
    %v1913 = vld [vmem:[#allocation9 + $0xcf8] sm:$0x3]
    %v1914 = vld [vmem:[#allocation9 + $0xd00] sm:$0x3]
    %v1915 = vld [vmem:[#allocation9 + $0xd08] sm:$0x3]
    %v1916 = vld [vmem:[#allocation9 + $0xd10] sm:$0x3]
    %v1917 = vld [vmem:[#allocation9 + $0xd18] sm:$0x3]
    %v1918 = vld [vmem:[#allocation10] sm:$0xff]
    %v1919 = vld [vmem:[#allocation10 + $0x8] sm:$0xff]
    %v1920 = vld [vmem:[#allocation10 + $0x10] sm:$0x1f]
    %v1924 = vperm.slane %v1918, 0
    %v1925 = vperm.slane %v1918, 1
    %v1926 = vperm.slane %v1918, 2
    %v1927 = vperm.slane %v1918, 3
    %v1928 = vperm.slane %v1918, 4
    %v1929 = vperm.slane %v1918, 5
    %v1930 = vperm.slane %v1918, 6
    %v1931 = vperm.slane %v1918, 7
    %v1932 = vperm.slane %v1919, 0
    %v1933 = vperm.slane %v1919, 1
    %v1934 = vperm.slane %v1919, 2
    %v1935 = vperm.slane %v1919, 3
    %v1936 = vperm.slane %v1919, 4
    %v1937 = vperm.slane %v1919, 5
    %v1938 = vperm.slane %v1919, 6
    %v1939 = vperm.slane %v1919, 7
    %v1940 = vperm.slane %v1920, 0
    %v1941 = vperm.slane %v1920, 1
    %v1942 = vperm.slane %v1920, 2
    %v1943 = vperm.slane %v1920, 3
    %v1944 = vperm.slane %v1920, 4
    %vm1966 = vcmask 211968
    %v1967 = vsel %vm1966, %v1495, 0
    %v1970 = vsel %vm1484, %v1897, 0
    %v1973 = vsel %vm1484, %v1898, 0
    %v1976 = vsel %vm1484, %v1899, 0
    %v1979 = vsel %vm1484, %v1900, 0
    %v1982 = vsel %vm1484, %v1901, 0
    %v1985 = vsel %vm1484, %v1902, 0
    %v1988 = vsel %vm1484, %v1903, 0
    %v1991 = vsel %vm1484, %v1904, 0
    %v1994 = vsel %vm1484, %v1905, 0
    %v1997 = vsel %vm1484, %v1906, 0
    %v2000 = vsel %vm1484, %v1907, 0
    %v2003 = vsel %vm1484, %v1908, 0
    %v2006 = vsel %vm1484, %v1909, 0
    %v2009 = vsel %vm1484, %v1910, 0
    %v2012 = vsel %vm1484, %v1911, 0
    %v2015 = vsel %vm1484, %v1912, 0
    %v2018 = vsel %vm1484, %v1913, 0
    %v2021 = vsel %vm1484, %v1914, 0
    %v2024 = vsel %vm1484, %v1915, 0
    %v2027 = vsel %vm1484, %v1916, 0
    %v2030 = vsel %vm1484, %v1917, 0
    %2032 = vmatpush.msra.mxu0 %v1813
    %2033 = vmatpush.msra.mxu0 %v1792
    %2034 = vmatpush.msra.mxu0 %v1771
    %2035 = vmatpush.msra.mxu0 %v1750
    %2036 = vmatpush.msra.mxu0 %v1729
    %2037 = vmatpush.msra.mxu0 %v1708
    %2038 = vmatpush.msra.mxu0 %v1687
    %2039 = vmatpush.msra.mxu0 %v1666
    %2040 = vmatpush.msra.mxu0 %v1645
    %2041 = vmatpush.msra.mxu0 %v1624
    %2042 = vmatpush.msra.mxu0 %v1603
    %2043 = vmatpush.msra.mxu0 %v1582
    %2044 = vmatpush.msra.mxu0 %v1561
    %2045 = vmatpush.msra.mxu0 %v1540
    %2046 = vmatpush.msra.mxu0 %v1519
    %2047 = vmatpush.msra.mxu0 %v1498
    %2048 = vmatmul.f32.gmra.mxu0 %v1497
    %v2049 = vpop.f32.mrf.mxu0
    %v2050 = vadd.f32 %v1924, %v2049
    %2051 = vdwg.mxu0
    %2052 = vmatpush.msra.mxu0 0.0
    %2053 = vmatpush.msra.mxu0 0.0
    %2054 = vmatpush.msra.mxu0 0.0
    %2055 = vmatpush.msra.mxu0 0.0
    %2056 = vmatpush.msra.mxu0 0.0
    %2057 = vmatpush.msra.mxu0 0.0
    %2058 = vmatpush.msra.mxu0 0.0
    %2059 = vmatpush.msra.mxu0 0.0
    %2060 = vmatpush.msra.mxu0 0.0
    %2061 = vmatpush.msra.mxu0 0.0
    %2062 = vmatpush.msra.mxu0 0.0
    %2063 = vmatpush.msra.mxu0 0.0
    %2064 = vmatpush.msra.mxu0 %v1970
    %2065 = vmatpush.msra.mxu0 %v1876
    %2066 = vmatpush.msra.mxu0 %v1855
    %2067 = vmatpush.msra.mxu0 %v1834
    %2068 = vmatmul.f32.gmra.mxu0 %v1967
    %v2069 = vpop.f32.mrf.mxu0
    %v2070 = vadd.f32 %v2050, %v2069
    %2071 = vdwg.mxu0
    %2072 = vmatpush.msra.mxu0 %v1814
    %2073 = vmatpush.msra.mxu0 %v1793
    %2074 = vmatpush.msra.mxu0 %v1772
    %2075 = vmatpush.msra.mxu0 %v1751
    %2076 = vmatpush.msra.mxu0 %v1730
    %2077 = vmatpush.msra.mxu0 %v1709
    %2078 = vmatpush.msra.mxu0 %v1688
    %2079 = vmatpush.msra.mxu0 %v1667
    %2080 = vmatpush.msra.mxu0 %v1646
    %2081 = vmatpush.msra.mxu0 %v1625
    %2082 = vmatpush.msra.mxu0 %v1604
    %2083 = vmatpush.msra.mxu0 %v1583
    %2084 = vmatpush.msra.mxu0 %v1562
    %2085 = vmatpush.msra.mxu0 %v1541
    %2086 = vmatpush.msra.mxu0 %v1520
    %2087 = vmatpush.msra.mxu0 %v1499
    %2088 = vmatmul.f32.gmra.mxu0 %v1497
    %v2089 = vpop.f32.mrf.mxu0
    %v2090 = vadd.f32 %v1925, %v2089
    %2091 = vdwg.mxu0
    %2092 = vmatpush.msra.mxu0 0.0
    %2093 = vmatpush.msra.mxu0 0.0
    %2094 = vmatpush.msra.mxu0 0.0
    %2095 = vmatpush.msra.mxu0 0.0
    %2096 = vmatpush.msra.mxu0 0.0
    %2097 = vmatpush.msra.mxu0 0.0
    %2098 = vmatpush.msra.mxu0 0.0
    %2099 = vmatpush.msra.mxu0 0.0
    %2100 = vmatpush.msra.mxu0 0.0
    %2101 = vmatpush.msra.mxu0 0.0
    %2102 = vmatpush.msra.mxu0 0.0
    %2103 = vmatpush.msra.mxu0 0.0
    %2104 = vmatpush.msra.mxu0 %v1973
    %2105 = vmatpush.msra.mxu0 %v1877
    %2106 = vmatpush.msra.mxu0 %v1856
    %2107 = vmatpush.msra.mxu0 %v1835
    %2108 = vmatmul.f32.gmra.mxu0 %v1967
    %v2109 = vpop.f32.mrf.mxu0
    %v2110 = vadd.f32 %v2090, %v2109
    %2111 = vdwg.mxu0
    %2112 = vmatpush.msra.mxu0 %v1815
    %2113 = vmatpush.msra.mxu0 %v1794
    %2114 = vmatpush.msra.mxu0 %v1773
    %2115 = vmatpush.msra.mxu0 %v1752
    %2116 = vmatpush.msra.mxu0 %v1731
    %2117 = vmatpush.msra.mxu0 %v1710
    %2118 = vmatpush.msra.mxu0 %v1689
    %2119 = vmatpush.msra.mxu0 %v1668
    %2120 = vmatpush.msra.mxu0 %v1647
    %2121 = vmatpush.msra.mxu0 %v1626
    %2122 = vmatpush.msra.mxu0 %v1605
    %2123 = vmatpush.msra.mxu0 %v1584
    %2124 = vmatpush.msra.mxu0 %v1563
    %2125 = vmatpush.msra.mxu0 %v1542
    %2126 = vmatpush.msra.mxu0 %v1521
    %2127 = vmatpush.msra.mxu0 %v1500
    %2128 = vmatmul.f32.gmra.mxu0 %v1497
    %v2129 = vpop.f32.mrf.mxu0
    %v2130 = vadd.f32 %v1926, %v2129
    %2131 = vdwg.mxu0
    %2132 = vmatpush.msra.mxu0 0.0
    %2133 = vmatpush.msra.mxu0 0.0
    %2134 = vmatpush.msra.mxu0 0.0
    %2135 = vmatpush.msra.mxu0 0.0
    %2136 = vmatpush.msra.mxu0 0.0
    %2137 = vmatpush.msra.mxu0 0.0
    %2138 = vmatpush.msra.mxu0 0.0
    %2139 = vmatpush.msra.mxu0 0.0
    %2140 = vmatpush.msra.mxu0 0.0
    %2141 = vmatpush.msra.mxu0 0.0
    %2142 = vmatpush.msra.mxu0 0.0
    %2143 = vmatpush.msra.mxu0 0.0
    %2144 = vmatpush.msra.mxu0 %v1976
    %2145 = vmatpush.msra.mxu0 %v1878
    %2146 = vmatpush.msra.mxu0 %v1857
    %2147 = vmatpush.msra.mxu0 %v1836
    %2148 = vmatmul.f32.gmra.mxu0 %v1967
    %v2149 = vpop.f32.mrf.mxu0
    %v2150 = vadd.f32 %v2130, %v2149
    %2151 = vdwg.mxu0
    %2152 = vmatpush.msra.mxu0 %v1816
    %2153 = vmatpush.msra.mxu0 %v1795
    %2154 = vmatpush.msra.mxu0 %v1774
    %2155 = vmatpush.msra.mxu0 %v1753
    %2156 = vmatpush.msra.mxu0 %v1732
    %2157 = vmatpush.msra.mxu0 %v1711
    %2158 = vmatpush.msra.mxu0 %v1690
    %2159 = vmatpush.msra.mxu0 %v1669
    %2160 = vmatpush.msra.mxu0 %v1648
    %2161 = vmatpush.msra.mxu0 %v1627
    %2162 = vmatpush.msra.mxu0 %v1606
    %2163 = vmatpush.msra.mxu0 %v1585
    %2164 = vmatpush.msra.mxu0 %v1564
    %2165 = vmatpush.msra.mxu0 %v1543
    %2166 = vmatpush.msra.mxu0 %v1522
    %2167 = vmatpush.msra.mxu0 %v1501
    %2168 = vmatmul.f32.gmra.mxu0 %v1497
    %v2169 = vpop.f32.mrf.mxu0
    %v2170 = vadd.f32 %v1927, %v2169
    %2171 = vdwg.mxu0
    %2172 = vmatpush.msra.mxu0 0.0
    %2173 = vmatpush.msra.mxu0 0.0
    %2174 = vmatpush.msra.mxu0 0.0
    %2175 = vmatpush.msra.mxu0 0.0
    %2176 = vmatpush.msra.mxu0 0.0
    %2177 = vmatpush.msra.mxu0 0.0
    %2178 = vmatpush.msra.mxu0 0.0
    %2179 = vmatpush.msra.mxu0 0.0
    %2180 = vmatpush.msra.mxu0 0.0
    %2181 = vmatpush.msra.mxu0 0.0
    %2182 = vmatpush.msra.mxu0 0.0
    %2183 = vmatpush.msra.mxu0 0.0
    %2184 = vmatpush.msra.mxu0 %v1979
    %2185 = vmatpush.msra.mxu0 %v1879
    %2186 = vmatpush.msra.mxu0 %v1858
    %2187 = vmatpush.msra.mxu0 %v1837
    %2188 = vmatmul.f32.gmra.mxu0 %v1967
    %v2189 = vpop.f32.mrf.mxu0
    %v2190 = vadd.f32 %v2170, %v2189
    %2191 = vdwg.mxu0
    %2192 = vmatpush.msra.mxu0 %v1817
    %2193 = vmatpush.msra.mxu0 %v1796
    %2194 = vmatpush.msra.mxu0 %v1775
    %2195 = vmatpush.msra.mxu0 %v1754
    %2196 = vmatpush.msra.mxu0 %v1733
    %2197 = vmatpush.msra.mxu0 %v1712
    %2198 = vmatpush.msra.mxu0 %v1691
    %2199 = vmatpush.msra.mxu0 %v1670
    %2200 = vmatpush.msra.mxu0 %v1649
    %2201 = vmatpush.msra.mxu0 %v1628
    %2202 = vmatpush.msra.mxu0 %v1607
    %2203 = vmatpush.msra.mxu0 %v1586
    %2204 = vmatpush.msra.mxu0 %v1565
    %2205 = vmatpush.msra.mxu0 %v1544
    %2206 = vmatpush.msra.mxu0 %v1523
    %2207 = vmatpush.msra.mxu0 %v1502
    %2208 = vmatmul.f32.gmra.mxu0 %v1497
    %v2209 = vpop.f32.mrf.mxu0
    %v2210 = vadd.f32 %v1928, %v2209
    %2211 = vdwg.mxu0
    %2212 = vmatpush.msra.mxu0 0.0
    %2213 = vmatpush.msra.mxu0 0.0
    %2214 = vmatpush.msra.mxu0 0.0
    %2215 = vmatpush.msra.mxu0 0.0
    %2216 = vmatpush.msra.mxu0 0.0
    %2217 = vmatpush.msra.mxu0 0.0
    %2218 = vmatpush.msra.mxu0 0.0
    %2219 = vmatpush.msra.mxu0 0.0
    %2220 = vmatpush.msra.mxu0 0.0
    %2221 = vmatpush.msra.mxu0 0.0
    %2222 = vmatpush.msra.mxu0 0.0
    %2223 = vmatpush.msra.mxu0 0.0
    %2224 = vmatpush.msra.mxu0 %v1982
    %2225 = vmatpush.msra.mxu0 %v1880
    %2226 = vmatpush.msra.mxu0 %v1859
    %2227 = vmatpush.msra.mxu0 %v1838
    %2228 = vmatmul.f32.gmra.mxu0 %v1967
    %v2229 = vpop.f32.mrf.mxu0
    %v2230 = vadd.f32 %v2210, %v2229
    %2231 = vdwg.mxu0
    %2232 = vmatpush.msra.mxu0 %v1818
    %2233 = vmatpush.msra.mxu0 %v1797
    %2234 = vmatpush.msra.mxu0 %v1776
    %2235 = vmatpush.msra.mxu0 %v1755
    %2236 = vmatpush.msra.mxu0 %v1734
    %2237 = vmatpush.msra.mxu0 %v1713
    %2238 = vmatpush.msra.mxu0 %v1692
    %2239 = vmatpush.msra.mxu0 %v1671
    %2240 = vmatpush.msra.mxu0 %v1650
    %2241 = vmatpush.msra.mxu0 %v1629
    %2242 = vmatpush.msra.mxu0 %v1608
    %2243 = vmatpush.msra.mxu0 %v1587
    %2244 = vmatpush.msra.mxu0 %v1566
    %2245 = vmatpush.msra.mxu0 %v1545
    %2246 = vmatpush.msra.mxu0 %v1524
    %2247 = vmatpush.msra.mxu0 %v1503
    %2248 = vmatmul.f32.gmra.mxu0 %v1497
    %v2249 = vpop.f32.mrf.mxu0
    %v2250 = vadd.f32 %v1929, %v2249
    %2251 = vdwg.mxu0
    %2252 = vmatpush.msra.mxu0 0.0
    %2253 = vmatpush.msra.mxu0 0.0
    %2254 = vmatpush.msra.mxu0 0.0
    %2255 = vmatpush.msra.mxu0 0.0
    %2256 = vmatpush.msra.mxu0 0.0
    %2257 = vmatpush.msra.mxu0 0.0
    %2258 = vmatpush.msra.mxu0 0.0
    %2259 = vmatpush.msra.mxu0 0.0
    %2260 = vmatpush.msra.mxu0 0.0
    %2261 = vmatpush.msra.mxu0 0.0
    %2262 = vmatpush.msra.mxu0 0.0
    %2263 = vmatpush.msra.mxu0 0.0
    %2264 = vmatpush.msra.mxu0 %v1985
    %2265 = vmatpush.msra.mxu0 %v1881
    %2266 = vmatpush.msra.mxu0 %v1860
    %2267 = vmatpush.msra.mxu0 %v1839
    %2268 = vmatmul.f32.gmra.mxu0 %v1967
    %v2269 = vpop.f32.mrf.mxu0
    %v2270 = vadd.f32 %v2250, %v2269
    %2271 = vdwg.mxu0
    %2272 = vmatpush.msra.mxu0 %v1819
    %2273 = vmatpush.msra.mxu0 %v1798
    %2274 = vmatpush.msra.mxu0 %v1777
    %2275 = vmatpush.msra.mxu0 %v1756
    %2276 = vmatpush.msra.mxu0 %v1735
    %2277 = vmatpush.msra.mxu0 %v1714
    %2278 = vmatpush.msra.mxu0 %v1693
    %2279 = vmatpush.msra.mxu0 %v1672
    %2280 = vmatpush.msra.mxu0 %v1651
    %2281 = vmatpush.msra.mxu0 %v1630
    %2282 = vmatpush.msra.mxu0 %v1609
    %2283 = vmatpush.msra.mxu0 %v1588
    %2284 = vmatpush.msra.mxu0 %v1567
    %2285 = vmatpush.msra.mxu0 %v1546
    %2286 = vmatpush.msra.mxu0 %v1525
    %2287 = vmatpush.msra.mxu0 %v1504
    %2288 = vmatmul.f32.gmra.mxu0 %v1497
    %v2289 = vpop.f32.mrf.mxu0
    %v2290 = vadd.f32 %v1930, %v2289
    %2291 = vdwg.mxu0
    %2292 = vmatpush.msra.mxu0 0.0
    %2293 = vmatpush.msra.mxu0 0.0
    %2294 = vmatpush.msra.mxu0 0.0
    %2295 = vmatpush.msra.mxu0 0.0
    %2296 = vmatpush.msra.mxu0 0.0
    %2297 = vmatpush.msra.mxu0 0.0
    %2298 = vmatpush.msra.mxu0 0.0
    %2299 = vmatpush.msra.mxu0 0.0
    %2300 = vmatpush.msra.mxu0 0.0
    %2301 = vmatpush.msra.mxu0 0.0
    %2302 = vmatpush.msra.mxu0 0.0
    %2303 = vmatpush.msra.mxu0 0.0
    %2304 = vmatpush.msra.mxu0 %v1988
    %2305 = vmatpush.msra.mxu0 %v1882
    %2306 = vmatpush.msra.mxu0 %v1861
    %2307 = vmatpush.msra.mxu0 %v1840
    %2308 = vmatmul.f32.gmra.mxu0 %v1967
    %v2309 = vpop.f32.mrf.mxu0
    %v2310 = vadd.f32 %v2290, %v2309
    %2311 = vdwg.mxu0
    %2312 = vmatpush.msra.mxu0 %v1820
    %2313 = vmatpush.msra.mxu0 %v1799
    %2314 = vmatpush.msra.mxu0 %v1778
    %2315 = vmatpush.msra.mxu0 %v1757
    %2316 = vmatpush.msra.mxu0 %v1736
    %2317 = vmatpush.msra.mxu0 %v1715
    %2318 = vmatpush.msra.mxu0 %v1694
    %2319 = vmatpush.msra.mxu0 %v1673
    %2320 = vmatpush.msra.mxu0 %v1652
    %2321 = vmatpush.msra.mxu0 %v1631
    %2322 = vmatpush.msra.mxu0 %v1610
    %2323 = vmatpush.msra.mxu0 %v1589
    %2324 = vmatpush.msra.mxu0 %v1568
    %2325 = vmatpush.msra.mxu0 %v1547
    %2326 = vmatpush.msra.mxu0 %v1526
    %2327 = vmatpush.msra.mxu0 %v1505
    %2328 = vmatmul.f32.gmra.mxu0 %v1497
    %v2329 = vpop.f32.mrf.mxu0
    %v2330 = vadd.f32 %v1931, %v2329
    %2331 = vdwg.mxu0
    %2332 = vmatpush.msra.mxu0 0.0
    %2333 = vmatpush.msra.mxu0 0.0
    %2334 = vmatpush.msra.mxu0 0.0
    %2335 = vmatpush.msra.mxu0 0.0
    %2336 = vmatpush.msra.mxu0 0.0
    %2337 = vmatpush.msra.mxu0 0.0
    %2338 = vmatpush.msra.mxu0 0.0
    %2339 = vmatpush.msra.mxu0 0.0
    %2340 = vmatpush.msra.mxu0 0.0
    %2341 = vmatpush.msra.mxu0 0.0
    %2342 = vmatpush.msra.mxu0 0.0
    %2343 = vmatpush.msra.mxu0 0.0
    %2344 = vmatpush.msra.mxu0 %v1991
    %2345 = vmatpush.msra.mxu0 %v1883
    %2346 = vmatpush.msra.mxu0 %v1862
    %2347 = vmatpush.msra.mxu0 %v1841
    %2348 = vmatmul.f32.gmra.mxu0 %v1967
    %v2349 = vpop.f32.mrf.mxu0
    %v2350 = vadd.f32 %v2330, %v2349
    %2351 = vdwg.mxu0
    %2352 = vmatpush.msra.mxu0 %v1821
    %2353 = vmatpush.msra.mxu0 %v1800
    %2354 = vmatpush.msra.mxu0 %v1779
    %2355 = vmatpush.msra.mxu0 %v1758
    %2356 = vmatpush.msra.mxu0 %v1737
    %2357 = vmatpush.msra.mxu0 %v1716
    %2358 = vmatpush.msra.mxu0 %v1695
    %2359 = vmatpush.msra.mxu0 %v1674
    %2360 = vmatpush.msra.mxu0 %v1653
    %2361 = vmatpush.msra.mxu0 %v1632
    %2362 = vmatpush.msra.mxu0 %v1611
    %2363 = vmatpush.msra.mxu0 %v1590
    %2364 = vmatpush.msra.mxu0 %v1569
    %2365 = vmatpush.msra.mxu0 %v1548
    %2366 = vmatpush.msra.mxu0 %v1527
    %2367 = vmatpush.msra.mxu0 %v1506
    %2368 = vmatmul.f32.gmra.mxu0 %v1497
    %v2369 = vpop.f32.mrf.mxu0
    %v2370 = vadd.f32 %v1932, %v2369
    %2371 = vdwg.mxu0
    %2372 = vmatpush.msra.mxu0 0.0
    %2373 = vmatpush.msra.mxu0 0.0
    %2374 = vmatpush.msra.mxu0 0.0
    %2375 = vmatpush.msra.mxu0 0.0
    %2376 = vmatpush.msra.mxu0 0.0
    %2377 = vmatpush.msra.mxu0 0.0
    %2378 = vmatpush.msra.mxu0 0.0
    %2379 = vmatpush.msra.mxu0 0.0
    %2380 = vmatpush.msra.mxu0 0.0
    %2381 = vmatpush.msra.mxu0 0.0
    %2382 = vmatpush.msra.mxu0 0.0
    %2383 = vmatpush.msra.mxu0 0.0
    %2384 = vmatpush.msra.mxu0 %v1994
    %2385 = vmatpush.msra.mxu0 %v1884
    %2386 = vmatpush.msra.mxu0 %v1863
    %2387 = vmatpush.msra.mxu0 %v1842
    %2388 = vmatmul.f32.gmra.mxu0 %v1967
    %v2389 = vpop.f32.mrf.mxu0
    %v2390 = vadd.f32 %v2370, %v2389
    %2391 = vdwg.mxu0
    %2392 = vmatpush.msra.mxu0 %v1822
    %2393 = vmatpush.msra.mxu0 %v1801
    %2394 = vmatpush.msra.mxu0 %v1780
    %2395 = vmatpush.msra.mxu0 %v1759
    %2396 = vmatpush.msra.mxu0 %v1738
    %2397 = vmatpush.msra.mxu0 %v1717
    %2398 = vmatpush.msra.mxu0 %v1696
    %2399 = vmatpush.msra.mxu0 %v1675
    %2400 = vmatpush.msra.mxu0 %v1654
    %2401 = vmatpush.msra.mxu0 %v1633
    %2402 = vmatpush.msra.mxu0 %v1612
    %2403 = vmatpush.msra.mxu0 %v1591
    %2404 = vmatpush.msra.mxu0 %v1570
    %2405 = vmatpush.msra.mxu0 %v1549
    %2406 = vmatpush.msra.mxu0 %v1528
    %2407 = vmatpush.msra.mxu0 %v1507
    %2408 = vmatmul.f32.gmra.mxu0 %v1497
    %v2409 = vpop.f32.mrf.mxu0
    %v2410 = vadd.f32 %v1933, %v2409
    %2411 = vdwg.mxu0
    %2412 = vmatpush.msra.mxu0 0.0
    %2413 = vmatpush.msra.mxu0 0.0
    %2414 = vmatpush.msra.mxu0 0.0
    %2415 = vmatpush.msra.mxu0 0.0
    %2416 = vmatpush.msra.mxu0 0.0
    %2417 = vmatpush.msra.mxu0 0.0
    %2418 = vmatpush.msra.mxu0 0.0
    %2419 = vmatpush.msra.mxu0 0.0
    %2420 = vmatpush.msra.mxu0 0.0
    %2421 = vmatpush.msra.mxu0 0.0
    %2422 = vmatpush.msra.mxu0 0.0
    %2423 = vmatpush.msra.mxu0 0.0
    %2424 = vmatpush.msra.mxu0 %v1997
    %2425 = vmatpush.msra.mxu0 %v1885
    %2426 = vmatpush.msra.mxu0 %v1864
    %2427 = vmatpush.msra.mxu0 %v1843
    %2428 = vmatmul.f32.gmra.mxu0 %v1967
    %v2429 = vpop.f32.mrf.mxu0
    %v2430 = vadd.f32 %v2410, %v2429
    %2431 = vdwg.mxu0
    %2432 = vmatpush.msra.mxu0 %v1823
    %2433 = vmatpush.msra.mxu0 %v1802
    %2434 = vmatpush.msra.mxu0 %v1781
    %2435 = vmatpush.msra.mxu0 %v1760
    %2436 = vmatpush.msra.mxu0 %v1739
    %2437 = vmatpush.msra.mxu0 %v1718
    %2438 = vmatpush.msra.mxu0 %v1697
    %2439 = vmatpush.msra.mxu0 %v1676
    %2440 = vmatpush.msra.mxu0 %v1655
    %2441 = vmatpush.msra.mxu0 %v1634
    %2442 = vmatpush.msra.mxu0 %v1613
    %2443 = vmatpush.msra.mxu0 %v1592
    %2444 = vmatpush.msra.mxu0 %v1571
    %2445 = vmatpush.msra.mxu0 %v1550
    %2446 = vmatpush.msra.mxu0 %v1529
    %2447 = vmatpush.msra.mxu0 %v1508
    %2448 = vmatmul.f32.gmra.mxu0 %v1497
    %v2449 = vpop.f32.mrf.mxu0
    %v2450 = vadd.f32 %v1934, %v2449
    %2451 = vdwg.mxu0
    %2452 = vmatpush.msra.mxu0 0.0
    %2453 = vmatpush.msra.mxu0 0.0
    %2454 = vmatpush.msra.mxu0 0.0
    %2455 = vmatpush.msra.mxu0 0.0
    %2456 = vmatpush.msra.mxu0 0.0
    %2457 = vmatpush.msra.mxu0 0.0
    %2458 = vmatpush.msra.mxu0 0.0
    %2459 = vmatpush.msra.mxu0 0.0
    %2460 = vmatpush.msra.mxu0 0.0
    %2461 = vmatpush.msra.mxu0 0.0
    %2462 = vmatpush.msra.mxu0 0.0
    %2463 = vmatpush.msra.mxu0 0.0
    %2464 = vmatpush.msra.mxu0 %v2000
    %2465 = vmatpush.msra.mxu0 %v1886
    %2466 = vmatpush.msra.mxu0 %v1865
    %2467 = vmatpush.msra.mxu0 %v1844
    %2468 = vmatmul.f32.gmra.mxu0 %v1967
    %v2469 = vpop.f32.mrf.mxu0
    %v2470 = vadd.f32 %v2450, %v2469
    %2471 = vdwg.mxu0
    %2472 = vmatpush.msra.mxu0 %v1824
    %2473 = vmatpush.msra.mxu0 %v1803
    %2474 = vmatpush.msra.mxu0 %v1782
    %2475 = vmatpush.msra.mxu0 %v1761
    %2476 = vmatpush.msra.mxu0 %v1740
    %2477 = vmatpush.msra.mxu0 %v1719
    %2478 = vmatpush.msra.mxu0 %v1698
    %2479 = vmatpush.msra.mxu0 %v1677
    %2480 = vmatpush.msra.mxu0 %v1656
    %2481 = vmatpush.msra.mxu0 %v1635
    %2482 = vmatpush.msra.mxu0 %v1614
    %2483 = vmatpush.msra.mxu0 %v1593
    %2484 = vmatpush.msra.mxu0 %v1572
    %2485 = vmatpush.msra.mxu0 %v1551
    %2486 = vmatpush.msra.mxu0 %v1530
    %2487 = vmatpush.msra.mxu0 %v1509
    %2488 = vmatmul.f32.gmra.mxu0 %v1497
    %v2489 = vpop.f32.mrf.mxu0
    %v2490 = vadd.f32 %v1935, %v2489
    %2491 = vdwg.mxu0
    %2492 = vmatpush.msra.mxu0 0.0
    %2493 = vmatpush.msra.mxu0 0.0
    %2494 = vmatpush.msra.mxu0 0.0
    %2495 = vmatpush.msra.mxu0 0.0
    %2496 = vmatpush.msra.mxu0 0.0
    %2497 = vmatpush.msra.mxu0 0.0
    %2498 = vmatpush.msra.mxu0 0.0
    %2499 = vmatpush.msra.mxu0 0.0
    %2500 = vmatpush.msra.mxu0 0.0
    %2501 = vmatpush.msra.mxu0 0.0
    %2502 = vmatpush.msra.mxu0 0.0
    %2503 = vmatpush.msra.mxu0 0.0
    %2504 = vmatpush.msra.mxu0 %v2003
    %2505 = vmatpush.msra.mxu0 %v1887
    %2506 = vmatpush.msra.mxu0 %v1866
    %2507 = vmatpush.msra.mxu0 %v1845
    %2508 = vmatmul.f32.gmra.mxu0 %v1967
    %v2509 = vpop.f32.mrf.mxu0
    %v2510 = vadd.f32 %v2490, %v2509
    %2511 = vdwg.mxu0
    %2512 = vmatpush.msra.mxu0 %v1825
    %2513 = vmatpush.msra.mxu0 %v1804
    %2514 = vmatpush.msra.mxu0 %v1783
    %2515 = vmatpush.msra.mxu0 %v1762
    %2516 = vmatpush.msra.mxu0 %v1741
    %2517 = vmatpush.msra.mxu0 %v1720
    %2518 = vmatpush.msra.mxu0 %v1699
    %2519 = vmatpush.msra.mxu0 %v1678
    %2520 = vmatpush.msra.mxu0 %v1657
    %2521 = vmatpush.msra.mxu0 %v1636
    %2522 = vmatpush.msra.mxu0 %v1615
    %2523 = vmatpush.msra.mxu0 %v1594
    %2524 = vmatpush.msra.mxu0 %v1573
    %2525 = vmatpush.msra.mxu0 %v1552
    %2526 = vmatpush.msra.mxu0 %v1531
    %2527 = vmatpush.msra.mxu0 %v1510
    %2528 = vmatmul.f32.gmra.mxu0 %v1497
    %v2529 = vpop.f32.mrf.mxu0
    %v2530 = vadd.f32 %v1936, %v2529
    %2531 = vdwg.mxu0
    %2532 = vmatpush.msra.mxu0 0.0
    %2533 = vmatpush.msra.mxu0 0.0
    %2534 = vmatpush.msra.mxu0 0.0
    %2535 = vmatpush.msra.mxu0 0.0
    %2536 = vmatpush.msra.mxu0 0.0
    %2537 = vmatpush.msra.mxu0 0.0
    %2538 = vmatpush.msra.mxu0 0.0
    %2539 = vmatpush.msra.mxu0 0.0
    %2540 = vmatpush.msra.mxu0 0.0
    %2541 = vmatpush.msra.mxu0 0.0
    %2542 = vmatpush.msra.mxu0 0.0
    %2543 = vmatpush.msra.mxu0 0.0
    %2544 = vmatpush.msra.mxu0 %v2006
    %2545 = vmatpush.msra.mxu0 %v1888
    %2546 = vmatpush.msra.mxu0 %v1867
    %2547 = vmatpush.msra.mxu0 %v1846
    %2548 = vmatmul.f32.gmra.mxu0 %v1967
    %v2549 = vpop.f32.mrf.mxu0
    %v2550 = vadd.f32 %v2530, %v2549
    %2551 = vdwg.mxu0
    %2552 = vmatpush.msra.mxu0 %v1826
    %2553 = vmatpush.msra.mxu0 %v1805
    %2554 = vmatpush.msra.mxu0 %v1784
    %2555 = vmatpush.msra.mxu0 %v1763
    %2556 = vmatpush.msra.mxu0 %v1742
    %2557 = vmatpush.msra.mxu0 %v1721
    %2558 = vmatpush.msra.mxu0 %v1700
    %2559 = vmatpush.msra.mxu0 %v1679
    %2560 = vmatpush.msra.mxu0 %v1658
    %2561 = vmatpush.msra.mxu0 %v1637
    %2562 = vmatpush.msra.mxu0 %v1616
    %2563 = vmatpush.msra.mxu0 %v1595
    %2564 = vmatpush.msra.mxu0 %v1574
    %2565 = vmatpush.msra.mxu0 %v1553
    %2566 = vmatpush.msra.mxu0 %v1532
    %2567 = vmatpush.msra.mxu0 %v1511
    %2568 = vmatmul.f32.gmra.mxu0 %v1497
    %v2569 = vpop.f32.mrf.mxu0
    %v2570 = vadd.f32 %v1937, %v2569
    %2571 = vdwg.mxu0
    %2572 = vmatpush.msra.mxu0 0.0
    %2573 = vmatpush.msra.mxu0 0.0
    %2574 = vmatpush.msra.mxu0 0.0
    %2575 = vmatpush.msra.mxu0 0.0
    %2576 = vmatpush.msra.mxu0 0.0
    %2577 = vmatpush.msra.mxu0 0.0
    %2578 = vmatpush.msra.mxu0 0.0
    %2579 = vmatpush.msra.mxu0 0.0
    %2580 = vmatpush.msra.mxu0 0.0
    %2581 = vmatpush.msra.mxu0 0.0
    %2582 = vmatpush.msra.mxu0 0.0
    %2583 = vmatpush.msra.mxu0 0.0
    %2584 = vmatpush.msra.mxu0 %v2009
    %2585 = vmatpush.msra.mxu0 %v1889
    %2586 = vmatpush.msra.mxu0 %v1868
    %2587 = vmatpush.msra.mxu0 %v1847
    %2588 = vmatmul.f32.gmra.mxu0 %v1967
    %v2589 = vpop.f32.mrf.mxu0
    %v2590 = vadd.f32 %v2570, %v2589
    %2591 = vdwg.mxu0
    %2592 = vmatpush.msra.mxu0 %v1827
    %2593 = vmatpush.msra.mxu0 %v1806
    %2594 = vmatpush.msra.mxu0 %v1785
    %2595 = vmatpush.msra.mxu0 %v1764
    %2596 = vmatpush.msra.mxu0 %v1743
    %2597 = vmatpush.msra.mxu0 %v1722
    %2598 = vmatpush.msra.mxu0 %v1701
    %2599 = vmatpush.msra.mxu0 %v1680
    %2600 = vmatpush.msra.mxu0 %v1659
    %2601 = vmatpush.msra.mxu0 %v1638
    %2602 = vmatpush.msra.mxu0 %v1617
    %2603 = vmatpush.msra.mxu0 %v1596
    %2604 = vmatpush.msra.mxu0 %v1575
    %2605 = vmatpush.msra.mxu0 %v1554
    %2606 = vmatpush.msra.mxu0 %v1533
    %2607 = vmatpush.msra.mxu0 %v1512
    %2608 = vmatmul.f32.gmra.mxu0 %v1497
    %v2609 = vpop.f32.mrf.mxu0
    %v2610 = vadd.f32 %v1938, %v2609
    %2611 = vdwg.mxu0
    %2612 = vmatpush.msra.mxu0 0.0
    %2613 = vmatpush.msra.mxu0 0.0
    %2614 = vmatpush.msra.mxu0 0.0
    %2615 = vmatpush.msra.mxu0 0.0
    %2616 = vmatpush.msra.mxu0 0.0
    %2617 = vmatpush.msra.mxu0 0.0
    %2618 = vmatpush.msra.mxu0 0.0
    %2619 = vmatpush.msra.mxu0 0.0
    %2620 = vmatpush.msra.mxu0 0.0
    %2621 = vmatpush.msra.mxu0 0.0
    %2622 = vmatpush.msra.mxu0 0.0
    %2623 = vmatpush.msra.mxu0 0.0
    %2624 = vmatpush.msra.mxu0 %v2012
    %2625 = vmatpush.msra.mxu0 %v1890
    %2626 = vmatpush.msra.mxu0 %v1869
    %2627 = vmatpush.msra.mxu0 %v1848
    %2628 = vmatmul.f32.gmra.mxu0 %v1967
    %v2629 = vpop.f32.mrf.mxu0
    %v2630 = vadd.f32 %v2610, %v2629
    %2631 = vdwg.mxu0
    %2632 = vmatpush.msra.mxu0 %v1828
    %2633 = vmatpush.msra.mxu0 %v1807
    %2634 = vmatpush.msra.mxu0 %v1786
    %2635 = vmatpush.msra.mxu0 %v1765
    %2636 = vmatpush.msra.mxu0 %v1744
    %2637 = vmatpush.msra.mxu0 %v1723
    %2638 = vmatpush.msra.mxu0 %v1702
    %2639 = vmatpush.msra.mxu0 %v1681
    %2640 = vmatpush.msra.mxu0 %v1660
    %2641 = vmatpush.msra.mxu0 %v1639
    %2642 = vmatpush.msra.mxu0 %v1618
    %2643 = vmatpush.msra.mxu0 %v1597
    %2644 = vmatpush.msra.mxu0 %v1576
    %2645 = vmatpush.msra.mxu0 %v1555
    %2646 = vmatpush.msra.mxu0 %v1534
    %2647 = vmatpush.msra.mxu0 %v1513
    %2648 = vmatmul.f32.gmra.mxu0 %v1497
    %v2649 = vpop.f32.mrf.mxu0
    %v2650 = vadd.f32 %v1939, %v2649
    %2651 = vdwg.mxu0
    %2652 = vmatpush.msra.mxu0 0.0
    %2653 = vmatpush.msra.mxu0 0.0
    %2654 = vmatpush.msra.mxu0 0.0
    %2655 = vmatpush.msra.mxu0 0.0
    %2656 = vmatpush.msra.mxu0 0.0
    %2657 = vmatpush.msra.mxu0 0.0
    %2658 = vmatpush.msra.mxu0 0.0
    %2659 = vmatpush.msra.mxu0 0.0
    %2660 = vmatpush.msra.mxu0 0.0
    %2661 = vmatpush.msra.mxu0 0.0
    %2662 = vmatpush.msra.mxu0 0.0
    %2663 = vmatpush.msra.mxu0 0.0
    %2664 = vmatpush.msra.mxu0 %v2015
    %2665 = vmatpush.msra.mxu0 %v1891
    %2666 = vmatpush.msra.mxu0 %v1870
    %2667 = vmatpush.msra.mxu0 %v1849
    %2668 = vmatmul.f32.gmra.mxu0 %v1967
    %v2669 = vpop.f32.mrf.mxu0
    %v2670 = vadd.f32 %v2650, %v2669
    %2671 = vdwg.mxu0
    %2672 = vmatpush.msra.mxu0 %v1829
    %2673 = vmatpush.msra.mxu0 %v1808
    %2674 = vmatpush.msra.mxu0 %v1787
    %2675 = vmatpush.msra.mxu0 %v1766
    %2676 = vmatpush.msra.mxu0 %v1745
    %2677 = vmatpush.msra.mxu0 %v1724
    %2678 = vmatpush.msra.mxu0 %v1703
    %2679 = vmatpush.msra.mxu0 %v1682
    %2680 = vmatpush.msra.mxu0 %v1661
    %2681 = vmatpush.msra.mxu0 %v1640
    %2682 = vmatpush.msra.mxu0 %v1619
    %2683 = vmatpush.msra.mxu0 %v1598
    %2684 = vmatpush.msra.mxu0 %v1577
    %2685 = vmatpush.msra.mxu0 %v1556
    %2686 = vmatpush.msra.mxu0 %v1535
    %2687 = vmatpush.msra.mxu0 %v1514
    %2688 = vmatmul.f32.gmra.mxu0 %v1497
    %v2689 = vpop.f32.mrf.mxu0
    %v2690 = vadd.f32 %v1940, %v2689
    %2691 = vdwg.mxu0
    %2692 = vmatpush.msra.mxu0 0.0
    %2693 = vmatpush.msra.mxu0 0.0
    %2694 = vmatpush.msra.mxu0 0.0
    %2695 = vmatpush.msra.mxu0 0.0
    %2696 = vmatpush.msra.mxu0 0.0
    %2697 = vmatpush.msra.mxu0 0.0
    %2698 = vmatpush.msra.mxu0 0.0
    %2699 = vmatpush.msra.mxu0 0.0
    %2700 = vmatpush.msra.mxu0 0.0
    %2701 = vmatpush.msra.mxu0 0.0
    %2702 = vmatpush.msra.mxu0 0.0
    %2703 = vmatpush.msra.mxu0 0.0
    %2704 = vmatpush.msra.mxu0 %v2018
    %2705 = vmatpush.msra.mxu0 %v1892
    %2706 = vmatpush.msra.mxu0 %v1871
    %2707 = vmatpush.msra.mxu0 %v1850
    %2708 = vmatmul.f32.gmra.mxu0 %v1967
    %v2709 = vpop.f32.mrf.mxu0
    %v2710 = vadd.f32 %v2690, %v2709
    %2711 = vdwg.mxu0
    %2712 = vmatpush.msra.mxu0 %v1830
    %2713 = vmatpush.msra.mxu0 %v1809
    %2714 = vmatpush.msra.mxu0 %v1788
    %2715 = vmatpush.msra.mxu0 %v1767
    %2716 = vmatpush.msra.mxu0 %v1746
    %2717 = vmatpush.msra.mxu0 %v1725
    %2718 = vmatpush.msra.mxu0 %v1704
    %2719 = vmatpush.msra.mxu0 %v1683
    %2720 = vmatpush.msra.mxu0 %v1662
    %2721 = vmatpush.msra.mxu0 %v1641
    %2722 = vmatpush.msra.mxu0 %v1620
    %2723 = vmatpush.msra.mxu0 %v1599
    %2724 = vmatpush.msra.mxu0 %v1578
    %2725 = vmatpush.msra.mxu0 %v1557
    %2726 = vmatpush.msra.mxu0 %v1536
    %2727 = vmatpush.msra.mxu0 %v1515
    %2728 = vmatmul.f32.gmra.mxu0 %v1497
    %v2729 = vpop.f32.mrf.mxu0
    %v2730 = vadd.f32 %v1941, %v2729
    %2731 = vdwg.mxu0
    %2732 = vmatpush.msra.mxu0 0.0
    %2733 = vmatpush.msra.mxu0 0.0
    %2734 = vmatpush.msra.mxu0 0.0
    %2735 = vmatpush.msra.mxu0 0.0
    %2736 = vmatpush.msra.mxu0 0.0
    %2737 = vmatpush.msra.mxu0 0.0
    %2738 = vmatpush.msra.mxu0 0.0
    %2739 = vmatpush.msra.mxu0 0.0
    %2740 = vmatpush.msra.mxu0 0.0
    %2741 = vmatpush.msra.mxu0 0.0
    %2742 = vmatpush.msra.mxu0 0.0
    %2743 = vmatpush.msra.mxu0 0.0
    %2744 = vmatpush.msra.mxu0 %v2021
    %2745 = vmatpush.msra.mxu0 %v1893
    %2746 = vmatpush.msra.mxu0 %v1872
    %2747 = vmatpush.msra.mxu0 %v1851
    %2748 = vmatmul.f32.gmra.mxu0 %v1967
    %v2749 = vpop.f32.mrf.mxu0
    %v2750 = vadd.f32 %v2730, %v2749
    %2751 = vdwg.mxu0
    %2752 = vmatpush.msra.mxu0 %v1831
    %2753 = vmatpush.msra.mxu0 %v1810
    %2754 = vmatpush.msra.mxu0 %v1789
    %2755 = vmatpush.msra.mxu0 %v1768
    %2756 = vmatpush.msra.mxu0 %v1747
    %2757 = vmatpush.msra.mxu0 %v1726
    %2758 = vmatpush.msra.mxu0 %v1705
    %2759 = vmatpush.msra.mxu0 %v1684
    %2760 = vmatpush.msra.mxu0 %v1663
    %2761 = vmatpush.msra.mxu0 %v1642
    %2762 = vmatpush.msra.mxu0 %v1621
    %2763 = vmatpush.msra.mxu0 %v1600
    %2764 = vmatpush.msra.mxu0 %v1579
    %2765 = vmatpush.msra.mxu0 %v1558
    %2766 = vmatpush.msra.mxu0 %v1537
    %2767 = vmatpush.msra.mxu0 %v1516
    %2768 = vmatmul.f32.gmra.mxu0 %v1497
    %v2769 = vpop.f32.mrf.mxu0
    %v2770 = vadd.f32 %v1942, %v2769
    %2771 = vdwg.mxu0
    %2772 = vmatpush.msra.mxu0 0.0
    %2773 = vmatpush.msra.mxu0 0.0
    %2774 = vmatpush.msra.mxu0 0.0
    %2775 = vmatpush.msra.mxu0 0.0
    %2776 = vmatpush.msra.mxu0 0.0
    %2777 = vmatpush.msra.mxu0 0.0
    %2778 = vmatpush.msra.mxu0 0.0
    %2779 = vmatpush.msra.mxu0 0.0
    %2780 = vmatpush.msra.mxu0 0.0
    %2781 = vmatpush.msra.mxu0 0.0
    %2782 = vmatpush.msra.mxu0 0.0
    %2783 = vmatpush.msra.mxu0 0.0
    %2784 = vmatpush.msra.mxu0 %v2024
    %2785 = vmatpush.msra.mxu0 %v1894
    %2786 = vmatpush.msra.mxu0 %v1873
    %2787 = vmatpush.msra.mxu0 %v1852
    %2788 = vmatmul.f32.gmra.mxu0 %v1967
    %v2789 = vpop.f32.mrf.mxu0
    %v2790 = vadd.f32 %v2770, %v2789
    %2791 = vdwg.mxu0
    %2792 = vmatpush.msra.mxu0 %v1832
    %2793 = vmatpush.msra.mxu0 %v1811
    %2794 = vmatpush.msra.mxu0 %v1790
    %2795 = vmatpush.msra.mxu0 %v1769
    %2796 = vmatpush.msra.mxu0 %v1748
    %2797 = vmatpush.msra.mxu0 %v1727
    %2798 = vmatpush.msra.mxu0 %v1706
    %2799 = vmatpush.msra.mxu0 %v1685
    %2800 = vmatpush.msra.mxu0 %v1664
    %2801 = vmatpush.msra.mxu0 %v1643
    %2802 = vmatpush.msra.mxu0 %v1622
    %2803 = vmatpush.msra.mxu0 %v1601
    %2804 = vmatpush.msra.mxu0 %v1580
    %2805 = vmatpush.msra.mxu0 %v1559
    %2806 = vmatpush.msra.mxu0 %v1538
    %2807 = vmatpush.msra.mxu0 %v1517
    %2808 = vmatmul.f32.gmra.mxu0 %v1497
    %v2809 = vpop.f32.mrf.mxu0
    %v2810 = vadd.f32 %v1943, %v2809
    %2811 = vdwg.mxu0
    %2812 = vmatpush.msra.mxu0 0.0
    %2813 = vmatpush.msra.mxu0 0.0
    %2814 = vmatpush.msra.mxu0 0.0
    %2815 = vmatpush.msra.mxu0 0.0
    %2816 = vmatpush.msra.mxu0 0.0
    %2817 = vmatpush.msra.mxu0 0.0
    %2818 = vmatpush.msra.mxu0 0.0
    %2819 = vmatpush.msra.mxu0 0.0
    %2820 = vmatpush.msra.mxu0 0.0
    %2821 = vmatpush.msra.mxu0 0.0
    %2822 = vmatpush.msra.mxu0 0.0
    %2823 = vmatpush.msra.mxu0 0.0
    %2824 = vmatpush.msra.mxu0 %v2027
    %2825 = vmatpush.msra.mxu0 %v1895
    %2826 = vmatpush.msra.mxu0 %v1874
    %2827 = vmatpush.msra.mxu0 %v1853
    %2828 = vmatmul.f32.gmra.mxu0 %v1967
    %v2829 = vpop.f32.mrf.mxu0
    %v2830 = vadd.f32 %v2810, %v2829
    %2831 = vdwg.mxu0
    %2832 = vmatpush.msra.mxu0 %v1833
    %2833 = vmatpush.msra.mxu0 %v1812
    %2834 = vmatpush.msra.mxu0 %v1791
    %2835 = vmatpush.msra.mxu0 %v1770
    %2836 = vmatpush.msra.mxu0 %v1749
    %2837 = vmatpush.msra.mxu0 %v1728
    %2838 = vmatpush.msra.mxu0 %v1707
    %2839 = vmatpush.msra.mxu0 %v1686
    %2840 = vmatpush.msra.mxu0 %v1665
    %2841 = vmatpush.msra.mxu0 %v1644
    %2842 = vmatpush.msra.mxu0 %v1623
    %2843 = vmatpush.msra.mxu0 %v1602
    %2844 = vmatpush.msra.mxu0 %v1581
    %2845 = vmatpush.msra.mxu0 %v1560
    %2846 = vmatpush.msra.mxu0 %v1539
    %2847 = vmatpush.msra.mxu0 %v1518
    %2848 = vmatmul.f32.gmra.mxu0 %v1497
    %v2849 = vpop.f32.mrf.mxu0
    %v2850 = vadd.f32 %v1944, %v2849
    %2851 = vdwg.mxu0
    %2852 = vmatpush.msra.mxu0 0.0
    %2853 = vmatpush.msra.mxu0 0.0
    %2854 = vmatpush.msra.mxu0 0.0
    %2855 = vmatpush.msra.mxu0 0.0
    %2856 = vmatpush.msra.mxu0 0.0
    %2857 = vmatpush.msra.mxu0 0.0
    %2858 = vmatpush.msra.mxu0 0.0
    %2859 = vmatpush.msra.mxu0 0.0
    %2860 = vmatpush.msra.mxu0 0.0
    %2861 = vmatpush.msra.mxu0 0.0
    %2862 = vmatpush.msra.mxu0 0.0
    %2863 = vmatpush.msra.mxu0 0.0
    %2864 = vmatpush.msra.mxu0 %v2030
    %2865 = vmatpush.msra.mxu0 %v1896
    %2866 = vmatpush.msra.mxu0 %v1875
    %2867 = vmatpush.msra.mxu0 %v1854
    %2868 = vmatmul.f32.gmra.mxu0 %v1967
    %v2869 = vpop.f32.mrf.mxu0
    %v2870 = vadd.f32 %v2850, %v2869
    %2871 = vdwg.mxu0
    %v2892 = vrot.slane %v2110, 6
    %v2893 = vrot.slane %v2150, 4
    %v2894 = vrot.slane %v2190, 2
    %v2895 = vrot.slane %v2270, 6
    %v2896 = vrot.slane %v2310, 4
    %v2897 = vrot.slane %v2350, 2
    %v2898 = vrot.slane %v2430, 6
    %v2899 = vrot.slane %v2470, 4
    %v2900 = vrot.slane %v2510, 2
    %v2901 = vrot.slane %v2590, 6
    %v2902 = vrot.slane %v2630, 4
    %v2903 = vrot.slane %v2670, 2
    %v2904 = vrot.slane %v2750, 6
    %v2905 = vrot.slane %v2790, 4
    %v2906 = vrot.slane %v2830, 2
    %v2907 = vsel %vm1484, %v2070, %v2892
    %vm2908 = vcmask 1045508
    %v2909 = vsel %vm2908, %v2893, %v2894
    %vm2910 = vcmask 1043456
    %v2911 = vsel %vm2910, %v2907, %v2909
    %v2912 = vsel %vm1484, %v2230, %v2895
    %v2913 = vsel %vm2908, %v2896, %v2897
    %v2914 = vsel %vm2910, %v2912, %v2913
    %v2915 = vsel %vm1484, %v2390, %v2898
    %v2916 = vsel %vm2908, %v2899, %v2900
    %v2917 = vsel %vm2910, %v2915, %v2916
    %v2918 = vsel %vm1484, %v2550, %v2901
    %v2919 = vsel %vm2908, %v2902, %v2903
    %v2920 = vsel %vm2910, %v2918, %v2919
    %v2921 = vsel %vm1484, %v2710, %v2904
    %v2922 = vsel %vm2908, %v2905, %v2906
    %v2923 = vsel %vm2910, %v2921, %v2922
    %2929 = vst [vmem:[%s11] sm:$0xff] %v2911
    %2930 = vst [vmem:[%s11 + $0x8] sm:$0xff] %v2914
    %2931 = vst [vmem:[%s11 + $0x10] sm:$0xff] %v2917
    %2932 = vst [vmem:[%s11 + $0x18] sm:$0xff] %v2920
    %2933 = vst [vmem:[%s11 + $0x20] sm:$0xff] %v2923
    %2934 = vst [vmem:[%s11 + $0x28] sm:$0x3] %v2870
    %v2935 = vld [vmem:[#allocation12] sm:$0xff]
    %v2936 = vld [vmem:[#allocation12 + $0x8] sm:$0x3]
    %v2937 = vld [vmem:[#allocation13] sm:$0x1]
    %v2939 = vperm.slane %v2937, 0
    %v2942 = vsel %vm1494, %v1011, 0
    %v2945 = vsel %vm1484, %v2936, 0
    %2947 = vmatpush.msra.mxu0 0.0
    %2948 = vmatpush.msra.mxu0 0.0
    %2949 = vmatpush.msra.mxu0 0.0
    %2950 = vmatpush.msra.mxu0 0.0
    %2951 = vmatpush.msra.mxu0 0.0
    %2952 = vmatpush.msra.mxu0 0.0
    %2953 = vmatpush.msra.mxu0 0.0
    %2954 = vmatpush.msra.mxu0 0.0
    %2955 = vmatpush.msra.mxu0 0.0
    %2956 = vmatpush.msra.mxu0 0.0
    %2957 = vmatpush.msra.mxu0 0.0
    %2958 = vmatpush.msra.mxu0 0.0
    %2959 = vmatpush.msra.mxu0 0.0
    %2960 = vmatpush.msra.mxu0 0.0
    %2961 = vmatpush.msra.mxu0 %v2945
    %2962 = vmatpush.msra.mxu0 %v2935
    %2963 = vmatmul.f32.gmra.mxu0 %v2942
    %v2964 = vpop.f32.mrf.mxu0
    %v2965 = vadd.f32 %v2939, %v2964
    %2966 = vdwg.mxu0
    %2967 = vst [vmem:[%s12] sm:$0x3] %v2965
    // Predicated region
    $region70: #{_lambda_.2} parent=1 // pred_check
      _
    $region71: #{_lambda_.2} parent=1 // pred_check_branch
      %2969 = sbr.rel (0) target = $region73
    $region72: #{_lambda_.2} parent=1 // pred_region
      _
    $region73: #{_lambda_.2} parent=1 // pred_fallthru
      _
    // Predicated region
    $region74: #{_lambda_.2} parent=1 // pred_check
      _
    $region75: #{_lambda_.2} parent=1 // pred_check_branch
      %2971 = sbr.rel (0) target = $region77
    $region76: #{_lambda_.2} parent=1 // pred_region
      _
    $region77: #{_lambda_.2} parent=1 // pred_fallthru
      _
    // Predicated region
    $region78: #{_lambda_.2} parent=1 // pred_check
      _
    $region79: #{_lambda_.2} parent=1 // pred_check_branch
      %2973 = sbr.rel (0) target = $region81
    $region80: #{_lambda_.2} parent=1 // pred_region
      _
    $region81: #{_lambda_.2} parent=1 // pred_fallthru
      _
    // Predicated region
    $region82: #{_lambda_.2} parent=1 // pred_check
      _
    $region83: #{_lambda_.2} parent=1 // pred_check_branch
      %2975 = sbr.rel (0) target = $region85
    $region84: #{_lambda_.2} parent=1 // pred_region
      _
    $region85: #{_lambda_.2} parent=1 // pred_fallthru
      _
    // Predicated region
    $region86: #{_lambda_.2} parent=1 // pred_check
      _
    $region87: #{_lambda_.2} parent=1 // pred_check_branch
      %2977 = sbr.rel (0) target = $region89
    $region88: #{_lambda_.2} parent=1 // pred_region
      _
    $region89: #{_lambda_.2} parent=1 // pred_fallthru
      _
    // Predicated region
    $region90: #{_lambda_.2} parent=1 // pred_check
      _
    $region91: #{_lambda_.2} parent=1 // pred_check_branch
      %2979 = sbr.rel (0) target = $region93
    $region92: #{_lambda_.2} parent=1 // pred_region
      _
    $region93: #{_lambda_.2} parent=1 // pred_fallthru
      _
    // Predicated region
    $region94: #{_lambda_.2} parent=1 // pred_check
      _
    $region95: #{_lambda_.2} parent=1 // pred_check_branch
      %2981 = sbr.rel (0) target = $region97
    $region96: #{_lambda_.2} parent=1 // pred_region
      _
    $region97: #{_lambda_.2} parent=1 // pred_fallthru
      _
    // Predicated region
    $region98: #{_lambda_.2} parent=1 // pred_check
      _
    $region99: #{_lambda_.2} parent=1 // pred_check_branch
      %2983 = sbr.rel (0) target = $region101
    $region100: #{_lambda_.2} parent=1 // pred_region
      _
    $region101: #{_lambda_.2} parent=1 // pred_fallthru
      _
    %2984 = vsyncpa [#allocation3], 1
    %2985 = vsyncpa [#allocation5], 1
    %2986 = vsyncpa [#allocation8], 1
    %2987 = vsyncpa [#allocation11], 1
    %2988 = vsyncpa [#allocation14], 1

// kernel: _lambda_.3
$region0: #{_lambda_.3}
  #allocation0 [shape = 'u32[]', space=smem, size = 0x4, offset = 0x4, fixed_abs, tag = 'smem constant byte address 0x4 - core index']
  #allocation1 [shape = 'u32[72,128]{1,0:T(1,128)}', space=vmem, size = 0x9000, scoped, tag = 'internal scratch']
  %s0 = inlined_call_operand.vmem [shape: f32[32,16], index: 0, kind: input, shape index: {}]
  %s1 = inlined_call_operand.vmem [shape: f32[6,896], index: 1, kind: input, shape index: {}]
  %s2 = inlined_call_operand.vmem [shape: f32[16,896], index: 2, kind: input, shape index: {}]
  %s3 = inlined_call_operand.vmem [shape: f32[896,128], index: 3, kind: input, shape index: {}]
  %s4 = inlined_call_operand.vmem [shape: f32[6,896], index: 4, kind: output, shape index: {0}]
  %s5 = inlined_call_operand.vmem [shape: f32[6,128], index: 5, kind: output, shape index: {1}]
  %6 = xla_tuple %s4, %s5
  %s7 = sld [smem:[#allocation0]]
  $region34: #{_lambda_.3} parent=0
    _
  %s9 = ssub.s32 1, %s7
  %s10 = scalar_select 0, %s9, %s7
  // Predicated region
  $region2: #{_lambda_.3} parent=0 // pred_check
    _
  $region3: #{_lambda_.3} parent=0 // pred_check_branch
    %12 = sbr.rel (0) target = $region5
  $region4: #{_lambda_.3} parent=0 // pred_region
    _
  $region5: #{_lambda_.3} parent=0 // pred_fallthru
    _
  // Predicated region
  $region6: #{_lambda_.3} parent=0 // pred_check
    _
  $region7: #{_lambda_.3} parent=0 // pred_check_branch
    %14 = sbr.rel (0) target = $region9
  $region8: #{_lambda_.3} parent=0 // pred_region
    _
  $region9: #{_lambda_.3} parent=0 // pred_fallthru
    _
  // Predicated region
  $region10: #{_lambda_.3} parent=0 // pred_check
    _
  $region11: #{_lambda_.3} parent=0 // pred_check_branch
    %16 = sbr.rel (0) target = $region13
  $region12: #{_lambda_.3} parent=0 // pred_region
    _
  $region13: #{_lambda_.3} parent=0 // pred_fallthru
    _
  // Predicated region
  $region14: #{_lambda_.3} parent=0 // pred_check
    _
  $region15: #{_lambda_.3} parent=0 // pred_check_branch
    %18 = sbr.rel (0) target = $region17
  $region16: #{_lambda_.3} parent=0 // pred_region
    _
  $region17: #{_lambda_.3} parent=0 // pred_fallthru
    _
  %v19 = vld [vmem:[%s0] sm:$0xff]
  %v20 = vld [vmem:[%s0 + $0x8] sm:$0xff]
  %v21 = vld [vmem:[%s0 + $0x10] sm:$0xff]
  %v22 = vld [vmem:[%s0 + $0x18] sm:$0xff]
  %v23 = vld [vmem:[%s2] sm:$0xff]
  %v24 = vld [vmem:[%s2 + $0x8] sm:$0xff]
  %v25 = vld [vmem:[%s2 + $0x10] sm:$0xff]
  %v26 = vld [vmem:[%s2 + $0x18] sm:$0xff]
  %v27 = vld [vmem:[%s2 + $0x20] sm:$0xff]
  %v28 = vld [vmem:[%s2 + $0x28] sm:$0xff]
  %v29 = vld [vmem:[%s2 + $0x30] sm:$0xff]
  %v30 = vld [vmem:[%s2 + $0x38] sm:$0xff]
  %v31 = vld [vmem:[%s2 + $0x40] sm:$0xff]
  %v32 = vld [vmem:[%s2 + $0x48] sm:$0xff]
  %v33 = vld [vmem:[%s2 + $0x50] sm:$0xff]
  %v34 = vld [vmem:[%s2 + $0x58] sm:$0xff]
  %v35 = vld [vmem:[%s2 + $0x60] sm:$0xff]
  %v36 = vld [vmem:[%s2 + $0x68] sm:$0xff]
  %vm37 = vcmask 130048
  %v39 = vsel %vm37, %v19, 0
  %v42 = vsel %vm37, %v20, 0
  %v45 = vsel %vm37, %v21, 0
  %v48 = vsel %vm37, %v22, 0
  %50 = vmatpush.msra.mxu0 0.0
  %51 = vmatpush.msra.mxu0 0.0
  %52 = vmatpush.msra.mxu0 0.0
  %53 = vmatpush.msra.mxu0 0.0
  %54 = vmatpush.msra.mxu0 0.0
  %55 = vmatpush.msra.mxu0 0.0
  %56 = vmatpush.msra.mxu0 0.0
  %57 = vmatpush.msra.mxu0 0.0
  %58 = vmatpush.msra.mxu0 0.0
  %59 = vmatpush.msra.mxu0 0.0
  %60 = vmatpush.msra.mxu0 0.0
  %61 = vmatpush.msra.mxu0 0.0
  %62 = vmatpush.msra.mxu0 0.0
  %63 = vmatpush.msra.mxu0 0.0
  %64 = vmatpush.msra.mxu0 %v30
  %65 = vmatpush.msra.mxu0 %v23
  %66 = vmatmul.f32.gmra.mxu0 %v39
  %v67 = vpop.f32.mrf.mxu0
  %v68 = vadd.f32 0.0, %v67
  %69 = vmatmul.f32.gmra.mxu0 %v42
  %v70 = vpop.f32.mrf.mxu0
  %v71 = vadd.f32 0.0, %v70
  %72 = vmatmul.f32.gmra.mxu0 %v45
  %v73 = vpop.f32.mrf.mxu0
  %v74 = vadd.f32 0.0, %v73
  %75 = vmatmul.f32.gmra.mxu0 %v48
  %v76 = vpop.f32.mrf.mxu0
  %v77 = vadd.f32 0.0, %v76
  %78 = vdwg.mxu0
  %79 = vmatpush.msra.mxu0 0.0
  %80 = vmatpush.msra.mxu0 0.0
  %81 = vmatpush.msra.mxu0 0.0
  %82 = vmatpush.msra.mxu0 0.0
  %83 = vmatpush.msra.mxu0 0.0
  %84 = vmatpush.msra.mxu0 0.0
  %85 = vmatpush.msra.mxu0 0.0
  %86 = vmatpush.msra.mxu0 0.0
  %87 = vmatpush.msra.mxu0 0.0
  %88 = vmatpush.msra.mxu0 0.0
  %89 = vmatpush.msra.mxu0 0.0
  %90 = vmatpush.msra.mxu0 0.0
  %91 = vmatpush.msra.mxu0 0.0
  %92 = vmatpush.msra.mxu0 0.0
  %93 = vmatpush.msra.mxu0 %v31
  %94 = vmatpush.msra.mxu0 %v24
  %95 = vmatmul.f32.gmra.mxu0 %v39
  %v96 = vpop.f32.mrf.mxu0
  %v97 = vadd.f32 0.0, %v96
  %98 = vmatmul.f32.gmra.mxu0 %v42
  %v99 = vpop.f32.mrf.mxu0
  %v100 = vadd.f32 0.0, %v99
  %101 = vmatmul.f32.gmra.mxu0 %v45
  %v102 = vpop.f32.mrf.mxu0
  %v103 = vadd.f32 0.0, %v102
  %104 = vmatmul.f32.gmra.mxu0 %v48
  %v105 = vpop.f32.mrf.mxu0
  %v106 = vadd.f32 0.0, %v105
  %107 = vdwg.mxu0
  %108 = vmatpush.msra.mxu0 0.0
  %109 = vmatpush.msra.mxu0 0.0
  %110 = vmatpush.msra.mxu0 0.0
  %111 = vmatpush.msra.mxu0 0.0
  %112 = vmatpush.msra.mxu0 0.0
  %113 = vmatpush.msra.mxu0 0.0
  %114 = vmatpush.msra.mxu0 0.0
  %115 = vmatpush.msra.mxu0 0.0
  %116 = vmatpush.msra.mxu0 0.0
  %117 = vmatpush.msra.mxu0 0.0
  %118 = vmatpush.msra.mxu0 0.0
  %119 = vmatpush.msra.mxu0 0.0
  %120 = vmatpush.msra.mxu0 0.0
  %121 = vmatpush.msra.mxu0 0.0
  %122 = vmatpush.msra.mxu0 %v32
  %123 = vmatpush.msra.mxu0 %v25
  %124 = vmatmul.f32.gmra.mxu0 %v39
  %v125 = vpop.f32.mrf.mxu0
  %v126 = vadd.f32 0.0, %v125
  %127 = vmatmul.f32.gmra.mxu0 %v42
  %v128 = vpop.f32.mrf.mxu0
  %v129 = vadd.f32 0.0, %v128
  %130 = vmatmul.f32.gmra.mxu0 %v45
  %v131 = vpop.f32.mrf.mxu0
  %v132 = vadd.f32 0.0, %v131
  %133 = vmatmul.f32.gmra.mxu0 %v48
  %v134 = vpop.f32.mrf.mxu0
  %v135 = vadd.f32 0.0, %v134
  %136 = vdwg.mxu0
  %137 = vmatpush.msra.mxu0 0.0
  %138 = vmatpush.msra.mxu0 0.0
  %139 = vmatpush.msra.mxu0 0.0
  %140 = vmatpush.msra.mxu0 0.0
  %141 = vmatpush.msra.mxu0 0.0
  %142 = vmatpush.msra.mxu0 0.0
  %143 = vmatpush.msra.mxu0 0.0
  %144 = vmatpush.msra.mxu0 0.0
  %145 = vmatpush.msra.mxu0 0.0
  %146 = vmatpush.msra.mxu0 0.0
  %147 = vmatpush.msra.mxu0 0.0
  %148 = vmatpush.msra.mxu0 0.0
  %149 = vmatpush.msra.mxu0 0.0
  %150 = vmatpush.msra.mxu0 0.0
  %151 = vmatpush.msra.mxu0 %v33
  %152 = vmatpush.msra.mxu0 %v26
  %153 = vmatmul.f32.gmra.mxu0 %v39
  %v154 = vpop.f32.mrf.mxu0
  %v155 = vadd.f32 0.0, %v154
  %156 = vmatmul.f32.gmra.mxu0 %v42
  %v157 = vpop.f32.mrf.mxu0
  %v158 = vadd.f32 0.0, %v157
  %159 = vmatmul.f32.gmra.mxu0 %v45
  %v160 = vpop.f32.mrf.mxu0
  %v161 = vadd.f32 0.0, %v160
  %162 = vmatmul.f32.gmra.mxu0 %v48
  %v163 = vpop.f32.mrf.mxu0
  %v164 = vadd.f32 0.0, %v163
  %165 = vdwg.mxu0
  %166 = vmatpush.msra.mxu0 0.0
  %167 = vmatpush.msra.mxu0 0.0
  %168 = vmatpush.msra.mxu0 0.0
  %169 = vmatpush.msra.mxu0 0.0
  %170 = vmatpush.msra.mxu0 0.0
  %171 = vmatpush.msra.mxu0 0.0
  %172 = vmatpush.msra.mxu0 0.0
  %173 = vmatpush.msra.mxu0 0.0
  %174 = vmatpush.msra.mxu0 0.0
  %175 = vmatpush.msra.mxu0 0.0
  %176 = vmatpush.msra.mxu0 0.0
  %177 = vmatpush.msra.mxu0 0.0
  %178 = vmatpush.msra.mxu0 0.0
  %179 = vmatpush.msra.mxu0 0.0
  %180 = vmatpush.msra.mxu0 %v34
  %181 = vmatpush.msra.mxu0 %v27
  %182 = vmatmul.f32.gmra.mxu0 %v39
  %v183 = vpop.f32.mrf.mxu0
  %v184 = vadd.f32 0.0, %v183
  %185 = vmatmul.f32.gmra.mxu0 %v42
  %v186 = vpop.f32.mrf.mxu0
  %v187 = vadd.f32 0.0, %v186
  %188 = vmatmul.f32.gmra.mxu0 %v45
  %v189 = vpop.f32.mrf.mxu0
  %v190 = vadd.f32 0.0, %v189
  %191 = vmatmul.f32.gmra.mxu0 %v48
  %v192 = vpop.f32.mrf.mxu0
  %v193 = vadd.f32 0.0, %v192
  %194 = vdwg.mxu0
  %195 = vmatpush.msra.mxu0 0.0
  %196 = vmatpush.msra.mxu0 0.0
  %197 = vmatpush.msra.mxu0 0.0
  %198 = vmatpush.msra.mxu0 0.0
  %199 = vmatpush.msra.mxu0 0.0
  %200 = vmatpush.msra.mxu0 0.0
  %201 = vmatpush.msra.mxu0 0.0
  %202 = vmatpush.msra.mxu0 0.0
  %203 = vmatpush.msra.mxu0 0.0
  %204 = vmatpush.msra.mxu0 0.0
  %205 = vmatpush.msra.mxu0 0.0
  %206 = vmatpush.msra.mxu0 0.0
  %207 = vmatpush.msra.mxu0 0.0
  %208 = vmatpush.msra.mxu0 0.0
  %209 = vmatpush.msra.mxu0 %v35
  %210 = vmatpush.msra.mxu0 %v28
  %211 = vmatmul.f32.gmra.mxu0 %v39
  %v212 = vpop.f32.mrf.mxu0
  %v213 = vadd.f32 0.0, %v212
  %214 = vmatmul.f32.gmra.mxu0 %v42
  %v215 = vpop.f32.mrf.mxu0
  %v216 = vadd.f32 0.0, %v215
  %217 = vmatmul.f32.gmra.mxu0 %v45
  %v218 = vpop.f32.mrf.mxu0
  %v219 = vadd.f32 0.0, %v218
  %220 = vmatmul.f32.gmra.mxu0 %v48
  %v221 = vpop.f32.mrf.mxu0
  %v222 = vadd.f32 0.0, %v221
  %223 = vdwg.mxu0
  %224 = vmatpush.msra.mxu0 0.0
  %225 = vmatpush.msra.mxu0 0.0
  %226 = vmatpush.msra.mxu0 0.0
  %227 = vmatpush.msra.mxu0 0.0
  %228 = vmatpush.msra.mxu0 0.0
  %229 = vmatpush.msra.mxu0 0.0
  %230 = vmatpush.msra.mxu0 0.0
  %231 = vmatpush.msra.mxu0 0.0
  %232 = vmatpush.msra.mxu0 0.0
  %233 = vmatpush.msra.mxu0 0.0
  %234 = vmatpush.msra.mxu0 0.0
  %235 = vmatpush.msra.mxu0 0.0
  %236 = vmatpush.msra.mxu0 0.0
  %237 = vmatpush.msra.mxu0 0.0
  %238 = vmatpush.msra.mxu0 %v36
  %239 = vmatpush.msra.mxu0 %v29
  %240 = vmatmul.f32.gmra.mxu0 %v39
  %v241 = vpop.f32.mrf.mxu0
  %v242 = vadd.f32 0.0, %v241
  %243 = vmatmul.f32.gmra.mxu0 %v42
  %v244 = vpop.f32.mrf.mxu0
  %v245 = vadd.f32 0.0, %v244
  %246 = vmatmul.f32.gmra.mxu0 %v45
  %v247 = vpop.f32.mrf.mxu0
  %v248 = vadd.f32 0.0, %v247
  %249 = vmatmul.f32.gmra.mxu0 %v48
  %v250 = vpop.f32.mrf.mxu0
  %v251 = vadd.f32 0.0, %v250
  %252 = vdwg.mxu0
  %v253 = vld [vmem:[%s1] ss:$8 sm:$0xf]
  %v254 = vld [vmem:[%s1] ss:$8 sm:$0xf0]
  %v255 = vor.u32 %v253, %v254
  %s256 = scalar_lea.vmem %s1, 1
  %v257 = vld [vmem:[%s256] ss:$8 sm:$0xf]
  %v258 = vld [vmem:[%s256] ss:$8 sm:$0xf0]
  %v259 = vor.u32 %v257, %v258
  %s260 = scalar_lea.vmem %s1, 2
  %v261 = vld [vmem:[%s260] ss:$8 sm:$0xf]
  %v262 = vld [vmem:[%s260] ss:$8 sm:$0xf0]
  %v263 = vor.u32 %v261, %v262
  %v265 = vperm.slane %v255, 0
  %v266 = vperm.slane %v255, 1
  %v267 = vperm.slane %v255, 2
  %v268 = vperm.slane %v255, 3
  %v269 = vperm.slane %v255, 4
  %v270 = vperm.slane %v255, 5
  %v271 = vperm.slane %v255, 6
  %v279 = vmul.f32 %v68, %v265
  %v280 = vmul.f32 %v97, %v266
  %v281 = vmul.f32 %v126, %v267
  %v282 = vmul.f32 %v155, %v268
  %v283 = vmul.f32 %v184, %v269
  %v284 = vmul.f32 %v213, %v270
  %v285 = vmul.f32 %v242, %v271
  %v287 = vperm.slane %v259, 0
  %v288 = vperm.slane %v259, 1
  %v289 = vperm.slane %v259, 2
  %v290 = vperm.slane %v259, 3
  %v291 = vperm.slane %v259, 4
  %v292 = vperm.slane %v259, 5
  %v293 = vperm.slane %v259, 6
  %v301 = vmul.f32 %v68, %v287
  %v302 = vmul.f32 %v97, %v288
  %v303 = vmul.f32 %v126, %v289
  %v304 = vmul.f32 %v155, %v290
  %v305 = vmul.f32 %v184, %v291
  %v306 = vmul.f32 %v213, %v292
  %v307 = vmul.f32 %v242, %v293
  %v315 = vrot.slane %v301, 1
  %v316 = vrot.slane %v302, 1
  %v317 = vrot.slane %v303, 1
  %v318 = vrot.slane %v304, 1
  %v319 = vrot.slane %v305, 1
  %v320 = vrot.slane %v306, 1
  %v321 = vrot.slane %v307, 1
  %v329 = vadd.f32 %v279, %v315
  %v330 = vadd.f32 %v280, %v316
  %v331 = vadd.f32 %v281, %v317
  %v332 = vadd.f32 %v282, %v318
  %v333 = vadd.f32 %v283, %v319
  %v334 = vadd.f32 %v284, %v320
  %v335 = vadd.f32 %v285, %v321
  %v337 = vperm.slane %v263, 0
  %v338 = vperm.slane %v263, 1
  %v339 = vperm.slane %v263, 2
  %v340 = vperm.slane %v263, 3
  %v341 = vperm.slane %v263, 4
  %v342 = vperm.slane %v263, 5
  %v343 = vperm.slane %v263, 6
  %v351 = vmul.f32 %v68, %v337
  %v352 = vmul.f32 %v97, %v338
  %v353 = vmul.f32 %v126, %v339
  %v354 = vmul.f32 %v155, %v340
  %v355 = vmul.f32 %v184, %v341
  %v356 = vmul.f32 %v213, %v342
  %v357 = vmul.f32 %v242, %v343
  %v365 = vrot.slane %v351, 2
  %v366 = vrot.slane %v352, 2
  %v367 = vrot.slane %v353, 2
  %v368 = vrot.slane %v354, 2
  %v369 = vrot.slane %v355, 2
  %v370 = vrot.slane %v356, 2
  %v371 = vrot.slane %v357, 2
  %v379 = vadd.f32 %v329, %v365
  %v380 = vadd.f32 %v330, %v366
  %v381 = vadd.f32 %v331, %v367
  %v382 = vadd.f32 %v332, %v368
  %v383 = vadd.f32 %v333, %v369
  %v384 = vadd.f32 %v334, %v370
  %v385 = vadd.f32 %v335, %v371
  %v393 = vrot.slane %v68, 3
  %v394 = vrot.slane %v97, 3
  %v395 = vrot.slane %v126, 3
  %v396 = vrot.slane %v155, 3
  %v397 = vrot.slane %v184, 3
  %v398 = vrot.slane %v213, 3
  %v399 = vrot.slane %v242, 3
  %v407 = vadd.f32 %v379, %v393
  %v408 = vadd.f32 %v380, %v394
  %v409 = vadd.f32 %v381, %v395
  %v410 = vadd.f32 %v382, %v396
  %v411 = vadd.f32 %v383, %v397
  %v412 = vadd.f32 %v384, %v398
  %v413 = vadd.f32 %v385, %v399
  %v414 = vmul.f32 %v71, %v265
  %v415 = vmul.f32 %v100, %v266
  %v416 = vmul.f32 %v129, %v267
  %v417 = vmul.f32 %v158, %v268
  %v418 = vmul.f32 %v187, %v269
  %v419 = vmul.f32 %v216, %v270
  %v420 = vmul.f32 %v245, %v271
  %v421 = vmul.f32 %v71, %v287
  %v422 = vmul.f32 %v100, %v288
  %v423 = vmul.f32 %v129, %v289
  %v424 = vmul.f32 %v158, %v290
  %v425 = vmul.f32 %v187, %v291
  %v426 = vmul.f32 %v216, %v292
  %v427 = vmul.f32 %v245, %v293
  %v435 = vrot.slane %v421, 1
  %v436 = vrot.slane %v422, 1
  %v437 = vrot.slane %v423, 1
  %v438 = vrot.slane %v424, 1
  %v439 = vrot.slane %v425, 1
  %v440 = vrot.slane %v426, 1
  %v441 = vrot.slane %v427, 1
  %v449 = vadd.f32 %v414, %v435
  %v450 = vadd.f32 %v415, %v436
  %v451 = vadd.f32 %v416, %v437
  %v452 = vadd.f32 %v417, %v438
  %v453 = vadd.f32 %v418, %v439
  %v454 = vadd.f32 %v419, %v440
  %v455 = vadd.f32 %v420, %v441
  %v456 = vmul.f32 %v71, %v337
  %v457 = vmul.f32 %v100, %v338
  %v458 = vmul.f32 %v129, %v339
  %v459 = vmul.f32 %v158, %v340
  %v460 = vmul.f32 %v187, %v341
  %v461 = vmul.f32 %v216, %v342
  %v462 = vmul.f32 %v245, %v343
  %v470 = vrot.slane %v456, 2
  %v471 = vrot.slane %v457, 2
  %v472 = vrot.slane %v458, 2
  %v473 = vrot.slane %v459, 2
  %v474 = vrot.slane %v460, 2
  %v475 = vrot.slane %v461, 2
  %v476 = vrot.slane %v462, 2
  %v484 = vadd.f32 %v449, %v470
  %v485 = vadd.f32 %v450, %v471
  %v486 = vadd.f32 %v451, %v472
  %v487 = vadd.f32 %v452, %v473
  %v488 = vadd.f32 %v453, %v474
  %v489 = vadd.f32 %v454, %v475
  %v490 = vadd.f32 %v455, %v476
  %v498 = vrot.slane %v71, 3
  %v499 = vrot.slane %v100, 3
  %v500 = vrot.slane %v129, 3
  %v501 = vrot.slane %v158, 3
  %v502 = vrot.slane %v187, 3
  %v503 = vrot.slane %v216, 3
  %v504 = vrot.slane %v245, 3
  %v512 = vadd.f32 %v484, %v498
  %v513 = vadd.f32 %v485, %v499
  %v514 = vadd.f32 %v486, %v500
  %v515 = vadd.f32 %v487, %v501
  %v516 = vadd.f32 %v488, %v502
  %v517 = vadd.f32 %v489, %v503
  %v518 = vadd.f32 %v490, %v504
  %s519 = scalar_lea.vmem %s1, 3
  %v520 = vld [vmem:[%s519] ss:$8 sm:$0xf]
  %v521 = vld [vmem:[%s519] ss:$8 sm:$0xf0]
  %v522 = vor.u32 %v520, %v521
  %s523 = scalar_lea.vmem %s1, 4
  %v524 = vld [vmem:[%s523] ss:$8 sm:$0xf]
  %v525 = vld [vmem:[%s523] ss:$8 sm:$0xf0]
  %v526 = vor.u32 %v524, %v525
  %s527 = scalar_lea.vmem %s1, 5
  %v528 = vld [vmem:[%s527] ss:$8 sm:$0xf]
  %v529 = vld [vmem:[%s527] ss:$8 sm:$0xf0]
  %v530 = vor.u32 %v528, %v529
  %v532 = vperm.slane %v522, 0
  %v533 = vperm.slane %v522, 1
  %v534 = vperm.slane %v522, 2
  %v535 = vperm.slane %v522, 3
  %v536 = vperm.slane %v522, 4
  %v537 = vperm.slane %v522, 5
  %v538 = vperm.slane %v522, 6
  %v546 = vmul.f32 %v74, %v532
  %v547 = vmul.f32 %v103, %v533
  %v548 = vmul.f32 %v132, %v534
  %v549 = vmul.f32 %v161, %v535
  %v550 = vmul.f32 %v190, %v536
  %v551 = vmul.f32 %v219, %v537
  %v552 = vmul.f32 %v248, %v538
  %v554 = vperm.slane %v526, 0
  %v555 = vperm.slane %v526, 1
  %v556 = vperm.slane %v526, 2
  %v557 = vperm.slane %v526, 3
  %v558 = vperm.slane %v526, 4
  %v559 = vperm.slane %v526, 5
  %v560 = vperm.slane %v526, 6
  %v568 = vmul.f32 %v74, %v554
  %v569 = vmul.f32 %v103, %v555
  %v570 = vmul.f32 %v132, %v556
  %v571 = vmul.f32 %v161, %v557
  %v572 = vmul.f32 %v190, %v558
  %v573 = vmul.f32 %v219, %v559
  %v574 = vmul.f32 %v248, %v560
  %v582 = vrot.slane %v568, 1
  %v583 = vrot.slane %v569, 1
  %v584 = vrot.slane %v570, 1
  %v585 = vrot.slane %v571, 1
  %v586 = vrot.slane %v572, 1
  %v587 = vrot.slane %v573, 1
  %v588 = vrot.slane %v574, 1
  %v596 = vadd.f32 %v546, %v582
  %v597 = vadd.f32 %v547, %v583
  %v598 = vadd.f32 %v548, %v584
  %v599 = vadd.f32 %v549, %v585
  %v600 = vadd.f32 %v550, %v586
  %v601 = vadd.f32 %v551, %v587
  %v602 = vadd.f32 %v552, %v588
  %v604 = vperm.slane %v530, 0
  %v605 = vperm.slane %v530, 1
  %v606 = vperm.slane %v530, 2
  %v607 = vperm.slane %v530, 3
  %v608 = vperm.slane %v530, 4
  %v609 = vperm.slane %v530, 5
  %v610 = vperm.slane %v530, 6
  %v618 = vmul.f32 %v74, %v604
  %v619 = vmul.f32 %v103, %v605
  %v620 = vmul.f32 %v132, %v606
  %v621 = vmul.f32 %v161, %v607
  %v622 = vmul.f32 %v190, %v608
  %v623 = vmul.f32 %v219, %v609
  %v624 = vmul.f32 %v248, %v610
  %v632 = vrot.slane %v618, 2
  %v633 = vrot.slane %v619, 2
  %v634 = vrot.slane %v620, 2
  %v635 = vrot.slane %v621, 2
  %v636 = vrot.slane %v622, 2
  %v637 = vrot.slane %v623, 2
  %v638 = vrot.slane %v624, 2
  %v646 = vadd.f32 %v596, %v632
  %v647 = vadd.f32 %v597, %v633
  %v648 = vadd.f32 %v598, %v634
  %v649 = vadd.f32 %v599, %v635
  %v650 = vadd.f32 %v600, %v636
  %v651 = vadd.f32 %v601, %v637
  %v652 = vadd.f32 %v602, %v638
  %v660 = vrot.slane %v74, 3
  %v661 = vrot.slane %v103, 3
  %v662 = vrot.slane %v132, 3
  %v663 = vrot.slane %v161, 3
  %v664 = vrot.slane %v190, 3
  %v665 = vrot.slane %v219, 3
  %v666 = vrot.slane %v248, 3
  %v674 = vadd.f32 %v646, %v660
  %v675 = vadd.f32 %v647, %v661
  %v676 = vadd.f32 %v648, %v662
  %v677 = vadd.f32 %v649, %v663
  %v678 = vadd.f32 %v650, %v664
  %v679 = vadd.f32 %v651, %v665
  %v680 = vadd.f32 %v652, %v666
  %v681 = vmul.f32 %v77, %v532
  %v682 = vmul.f32 %v106, %v533
  %v683 = vmul.f32 %v135, %v534
  %v684 = vmul.f32 %v164, %v535
  %v685 = vmul.f32 %v193, %v536
  %v686 = vmul.f32 %v222, %v537
  %v687 = vmul.f32 %v251, %v538
  %v688 = vmul.f32 %v77, %v554
  %v689 = vmul.f32 %v106, %v555
  %v690 = vmul.f32 %v135, %v556
  %v691 = vmul.f32 %v164, %v557
  %v692 = vmul.f32 %v193, %v558
  %v693 = vmul.f32 %v222, %v559
  %v694 = vmul.f32 %v251, %v560
  %v702 = vrot.slane %v688, 1
  %v703 = vrot.slane %v689, 1
  %v704 = vrot.slane %v690, 1
  %v705 = vrot.slane %v691, 1
  %v706 = vrot.slane %v692, 1
  %v707 = vrot.slane %v693, 1
  %v708 = vrot.slane %v694, 1
  %v716 = vadd.f32 %v681, %v702
  %v717 = vadd.f32 %v682, %v703
  %v718 = vadd.f32 %v683, %v704
  %v719 = vadd.f32 %v684, %v705
  %v720 = vadd.f32 %v685, %v706
  %v721 = vadd.f32 %v686, %v707
  %v722 = vadd.f32 %v687, %v708
  %v723 = vmul.f32 %v77, %v604
  %v724 = vmul.f32 %v106, %v605
  %v725 = vmul.f32 %v135, %v606
  %v726 = vmul.f32 %v164, %v607
  %v727 = vmul.f32 %v193, %v608
  %v728 = vmul.f32 %v222, %v609
  %v729 = vmul.f32 %v251, %v610
  %v737 = vrot.slane %v723, 2
  %v738 = vrot.slane %v724, 2
  %v739 = vrot.slane %v725, 2
  %v740 = vrot.slane %v726, 2
  %v741 = vrot.slane %v727, 2
  %v742 = vrot.slane %v728, 2
  %v743 = vrot.slane %v729, 2
  %v751 = vadd.f32 %v716, %v737
  %v752 = vadd.f32 %v717, %v738
  %v753 = vadd.f32 %v718, %v739
  %v754 = vadd.f32 %v719, %v740
  %v755 = vadd.f32 %v720, %v741
  %v756 = vadd.f32 %v721, %v742
  %v757 = vadd.f32 %v722, %v743
  %v765 = vrot.slane %v77, 3
  %v766 = vrot.slane %v106, 3
  %v767 = vrot.slane %v135, 3
  %v768 = vrot.slane %v164, 3
  %v769 = vrot.slane %v193, 3
  %v770 = vrot.slane %v222, 3
  %v771 = vrot.slane %v251, 3
  %v779 = vadd.f32 %v751, %v765
  %v780 = vadd.f32 %v752, %v766
  %v781 = vadd.f32 %v753, %v767
  %v782 = vadd.f32 %v754, %v768
  %v783 = vadd.f32 %v755, %v769
  %v784 = vadd.f32 %v756, %v770
  %v785 = vadd.f32 %v757, %v771
  %v793 = vrot.slane %v407, 3
  %v794 = vrot.slane %v408, 3
  %v795 = vrot.slane %v409, 3
  %v796 = vrot.slane %v410, 3
  %v797 = vrot.slane %v411, 3
  %v798 = vrot.slane %v412, 3
  %v799 = vrot.slane %v413, 3
  %v814 = vrot.slane %v512, 6
  %v815 = vrot.slane %v513, 6
  %v816 = vrot.slane %v514, 6
  %v817 = vrot.slane %v515, 6
  %v818 = vrot.slane %v516, 6
  %v819 = vrot.slane %v517, 6
  %v820 = vrot.slane %v518, 6
  %v835 = vrot.slane %v674, 5
  %v836 = vrot.slane %v675, 5
  %v837 = vrot.slane %v676, 5
  %v838 = vrot.slane %v677, 5
  %v839 = vrot.slane %v678, 5
  %v840 = vrot.slane %v679, 5
  %v841 = vrot.slane %v680, 5
  %v856 = vrot.slane %v779, 3
  %v857 = vrot.slane %v780, 3
  %v858 = vrot.slane %v781, 3
  %v859 = vrot.slane %v782, 3
  %v860 = vrot.slane %v783, 3
  %v861 = vrot.slane %v784, 3
  %v862 = vrot.slane %v785, 3
  %vm870 = vcmask 1040384
  %v871 = vsel %vm870, %v407, %v793
  %v872 = vsel %vm870, %v408, %v794
  %v873 = vsel %vm870, %v409, %v795
  %v874 = vsel %vm870, %v410, %v796
  %v875 = vsel %vm870, %v411, %v797
  %v876 = vsel %vm870, %v412, %v798
  %v877 = vsel %vm870, %v413, %v799
  %vm878 = vcmask 1041408
  %v879 = vsel %vm878, %v871, %v814
  %v880 = vsel %vm878, %v872, %v815
  %v881 = vsel %vm878, %v873, %v816
  %v882 = vsel %vm878, %v874, %v817
  %v883 = vsel %vm878, %v875, %v818
  %v884 = vsel %vm878, %v876, %v819
  %v885 = vsel %vm878, %v877, %v820
  %vm886 = vcmask 1042432
  %v887 = vsel %vm886, %v879, %v835
  %v888 = vsel %vm886, %v880, %v836
  %v889 = vsel %vm886, %v881, %v837
  %v890 = vsel %vm886, %v882, %v838
  %v891 = vsel %vm886, %v883, %v839
  %v892 = vsel %vm886, %v884, %v840
  %v893 = vsel %vm886, %v885, %v841
  %vm894 = vcmask 1043456
  %v895 = vsel %vm894, %v887, %v674
  %v896 = vsel %vm894, %v888, %v675
  %v897 = vsel %vm894, %v889, %v676
  %v898 = vsel %vm894, %v890, %v677
  %v899 = vsel %vm894, %v891, %v678
  %v900 = vsel %vm894, %v892, %v679
  %v901 = vsel %vm894, %v893, %v680
  %vm902 = vcmask 1044480
  %v903 = vsel %vm902, %v895, %v856
  %v904 = vsel %vm902, %v896, %v857
  %v905 = vsel %vm902, %v897, %v858
  %v906 = vsel %vm902, %v898, %v859
  %v907 = vsel %vm902, %v899, %v860
  %v908 = vsel %vm902, %v900, %v861
  %v909 = vsel %vm902, %v901, %v862
  %910 = vst [vmem:[%s4] sm:$0x3f] %v903
  %911 = vst [vmem:[%s4 + $0x8] sm:$0x3f] %v904
  %912 = vst [vmem:[%s4 + $0x10] sm:$0x3f] %v905
  %913 = vst [vmem:[%s4 + $0x18] sm:$0x3f] %v906
  %914 = vst [vmem:[%s4 + $0x20] sm:$0x3f] %v907
  %915 = vst [vmem:[%s4 + $0x28] sm:$0x3f] %v908
  %916 = vst [vmem:[%s4 + $0x30] sm:$0x3f] %v909
  %v917 = vld [vmem:[%s3] sm:$0xff]
  %v918 = vld [vmem:[%s3 + $0x8] sm:$0xff]
  %v919 = vld [vmem:[%s3 + $0x10] sm:$0xff]
  %v920 = vld [vmem:[%s3 + $0x18] sm:$0xff]
  %v921 = vld [vmem:[%s3 + $0x20] sm:$0xff]
  %v922 = vld [vmem:[%s3 + $0x28] sm:$0xff]
  %v923 = vld [vmem:[%s3 + $0x30] sm:$0xff]
  %v924 = vld [vmem:[%s3 + $0x38] sm:$0xff]
  %v925 = vld [vmem:[%s3 + $0x40] sm:$0xff]
  %v926 = vld [vmem:[%s3 + $0x48] sm:$0xff]
  %v927 = vld [vmem:[%s3 + $0x50] sm:$0xff]
  %v928 = vld [vmem:[%s3 + $0x58] sm:$0xff]
  %v929 = vld [vmem:[%s3 + $0x60] sm:$0xff]
  %v930 = vld [vmem:[%s3 + $0x68] sm:$0xff]
  %v931 = vld [vmem:[%s3 + $0x70] sm:$0xff]
  %v932 = vld [vmem:[%s3 + $0x78] sm:$0xff]
  %v933 = vld [vmem:[%s3 + $0x80] sm:$0xff]
  %v934 = vld [vmem:[%s3 + $0x88] sm:$0xff]
  %v935 = vld [vmem:[%s3 + $0x90] sm:$0xff]
  %v936 = vld [vmem:[%s3 + $0x98] sm:$0xff]
  %v937 = vld [vmem:[%s3 + $0xa0] sm:$0xff]
  %v938 = vld [vmem:[%s3 + $0xa8] sm:$0xff]
  %v939 = vld [vmem:[%s3 + $0xb0] sm:$0xff]
  %v940 = vld [vmem:[%s3 + $0xb8] sm:$0xff]
  %v941 = vld [vmem:[%s3 + $0xc0] sm:$0xff]
  %v942 = vld [vmem:[%s3 + $0xc8] sm:$0xff]
  %v943 = vld [vmem:[%s3 + $0xd0] sm:$0xff]
  %v944 = vld [vmem:[%s3 + $0xd8] sm:$0xff]
  %v945 = vld [vmem:[%s3 + $0xe0] sm:$0xff]
  %v946 = vld [vmem:[%s3 + $0xe8] sm:$0xff]
  %v947 = vld [vmem:[%s3 + $0xf0] sm:$0xff]
  %v948 = vld [vmem:[%s3 + $0xf8] sm:$0xff]
  %v949 = vld [vmem:[%s3 + $0x100] sm:$0xff]
  %v950 = vld [vmem:[%s3 + $0x108] sm:$0xff]
  %v951 = vld [vmem:[%s3 + $0x110] sm:$0xff]
  %v952 = vld [vmem:[%s3 + $0x118] sm:$0xff]
  %v953 = vld [vmem:[%s3 + $0x120] sm:$0xff]
  %v954 = vld [vmem:[%s3 + $0x128] sm:$0xff]
  %v955 = vld [vmem:[%s3 + $0x130] sm:$0xff]
  %v956 = vld [vmem:[%s3 + $0x138] sm:$0xff]
  %v957 = vld [vmem:[%s3 + $0x140] sm:$0xff]
  %v958 = vld [vmem:[%s3 + $0x148] sm:$0xff]
  %v959 = vld [vmem:[%s3 + $0x150] sm:$0xff]
  %v960 = vld [vmem:[%s3 + $0x158] sm:$0xff]
  %v961 = vld [vmem:[%s3 + $0x160] sm:$0xff]
  %v962 = vld [vmem:[%s3 + $0x168] sm:$0xff]
  %v963 = vld [vmem:[%s3 + $0x170] sm:$0xff]
  %v964 = vld [vmem:[%s3 + $0x178] sm:$0xff]
  %v965 = vld [vmem:[%s3 + $0x180] sm:$0xff]
  %v966 = vld [vmem:[%s3 + $0x188] sm:$0xff]
  %v967 = vld [vmem:[%s3 + $0x190] sm:$0xff]
  %v968 = vld [vmem:[%s3 + $0x198] sm:$0xff]
  %v969 = vld [vmem:[%s3 + $0x1a0] sm:$0xff]
  %v970 = vld [vmem:[%s3 + $0x1a8] sm:$0xff]
  %v971 = vld [vmem:[%s3 + $0x1b0] sm:$0xff]
  %v972 = vld [vmem:[%s3 + $0x1b8] sm:$0xff]
  %v973 = vld [vmem:[%s3 + $0x1c0] sm:$0xff]
  %v974 = vld [vmem:[%s3 + $0x1c8] sm:$0xff]
  %v975 = vld [vmem:[%s3 + $0x1d0] sm:$0xff]
  %v976 = vld [vmem:[%s3 + $0x1d8] sm:$0xff]
  %v977 = vld [vmem:[%s3 + $0x1e0] sm:$0xff]
  %v978 = vld [vmem:[%s3 + $0x1e8] sm:$0xff]
  %v979 = vld [vmem:[%s3 + $0x1f0] sm:$0xff]
  %v980 = vld [vmem:[%s3 + $0x1f8] sm:$0xff]
  %v981 = vld [vmem:[%s3 + $0x200] sm:$0xff]
  %v982 = vld [vmem:[%s3 + $0x208] sm:$0xff]
  %v983 = vld [vmem:[%s3 + $0x210] sm:$0xff]
  %v984 = vld [vmem:[%s3 + $0x218] sm:$0xff]
  %v985 = vld [vmem:[%s3 + $0x220] sm:$0xff]
  %v986 = vld [vmem:[%s3 + $0x228] sm:$0xff]
  %v987 = vld [vmem:[%s3 + $0x230] sm:$0xff]
  %v988 = vld [vmem:[%s3 + $0x238] sm:$0xff]
  %v989 = vld [vmem:[%s3 + $0x240] sm:$0xff]
  %v990 = vld [vmem:[%s3 + $0x248] sm:$0xff]
  %v991 = vld [vmem:[%s3 + $0x250] sm:$0xff]
  %v992 = vld [vmem:[%s3 + $0x258] sm:$0xff]
  %v993 = vld [vmem:[%s3 + $0x260] sm:$0xff]
  %v994 = vld [vmem:[%s3 + $0x268] sm:$0xff]
  %v995 = vld [vmem:[%s3 + $0x270] sm:$0xff]
  %v996 = vld [vmem:[%s3 + $0x278] sm:$0xff]
  %v997 = vld [vmem:[%s3 + $0x280] sm:$0xff]
  %v998 = vld [vmem:[%s3 + $0x288] sm:$0xff]
  %v999 = vld [vmem:[%s3 + $0x290] sm:$0xff]
  %v1000 = vld [vmem:[%s3 + $0x298] sm:$0xff]
  %v1001 = vld [vmem:[%s3 + $0x2a0] sm:$0xff]
  %v1002 = vld [vmem:[%s3 + $0x2a8] sm:$0xff]
  %v1003 = vld [vmem:[%s3 + $0x2b0] sm:$0xff]
  %v1004 = vld [vmem:[%s3 + $0x2b8] sm:$0xff]
  %v1005 = vld [vmem:[%s3 + $0x2c0] sm:$0xff]
  %v1006 = vld [vmem:[%s3 + $0x2c8] sm:$0xff]
  %v1007 = vld [vmem:[%s3 + $0x2d0] sm:$0xff]
  %v1008 = vld [vmem:[%s3 + $0x2d8] sm:$0xff]
  %v1009 = vld [vmem:[%s3 + $0x2e0] sm:$0xff]
  %v1010 = vld [vmem:[%s3 + $0x2e8] sm:$0xff]
  %v1011 = vld [vmem:[%s3 + $0x2f0] sm:$0xff]
  %v1012 = vld [vmem:[%s3 + $0x2f8] sm:$0xff]
  %v1013 = vld [vmem:[%s3 + $0x300] sm:$0xff]
  %v1014 = vld [vmem:[%s3 + $0x308] sm:$0xff]
  %v1015 = vld [vmem:[%s3 + $0x310] sm:$0xff]
  %v1016 = vld [vmem:[%s3 + $0x318] sm:$0xff]
  %v1017 = vld [vmem:[%s3 + $0x320] sm:$0xff]
  %v1018 = vld [vmem:[%s3 + $0x328] sm:$0xff]
  %v1019 = vld [vmem:[%s3 + $0x330] sm:$0xff]
  %v1020 = vld [vmem:[%s3 + $0x338] sm:$0xff]
  %v1021 = vld [vmem:[%s3 + $0x340] sm:$0xff]
  %v1022 = vld [vmem:[%s3 + $0x348] sm:$0xff]
  %v1023 = vld [vmem:[%s3 + $0x350] sm:$0xff]
  %v1024 = vld [vmem:[%s3 + $0x358] sm:$0xff]
  %v1025 = vld [vmem:[%s3 + $0x360] sm:$0xff]
  %v1026 = vld [vmem:[%s3 + $0x368] sm:$0xff]
  %v1027 = vld [vmem:[%s3 + $0x370] sm:$0xff]
  %v1028 = vld [vmem:[%s3 + $0x378] sm:$0xff]
  %1029 = vmatpush.msra.mxu0 %v932
  %1030 = vmatpush.msra.mxu0 %v931
  %1031 = vmatpush.msra.mxu0 %v930
  %1032 = vmatpush.msra.mxu0 %v929
  %1033 = vmatpush.msra.mxu0 %v928
  %1034 = vmatpush.msra.mxu0 %v927
  %1035 = vmatpush.msra.mxu0 %v926
  %1036 = vmatpush.msra.mxu0 %v925
  %1037 = vmatpush.msra.mxu0 %v924
  %1038 = vmatpush.msra.mxu0 %v923
  %1039 = vmatpush.msra.mxu0 %v922
  %1040 = vmatpush.msra.mxu0 %v921
  %1041 = vmatpush.msra.mxu0 %v920
  %1042 = vmatpush.msra.mxu0 %v919
  %1043 = vmatpush.msra.mxu0 %v918
  %1044 = vmatpush.msra.mxu0 %v917
  %1045 = vmatmul.f32.gmra.mxu0 %v903
  %v1046 = vpop.f32.mrf.mxu0
  %v1047 = vadd.f32 0.0, %v1046
  %1048 = vdwg.mxu0
  %1049 = vmatpush.msra.mxu0 %v948
  %1050 = vmatpush.msra.mxu0 %v947
  %1051 = vmatpush.msra.mxu0 %v946
  %1052 = vmatpush.msra.mxu0 %v945
  %1053 = vmatpush.msra.mxu0 %v944
  %1054 = vmatpush.msra.mxu0 %v943
  %1055 = vmatpush.msra.mxu0 %v942
  %1056 = vmatpush.msra.mxu0 %v941
  %1057 = vmatpush.msra.mxu0 %v940
  %1058 = vmatpush.msra.mxu0 %v939
  %1059 = vmatpush.msra.mxu0 %v938
  %1060 = vmatpush.msra.mxu0 %v937
  %1061 = vmatpush.msra.mxu0 %v936
  %1062 = vmatpush.msra.mxu0 %v935
  %1063 = vmatpush.msra.mxu0 %v934
  %1064 = vmatpush.msra.mxu0 %v933
  %1065 = vmatmul.f32.gmra.mxu0 %v904
  %v1066 = vpop.f32.mrf.mxu0
  %v1067 = vadd.f32 %v1047, %v1066
  %1068 = vdwg.mxu0
  %1069 = vmatpush.msra.mxu0 %v964
  %1070 = vmatpush.msra.mxu0 %v963
  %1071 = vmatpush.msra.mxu0 %v962
  %1072 = vmatpush.msra.mxu0 %v961
  %1073 = vmatpush.msra.mxu0 %v960
  %1074 = vmatpush.msra.mxu0 %v959
  %1075 = vmatpush.msra.mxu0 %v958
  %1076 = vmatpush.msra.mxu0 %v957
  %1077 = vmatpush.msra.mxu0 %v956
  %1078 = vmatpush.msra.mxu0 %v955
  %1079 = vmatpush.msra.mxu0 %v954
  %1080 = vmatpush.msra.mxu0 %v953
  %1081 = vmatpush.msra.mxu0 %v952
  %1082 = vmatpush.msra.mxu0 %v951
  %1083 = vmatpush.msra.mxu0 %v950
  %1084 = vmatpush.msra.mxu0 %v949
  %1085 = vmatmul.f32.gmra.mxu0 %v905
  %v1086 = vpop.f32.mrf.mxu0
  %v1087 = vadd.f32 %v1067, %v1086
  %1088 = vdwg.mxu0
  %1089 = vmatpush.msra.mxu0 %v980
  %1090 = vmatpush.msra.mxu0 %v979
  %1091 = vmatpush.msra.mxu0 %v978
  %1092 = vmatpush.msra.mxu0 %v977
  %1093 = vmatpush.msra.mxu0 %v976
  %1094 = vmatpush.msra.mxu0 %v975
  %1095 = vmatpush.msra.mxu0 %v974
  %1096 = vmatpush.msra.mxu0 %v973
  %1097 = vmatpush.msra.mxu0 %v972
  %1098 = vmatpush.msra.mxu0 %v971
  %1099 = vmatpush.msra.mxu0 %v970
  %1100 = vmatpush.msra.mxu0 %v969
  %1101 = vmatpush.msra.mxu0 %v968
  %1102 = vmatpush.msra.mxu0 %v967
  %1103 = vmatpush.msra.mxu0 %v966
  %1104 = vmatpush.msra.mxu0 %v965
  %1105 = vmatmul.f32.gmra.mxu0 %v906
  %v1106 = vpop.f32.mrf.mxu0
  %v1107 = vadd.f32 %v1087, %v1106
  %1108 = vdwg.mxu0
  %1109 = vmatpush.msra.mxu0 %v996
  %1110 = vmatpush.msra.mxu0 %v995
  %1111 = vmatpush.msra.mxu0 %v994
  %1112 = vmatpush.msra.mxu0 %v993
  %1113 = vmatpush.msra.mxu0 %v992
  %1114 = vmatpush.msra.mxu0 %v991
  %1115 = vmatpush.msra.mxu0 %v990
  %1116 = vmatpush.msra.mxu0 %v989
  %1117 = vmatpush.msra.mxu0 %v988
  %1118 = vmatpush.msra.mxu0 %v987
  %1119 = vmatpush.msra.mxu0 %v986
  %1120 = vmatpush.msra.mxu0 %v985
  %1121 = vmatpush.msra.mxu0 %v984
  %1122 = vmatpush.msra.mxu0 %v983
  %1123 = vmatpush.msra.mxu0 %v982
  %1124 = vmatpush.msra.mxu0 %v981
  %1125 = vmatmul.f32.gmra.mxu0 %v907
  %v1126 = vpop.f32.mrf.mxu0
  %v1127 = vadd.f32 %v1107, %v1126
  %1128 = vdwg.mxu0
  %1129 = vmatpush.msra.mxu0 %v1012
  %1130 = vmatpush.msra.mxu0 %v1011
  %1131 = vmatpush.msra.mxu0 %v1010
  %1132 = vmatpush.msra.mxu0 %v1009
  %1133 = vmatpush.msra.mxu0 %v1008
  %1134 = vmatpush.msra.mxu0 %v1007
  %1135 = vmatpush.msra.mxu0 %v1006
  %1136 = vmatpush.msra.mxu0 %v1005
  %1137 = vmatpush.msra.mxu0 %v1004
  %1138 = vmatpush.msra.mxu0 %v1003
  %1139 = vmatpush.msra.mxu0 %v1002
  %1140 = vmatpush.msra.mxu0 %v1001
  %1141 = vmatpush.msra.mxu0 %v1000
  %1142 = vmatpush.msra.mxu0 %v999
  %1143 = vmatpush.msra.mxu0 %v998
  %1144 = vmatpush.msra.mxu0 %v997
  %1145 = vmatmul.f32.gmra.mxu0 %v908
  %v1146 = vpop.f32.mrf.mxu0
  %v1147 = vadd.f32 %v1127, %v1146
  %1148 = vdwg.mxu0
  %1149 = vmatpush.msra.mxu0 %v1028
  %1150 = vmatpush.msra.mxu0 %v1027
  %1151 = vmatpush.msra.mxu0 %v1026
  %1152 = vmatpush.msra.mxu0 %v1025
  %1153 = vmatpush.msra.mxu0 %v1024
  %1154 = vmatpush.msra.mxu0 %v1023
  %1155 = vmatpush.msra.mxu0 %v1022
  %1156 = vmatpush.msra.mxu0 %v1021
  %1157 = vmatpush.msra.mxu0 %v1020
  %1158 = vmatpush.msra.mxu0 %v1019
  %1159 = vmatpush.msra.mxu0 %v1018
  %1160 = vmatpush.msra.mxu0 %v1017
  %1161 = vmatpush.msra.mxu0 %v1016
  %1162 = vmatpush.msra.mxu0 %v1015
  %1163 = vmatpush.msra.mxu0 %v1014
  %1164 = vmatpush.msra.mxu0 %v1013
  %1165 = vmatmul.f32.gmra.mxu0 %v909
  %v1166 = vpop.f32.mrf.mxu0
  %v1167 = vadd.f32 %v1147, %v1166
  %1168 = vdwg.mxu0
  %1169 = vst [vmem:[%s5] sm:$0x3f] %v1167
  // Predicated region
  $region18: #{_lambda_.3} parent=0 // pred_check
    _
  $region19: #{_lambda_.3} parent=0 // pred_check_branch
    %1171 = sbr.rel (0) target = $region21
  $region20: #{_lambda_.3} parent=0 // pred_region
    _
  $region21: #{_lambda_.3} parent=0 // pred_fallthru
    _
  // Predicated region
  $region22: #{_lambda_.3} parent=0 // pred_check
    _
  $region23: #{_lambda_.3} parent=0 // pred_check_branch
    %1173 = sbr.rel (0) target = $region25
  $region24: #{_lambda_.3} parent=0 // pred_region
    _
  $region25: #{_lambda_.3} parent=0 // pred_fallthru
    _
  // Predicated region
  $region26: #{_lambda_.3} parent=0 // pred_check
    _
  $region27: #{_lambda_.3} parent=0 // pred_check_branch
    %1175 = sbr.rel (0) target = $region29
  $region28: #{_lambda_.3} parent=0 // pred_region
    _
  $region29: #{_lambda_.3} parent=0 // pred_fallthru
    _
  // Predicated region
  $region30: #{_lambda_.3} parent=0 // pred_check
    _
  $region31: #{_lambda_.3} parent=0 // pred_check_branch
    %1177 = sbr.rel (0) target = $region33
  $region32: #{_lambda_.3} parent=0 // pred_region
    _
  $region33: #{_lambda_.3} parent=0 // pred_fallthru
    _

</llo_original>
